<compile_context>
chip_gen: v5e
topology: v5e:2x2
jax: 0.10.0
libtpu: 0.0.40
codegen_flags: <defaults>
</compile_context>

<pallas_src>
import functools

import jax
import jax.numpy as jnp
from jax.experimental import pallas as pl
from jax.experimental.pallas import tpu as pltpu


# -----------------------------------------------------------------------------
# Fused Block kernel: one grid step per image.
# -----------------------------------------------------------------------------
def _block_kernel(H, W, C, K,
                  x_ref,
                  w1_ref, b1_ref, w2_ref, b2_ref,
                  caw1_ref, cab1_ref, caw2_ref, cab2_ref,
                  paw1_ref, pab1_ref, paw2_ref, pab2_ref,
                  o_ref,
                  xpad_ref):
    p = K // 2
    HW = H * W
    inv_hw = 1.0 / float(HW)

    # Zero the padded scratch (halo stays zero; interior is overwritten per conv).
    xpad_ref[...] = jnp.zeros_like(xpad_ref)

    def conv_same(inp_hwc, w_ref, b_ref):
        # Write the interior of the padded VMEM buffer (no HBM jnp.pad round trip).
        xpad_ref[p:p + H, p:p + W, :] = inp_hwc
        # im2col: gather the K*K shifted patches into one (HW, K*K*C) matrix.
        patches = [
            xpad_ref[dy:dy + H, dx:dx + W, :].reshape(HW, C)
            for dy in range(K) for dx in range(K)
        ]
        cols = jnp.concatenate(patches, axis=-1)                    # (HW, K*K*C)
        return (jnp.dot(cols, w_ref[...],
                        preferred_element_type=jnp.float32)
                + b_ref[...])                                       # (HW, C)

    x = x_ref[0].astype(jnp.float32)                                # (H, W, C)
    x_flat = x.reshape(HW, C)

    # res = relu(conv1(x)) + x
    r = jnp.maximum(conv_same(x, w1_ref, b1_ref), 0.0) + x_flat     # (HW, C)

    # res = conv2(res)
    y = conv_same(r.reshape(H, W, C), w2_ref, b2_ref)               # (HW, C)

    # CALayer: global avg pool -> 1x1 (C->C/8) -> ReLU -> 1x1 (C/8->C) -> sigmoid.
    m = jnp.sum(y, axis=0, keepdims=True) * inv_hw                  # (1, C)
    h = jnp.maximum(
        jnp.dot(m, caw1_ref[...], preferred_element_type=jnp.float32)
        + cab1_ref[...], 0.0)                                       # (1, C8)
    s = jax.nn.sigmoid(
        jnp.dot(h, caw2_ref[...], preferred_element_type=jnp.float32)
        + cab2_ref[...])                                            # (1, C)
    y = y * s                                                       # channel attention

    # PALayer: 1x1 (C->C/8) -> ReLU -> 1x1 (C/8->1) -> sigmoid.
    z = jnp.maximum(
        jnp.dot(y, paw1_ref[...], preferred_element_type=jnp.float32)
        + pab1_ref[...], 0.0)                                       # (HW, C8)
    # Second 1x1 conv has a single output channel: do it on the VPU (mul + lane
    # reduce) instead of a fully masked 1-column MXU matmul.
    a = jax.nn.sigmoid(
        jnp.sum(z * paw2_ref[...], axis=-1, keepdims=True) + pab2_ref[...])  # (HW, 1)
    y = y * a                                                       # pixel attention

    # block residual
    out = y + x_flat
    o_ref[...] = out.reshape(1, H, W, C).astype(o_ref.dtype)


# -----------------------------------------------------------------------------
# Wrapper around pallas_call (NHWC).
# -----------------------------------------------------------------------------
def block_forward_nhwc(x, params, kernel_size):
    N, H, W, C = x.shape
    K = kernel_size
    C8 = params["ca_w1"].shape[1]
    KKC = K * K * C
    Hp, Wp = H + 2 * (K // 2), W + 2 * (K // 2)

    kernel = functools.partial(_block_kernel, H, W, C, K)

    img_spec = pl.BlockSpec((1, H, W, C), lambda n: (n, 0, 0, 0))
    const2d = lambda shape: pl.BlockSpec(shape, lambda n: (0, 0))

    return pl.pallas_call(
        kernel,
        out_shape=jax.ShapeDtypeStruct((N, H, W, C), x.dtype),
        grid=(N,),
        in_specs=[
            img_spec,                       # x
            const2d((KKC, C)),              # conv1 weight (flattened)
            const2d((1, C)),                # conv1 bias
            const2d((KKC, C)),              # conv2 weight (flattened)
            const2d((1, C)),                # conv2 bias
            const2d((C, C8)),               # CA 1x1 #1
            const2d((1, C8)),
            const2d((C8, C)),               # CA 1x1 #2
            const2d((1, C)),
            const2d((C, C8)),               # PA 1x1 #1
            const2d((1, C8)),
            const2d((1, C8)),               # PA 1x1 #2 (row vector, used on VPU)
            const2d((1, 1)),
        ],
        out_specs=img_spec,
        scratch_shapes=[pltpu.VMEM((Hp, Wp, C), jnp.float32)],   # zero-halo pad buffer
        compiler_params=pltpu.CompilerParams(dimension_semantics=("parallel",)),
    )(x,
      params["w1f"], params["b1"], params["w2f"], params["b2"],
      params["ca_w1"], params["ca_b1"], params["ca_w2"], params["ca_b2"],
      params["pa_w1"], params["pa_b1"], params["pa_w2r"], params["pa_b2"])


def block_forward_nchw(x_nchw, params, kernel_size):
    """Matches PyTorch Block(conv, dim, kernel_size).forward on NCHW input."""
    x = jnp.transpose(x_nchw, (0, 2, 3, 1))       # NCHW -> NHWC
    y = block_forward_nhwc(x, params, kernel_size)
    return jnp.transpose(y, (0, 3, 1, 2))         # NHWC -> NCHW


# -----------------------------------------------------------------------------
# Parameters: generated in PyTorch layout, then converted for the kernel.
# -----------------------------------------------------------------------------
def init_block_params_torch(key, dim, kernel_size):
    c8 = dim // 8
    ks = jax.random.split(key, 12)
    n = jax.random.normal
    return {
        "conv1_w": 0.05 * n(ks[0], (dim, dim, kernel_size, kernel_size), jnp.float32),
        "conv1_b": 0.01 * n(ks[1], (dim,), jnp.float32),
        "conv2_w": 0.05 * n(ks[2], (dim, dim, kernel_size, kernel_size), jnp.float32),
        "conv2_b": 0.01 * n(ks[3], (dim,), jnp.float32),
        "ca_w1": 0.1 * n(ks[4], (c8, dim, 1, 1), jnp.float32),
        "ca_b1": 0.01 * n(ks[5], (c8,), jnp.float32),
        "ca_w2": 0.1 * n(ks[6], (dim, c8, 1, 1), jnp.float32),
        "ca_b2": 0.01 * n(ks[7], (dim,), jnp.float32),
        "pa_w1": 0.1 * n(ks[8], (c8, dim, 1, 1), jnp.float32),
        "pa_b1": 0.01 * n(ks[9], (c8,), jnp.float32),
        "pa_w2": 0.1 * n(ks[10], (1, c8, 1, 1), jnp.float32),
        "pa_b2": 0.01 * n(ks[11], (1,), jnp.float32),
    }


def prepare_params(tp, dim, kernel_size):
    K = kernel_size
    c8 = dim // 8

    def conv_flat(w_oihw):   # (Cout,Cin,K,K) -> (K*K*Cin, Cout), tap-major like im2col
        return jnp.transpose(w_oihw, (2, 3, 1, 0)).reshape(K * K * dim, dim)

    def pw(w_oi11):          # (Cout,Cin,1,1) -> (Cin, Cout)
        return jnp.transpose(w_oi11[:, :, 0, 0], (1, 0))

    return {
        "w1f": conv_flat(tp["conv1_w"]), "b1": tp["conv1_b"].reshape(1, dim),
        "w2f": conv_flat(tp["conv2_w"]), "b2": tp["conv2_b"].reshape(1, dim),
        "ca_w1": pw(tp["ca_w1"]), "ca_b1": tp["ca_b1"].reshape(1, c8),
        "ca_w2": pw(tp["ca_w2"]), "ca_b2": tp["ca_b2"].reshape(1, dim),
        "pa_w1": pw(tp["pa_w1"]), "pa_b1": tp["pa_b1"].reshape(1, c8),
        "pa_w2r": tp["pa_w2"][:, :, 0, 0],            # (1, c8)
        "pa_b2": tp["pa_b2"].reshape(1, 1),
    }


# -----------------------------------------------------------------------------
# Pure-JAX reference (PyTorch semantics) for correctness checking.
# -----------------------------------------------------------------------------
def _conv2d_ref(x_nhwc, w_oihw, b):
    w_hwio = jnp.transpose(w_oihw, (2, 3, 1, 0))
    y = jax.lax.conv_general_dilated(
        x_nhwc, w_hwio, (1, 1), "SAME",
        dimension_numbers=("NHWC", "HWIO", "NHWC"))
    return y + b.reshape(1, 1, 1, -1)


def _conv1x1_ref(x_nhwc, w_oi11, b):
    w = w_oi11[:, :, 0, 0]                             # (Cout, Cin)
    return jnp.einsum("nhwc,oc->nhwo", x_nhwc, w) + b.reshape(1, 1, 1, -1)


def block_reference_nchw(x_nchw, tp):
    x = jnp.transpose(x_nchw, (0, 2, 3, 1))
    r = jax.nn.relu(_conv2d_ref(x, tp["conv1_w"], tp["conv1_b"])) + x
    y = _conv2d_ref(r, tp["conv2_w"], tp["conv2_b"])
    # CALayer
    m = jnp.mean(y, axis=(1, 2), keepdims=True)
    h = jax.nn.relu(_conv1x1_ref(m, tp["ca_w1"], tp["ca_b1"]))
    s = jax.nn.sigmoid(_conv1x1_ref(h, tp["ca_w2"], tp["ca_b2"]))
    y = y * s
    # PALayer
    z = jax.nn.relu(_conv1x1_ref(y, tp["pa_w1"], tp["pa_b1"]))
    a = jax.nn.sigmoid(_conv1x1_ref(z, tp["pa_w2"], tp["pa_b2"]))
    y = y * a
    y = y + x
    return jnp.transpose(y, (0, 3, 1, 2))


if __name__ == "__main__":
    N, C, H, W = 2, 16, 16, 16      # dim=16 so channel // 8 = 2
    K = 3

    key = jax.random.PRNGKey(0)
    kx, kp = jax.random.split(key)
    x = jax.random.normal(kx, (N, C, H, W), jnp.float32)   # PyTorch-style NCHW input
    torch_params = init_block_params_torch(kp, C, K)
    params = prepare_params(torch_params, C, K)

    fwd = jax.jit(functools.partial(block_forward_nchw, kernel_size=K))
    y = jax.block_until_ready(fwd(x, params))

    y_ref = block_reference_nchw(x, torch_params)

    assert y.shape == (N, C, H, W)
    assert jnp.all(jnp.isfinite(y))
    assert jnp.allclose(y, y_ref, atol=3e-4, rtol=3e-4), \
        float(jnp.max(jnp.abs(y - y_ref)))
    print("KERNEL_OK")
</pallas_src>

<mosaic_0001>
module attributes {stable_mosaic.version = 11 : i64} {
  func.func @_block_kernel(%arg0: i32, %arg1: memref<1x16x16x16xf32, #tpu.memory_space<vmem>>, %arg2: memref<144x16xf32, #tpu.memory_space<vmem>>, %arg3: memref<1x16xf32, #tpu.memory_space<vmem>>, %arg4: memref<144x16xf32, #tpu.memory_space<vmem>>, %arg5: memref<1x16xf32, #tpu.memory_space<vmem>>, %arg6: memref<16x2xf32, #tpu.memory_space<vmem>>, %arg7: memref<1x2xf32, #tpu.memory_space<vmem>>, %arg8: memref<2x16xf32, #tpu.memory_space<vmem>>, %arg9: memref<1x16xf32, #tpu.memory_space<vmem>>, %arg10: memref<16x2xf32, #tpu.memory_space<vmem>>, %arg11: memref<1x2xf32, #tpu.memory_space<vmem>>, %arg12: memref<1x2xf32, #tpu.memory_space<vmem>>, %arg13: memref<1x1xf32, #tpu.memory_space<vmem>>, %arg14: memref<1x16x16x16xf32, #tpu.memory_space<vmem>>, %arg15: memref<18x18x16xf32, #tpu.memory_space<vmem>>) attributes {dimension_semantics = [#tpu.dimension_semantics<parallel>], iteration_bounds = array<i64: 2>, scalar_prefetch = 0 : i64, scratch_operands = 1 : i64, tpu.core_type = #tpu.core_type<tc>, window_params = [{transform_indices = @transform_0, window_bounds = array<i64: 1, 16, 16, 16>}, {pipeline_mode = #tpu.pipeline_mode<synchronous>, transform_indices = @transform_1, window_bounds = array<i64: 144, 16>}, {pipeline_mode = #tpu.pipeline_mode<synchronous>, transform_indices = @transform_2, window_bounds = array<i64: 1, 16>}, {pipeline_mode = #tpu.pipeline_mode<synchronous>, transform_indices = @transform_3, window_bounds = array<i64: 144, 16>}, {pipeline_mode = #tpu.pipeline_mode<synchronous>, transform_indices = @transform_4, window_bounds = array<i64: 1, 16>}, {pipeline_mode = #tpu.pipeline_mode<synchronous>, transform_indices = @transform_5, window_bounds = array<i64: 16, 2>}, {pipeline_mode = #tpu.pipeline_mode<synchronous>, transform_indices = @transform_6, window_bounds = array<i64: 1, 2>}, {pipeline_mode = #tpu.pipeline_mode<synchronous>, transform_indices = @transform_7, window_bounds = array<i64: 2, 16>}, {pipeline_mode = #tpu.pipeline_mode<synchronous>, transform_indices = @transform_8, window_bounds = array<i64: 1, 16>}, {pipeline_mode = #tpu.pipeline_mode<synchronous>, transform_indices = @transform_9, window_bounds = array<i64: 16, 2>}, {pipeline_mode = #tpu.pipeline_mode<synchronous>, transform_indices = @transform_10, window_bounds = array<i64: 1, 2>}, {pipeline_mode = #tpu.pipeline_mode<synchronous>, transform_indices = @transform_11, window_bounds = array<i64: 1, 2>}, {pipeline_mode = #tpu.pipeline_mode<synchronous>, transform_indices = @transform_12, window_bounds = array<i64: 1, 1>}, {transform_indices = @transform_13, window_bounds = array<i64: 1, 16, 16, 16>}]} {
    %cst = arith.constant 0.000000e+00 : f32
    %0 = vector.broadcast %cst : f32 to vector<18x18x16xf32>
    %c0 = arith.constant 0 : index
    %c0_0 = arith.constant 0 : index
    %c0_1 = arith.constant 0 : index
    %1 = vector.load %arg15[%c0, %c0_0, %c0_1] : memref<18x18x16xf32, #tpu.memory_space<vmem>>, vector<18x18x16xf32>
    tpu.vector_store %arg15[%c0, %c0_0, %c0_1], %0 {strides = array<i32>} : memref<18x18x16xf32, #tpu.memory_space<vmem>>, vector<18x18x16xf32>,
    %c0_2 = arith.constant 0 : index
    %c0_3 = arith.constant 0 : index
    %c0_4 = arith.constant 0 : index
    %c0_5 = arith.constant 0 : index
    %2 = vector.load %arg1[%c0_2, %c0_3, %c0_4, %c0_5] : memref<1x16x16x16xf32, #tpu.memory_space<vmem>>, vector<1x16x16x16xf32>
    %3 = vector.shape_cast %2 : vector<1x16x16x16xf32> to vector<16x16x16xf32>
    %4 = vector.shape_cast %3 : vector<16x16x16xf32> to vector<256x16xf32>
    %c1 = arith.constant 1 : index
    %c1_6 = arith.constant 1 : index
    %c0_7 = arith.constant 0 : index
    %5 = vector.load %arg15[%c1, %c1_6, %c0_7] : memref<18x18x16xf32, #tpu.memory_space<vmem>>, vector<16x16x16xf32>
    tpu.vector_store %arg15[%c1, %c1_6, %c0_7], %3 {strides = array<i32>} : memref<18x18x16xf32, #tpu.memory_space<vmem>>, vector<16x16x16xf32>,
    %c0_8 = arith.constant 0 : index
    %c0_9 = arith.constant 0 : index
    %c0_10 = arith.constant 0 : index
    %6 = vector.load %arg15[%c0_8, %c0_9, %c0_10] : memref<18x18x16xf32, #tpu.memory_space<vmem>>, vector<16x16x16xf32>
    %7 = vector.shape_cast %6 : vector<16x16x16xf32> to vector<256x16xf32>
    %c0_11 = arith.constant 0 : index
    %c1_12 = arith.constant 1 : index
    %c0_13 = arith.constant 0 : index
    %8 = vector.load %arg15[%c0_11, %c1_12, %c0_13] : memref<18x18x16xf32, #tpu.memory_space<vmem>>, vector<16x16x16xf32>
    %9 = vector.shape_cast %8 : vector<16x16x16xf32> to vector<256x16xf32>
    %c0_14 = arith.constant 0 : index
    %c2 = arith.constant 2 : index
    %c0_15 = arith.constant 0 : index
    %10 = vector.load %arg15[%c0_14, %c2, %c0_15] : memref<18x18x16xf32, #tpu.memory_space<vmem>>, vector<16x16x16xf32>
    %11 = vector.shape_cast %10 : vector<16x16x16xf32> to vector<256x16xf32>
    %c1_16 = arith.constant 1 : index
    %c0_17 = arith.constant 0 : index
    %c0_18 = arith.constant 0 : index
    %12 = vector.load %arg15[%c1_16, %c0_17, %c0_18] : memref<18x18x16xf32, #tpu.memory_space<vmem>>, vector<16x16x16xf32>
    %13 = vector.shape_cast %12 : vector<16x16x16xf32> to vector<256x16xf32>
    %c1_19 = arith.constant 1 : index
    %c1_20 = arith.constant 1 : index
    %c0_21 = arith.constant 0 : index
    %14 = vector.load %arg15[%c1_19, %c1_20, %c0_21] : memref<18x18x16xf32, #tpu.memory_space<vmem>>, vector<16x16x16xf32>
    %15 = vector.shape_cast %14 : vector<16x16x16xf32> to vector<256x16xf32>
    %c1_22 = arith.constant 1 : index
    %c2_23 = arith.constant 2 : index
    %c0_24 = arith.constant 0 : index
    %16 = vector.load %arg15[%c1_22, %c2_23, %c0_24] : memref<18x18x16xf32, #tpu.memory_space<vmem>>, vector<16x16x16xf32>
    %17 = vector.shape_cast %16 : vector<16x16x16xf32> to vector<256x16xf32>
    %c2_25 = arith.constant 2 : index
    %c0_26 = arith.constant 0 : index
    %c0_27 = arith.constant 0 : index
    %18 = vector.load %arg15[%c2_25, %c0_26, %c0_27] : memref<18x18x16xf32, #tpu.memory_space<vmem>>, vector<16x16x16xf32>
    %19 = vector.shape_cast %18 : vector<16x16x16xf32> to vector<256x16xf32>
    %c2_28 = arith.constant 2 : index
    %c1_29 = arith.constant 1 : index
    %c0_30 = arith.constant 0 : index
    %20 = vector.load %arg15[%c2_28, %c1_29, %c0_30] : memref<18x18x16xf32, #tpu.memory_space<vmem>>, vector<16x16x16xf32>
    %21 = vector.shape_cast %20 : vector<16x16x16xf32> to vector<256x16xf32>
    %c2_31 = arith.constant 2 : index
    %c2_32 = arith.constant 2 : index
    %c0_33 = arith.constant 0 : index
    %22 = vector.load %arg15[%c2_31, %c2_32, %c0_33] : memref<18x18x16xf32, #tpu.memory_space<vmem>>, vector<16x16x16xf32>
    %23 = vector.shape_cast %22 : vector<16x16x16xf32> to vector<256x16xf32>
    %24 = tpu.concatenate %7, %9, %11, %13, %15, %17, %19, %21, %23 in 1 : vector<256x16xf32>, vector<256x16xf32>, vector<256x16xf32>, vector<256x16xf32>, vector<256x16xf32>, vector<256x16xf32>, vector<256x16xf32>, vector<256x16xf32>, vector<256x16xf32> -> vector<256x144xf32>
    %c0_34 = arith.constant 0 : index
    %c0_35 = arith.constant 0 : index
    %25 = vector.load %arg2[%c0_34, %c0_35] : memref<144x16xf32, #tpu.memory_space<vmem>>, vector<144x16xf32>
    %cst_36 = arith.constant dense<0.000000e+00> : vector<256x16xf32>
    %26 = tpu.matmul %24, %25, %cst_36 {dimension_numbers = #tpu.dot_dimension_numbers<[1], [0], [0], [1], [0, 0, 1, 1], [], []>} : vector<256x144xf32>, vector<144x16xf32>, vector<256x16xf32> -> vector<256x16xf32>
    %c0_37 = arith.constant 0 : index
    %c0_38 = arith.constant 0 : index
    %27 = vector.load %arg3[%c0_37, %c0_38] : memref<1x16xf32, #tpu.memory_space<vmem>>, vector<1x16xf32>
    %28 = vector.broadcast %27 : vector<1x16xf32> to vector<256x16xf32>
    %29 = arith.addf %26, %28 : vector<256x16xf32>
    %cst_39 = arith.constant 0.000000e+00 : f32
    %30 = vector.broadcast %cst_39 : f32 to vector<256x16xf32>
    %31 = arith.maximumf %29, %30 : vector<256x16xf32>
    %32 = arith.addf %31, %4 : vector<256x16xf32>
    %33 = vector.shape_cast %32 : vector<256x16xf32> to vector<16x16x16xf32>
    %c1_40 = arith.constant 1 : index
    %c1_41 = arith.constant 1 : index
    %c0_42 = arith.constant 0 : index
    %34 = vector.load %arg15[%c1_40, %c1_41, %c0_42] : memref<18x18x16xf32, #tpu.memory_space<vmem>>, vector<16x16x16xf32>
    tpu.vector_store %arg15[%c1_40, %c1_41, %c0_42], %33 {strides = array<i32>} : memref<18x18x16xf32, #tpu.memory_space<vmem>>, vector<16x16x16xf32>,
    %c0_43 = arith.constant 0 : index
    %c0_44 = arith.constant 0 : index
    %c0_45 = arith.constant 0 : index
    %35 = vector.load %arg15[%c0_43, %c0_44, %c0_45] : memref<18x18x16xf32, #tpu.memory_space<vmem>>, vector<16x16x16xf32>
    %36 = vector.shape_cast %35 : vector<16x16x16xf32> to vector<256x16xf32>
    %c0_46 = arith.constant 0 : index
    %c1_47 = arith.constant 1 : index
    %c0_48 = arith.constant 0 : index
    %37 = vector.load %arg15[%c0_46, %c1_47, %c0_48] : memref<18x18x16xf32, #tpu.memory_space<vmem>>, vector<16x16x16xf32>
    %38 = vector.shape_cast %37 : vector<16x16x16xf32> to vector<256x16xf32>
    %c0_49 = arith.constant 0 : index
    %c2_50 = arith.constant 2 : index
    %c0_51 = arith.constant 0 : index
    %39 = vector.load %arg15[%c0_49, %c2_50, %c0_51] : memref<18x18x16xf32, #tpu.memory_space<vmem>>, vector<16x16x16xf32>
    %40 = vector.shape_cast %39 : vector<16x16x16xf32> to vector<256x16xf32>
    %c1_52 = arith.constant 1 : index
    %c0_53 = arith.constant 0 : index
    %c0_54 = arith.constant 0 : index
    %41 = vector.load %arg15[%c1_52, %c0_53, %c0_54] : memref<18x18x16xf32, #tpu.memory_space<vmem>>, vector<16x16x16xf32>
    %42 = vector.shape_cast %41 : vector<16x16x16xf32> to vector<256x16xf32>
    %c1_55 = arith.constant 1 : index
    %c1_56 = arith.constant 1 : index
    %c0_57 = arith.constant 0 : index
    %43 = vector.load %arg15[%c1_55, %c1_56, %c0_57] : memref<18x18x16xf32, #tpu.memory_space<vmem>>, vector<16x16x16xf32>
    %44 = vector.shape_cast %43 : vector<16x16x16xf32> to vector<256x16xf32>
    %c1_58 = arith.constant 1 : index
    %c2_59 = arith.constant 2 : index
    %c0_60 = arith.constant 0 : index
    %45 = vector.load %arg15[%c1_58, %c2_59, %c0_60] : memref<18x18x16xf32, #tpu.memory_space<vmem>>, vector<16x16x16xf32>
    %46 = vector.shape_cast %45 : vector<16x16x16xf32> to vector<256x16xf32>
    %c2_61 = arith.constant 2 : index
    %c0_62 = arith.constant 0 : index
    %c0_63 = arith.constant 0 : index
    %47 = vector.load %arg15[%c2_61, %c0_62, %c0_63] : memref<18x18x16xf32, #tpu.memory_space<vmem>>, vector<16x16x16xf32>
    %48 = vector.shape_cast %47 : vector<16x16x16xf32> to vector<256x16xf32>
    %c2_64 = arith.constant 2 : index
    %c1_65 = arith.constant 1 : index
    %c0_66 = arith.constant 0 : index
    %49 = vector.load %arg15[%c2_64, %c1_65, %c0_66] : memref<18x18x16xf32, #tpu.memory_space<vmem>>, vector<16x16x16xf32>
    %50 = vector.shape_cast %49 : vector<16x16x16xf32> to vector<256x16xf32>
    %c2_67 = arith.constant 2 : index
    %c2_68 = arith.constant 2 : index
    %c0_69 = arith.constant 0 : index
    %51 = vector.load %arg15[%c2_67, %c2_68, %c0_69] : memref<18x18x16xf32, #tpu.memory_space<vmem>>, vector<16x16x16xf32>
    %52 = vector.shape_cast %51 : vector<16x16x16xf32> to vector<256x16xf32>
    %53 = tpu.concatenate %36, %38, %40, %42, %44, %46, %48, %50, %52 in 1 : vector<256x16xf32>, vector<256x16xf32>, vector<256x16xf32>, vector<256x16xf32>, vector<256x16xf32>, vector<256x16xf32>, vector<256x16xf32>, vector<256x16xf32>, vector<256x16xf32> -> vector<256x144xf32>
    %c0_70 = arith.constant 0 : index
    %c0_71 = arith.constant 0 : index
    %54 = vector.load %arg4[%c0_70, %c0_71] : memref<144x16xf32, #tpu.memory_space<vmem>>, vector<144x16xf32>
    %cst_72 = arith.constant dense<0.000000e+00> : vector<256x16xf32>
    %55 = tpu.matmul %53, %54, %cst_72 {dimension_numbers = #tpu.dot_dimension_numbers<[1], [0], [0], [1], [0, 0, 1, 1], [], []>} : vector<256x144xf32>, vector<144x16xf32>, vector<256x16xf32> -> vector<256x16xf32>
    %c0_73 = arith.constant 0 : index
    %c0_74 = arith.constant 0 : index
    %56 = vector.load %arg5[%c0_73, %c0_74] : memref<1x16xf32, #tpu.memory_space<vmem>>, vector<1x16xf32>
    %57 = vector.broadcast %56 : vector<1x16xf32> to vector<256x16xf32>
    %58 = arith.addf %55, %57 : vector<256x16xf32>
    %cst_75 = arith.constant dense<0.000000e+00> : vector<16xf32>
    %59 = vector.multi_reduction <add>, %58, %cst_75 [0] : vector<256x16xf32> to vector<16xf32>
    %60 = vector.shape_cast %59 : vector<16xf32> to vector<1x16xf32>
    %cst_76 = arith.constant 3.906250e-03 : f32
    %61 = vector.broadcast %cst_76 : f32 to vector<1x16xf32>
    %62 = arith.mulf %60, %61 : vector<1x16xf32>
    %c0_77 = arith.constant 0 : index
    %c0_78 = arith.constant 0 : index
    %63 = vector.load %arg6[%c0_77, %c0_78] : memref<16x2xf32, #tpu.memory_space<vmem>>, vector<16x2xf32>
    %cst_79 = arith.constant dense<0.000000e+00> : vector<1x2xf32>
    %64 = tpu.matmul %62, %63, %cst_79 {dimension_numbers = #tpu.dot_dimension_numbers<[1], [0], [0], [1], [0, 0, 1, 1], [], []>} : vector<1x16xf32>, vector<16x2xf32>, vector<1x2xf32> -> vector<1x2xf32>
    %c0_80 = arith.constant 0 : index
    %c0_81 = arith.constant 0 : index
    %65 = vector.load %arg7[%c0_80, %c0_81] : memref<1x2xf32, #tpu.memory_space<vmem>>, vector<1x2xf32>
    %66 = arith.addf %64, %65 : vector<1x2xf32>
    %cst_82 = arith.constant 0.000000e+00 : f32
    %67 = vector.broadcast %cst_82 : f32 to vector<1x2xf32>
    %68 = arith.maximumf %66, %67 : vector<1x2xf32>
    %c0_83 = arith.constant 0 : index
    %c0_84 = arith.constant 0 : index
    %69 = vector.load %arg8[%c0_83, %c0_84] : memref<2x16xf32, #tpu.memory_space<vmem>>, vector<2x16xf32>
    %cst_85 = arith.constant dense<0.000000e+00> : vector<1x16xf32>
    %70 = tpu.matmul %68, %69, %cst_85 {dimension_numbers = #tpu.dot_dimension_numbers<[1], [0], [0], [1], [0, 0, 1, 1], [], []>} : vector<1x2xf32>, vector<2x16xf32>, vector<1x16xf32> -> vector<1x16xf32>
    %c0_86 = arith.constant 0 : index
    %c0_87 = arith.constant 0 : index
    %71 = vector.load %arg9[%c0_86, %c0_87] : memref<1x16xf32, #tpu.memory_space<vmem>>, vector<1x16xf32>
    %72 = arith.addf %70, %71 : vector<1x16xf32>
    %73 = arith.negf %72 : vector<1x16xf32>
    %74 = math.exp %73 : vector<1x16xf32>
    %cst_88 = arith.constant 1.000000e+00 : f32
    %75 = vector.broadcast %cst_88 : f32 to vector<1x16xf32>
    %76 = arith.addf %75, %74 : vector<1x16xf32>
    %77 = arith.divf %75, %76 : vector<1x16xf32>
    %78 = vector.broadcast %77 : vector<1x16xf32> to vector<256x16xf32>
    %79 = arith.mulf %58, %78 : vector<256x16xf32>
    %c0_89 = arith.constant 0 : index
    %c0_90 = arith.constant 0 : index
    %80 = vector.load %arg10[%c0_89, %c0_90] : memref<16x2xf32, #tpu.memory_space<vmem>>, vector<16x2xf32>
    %cst_91 = arith.constant dense<0.000000e+00> : vector<256x2xf32>
    %81 = tpu.matmul %79, %80, %cst_91 {dimension_numbers = #tpu.dot_dimension_numbers<[1], [0], [0], [1], [0, 0, 1, 1], [], []>} : vector<256x16xf32>, vector<16x2xf32>, vector<256x2xf32> -> vector<256x2xf32>
    %c0_92 = arith.constant 0 : index
    %c0_93 = arith.constant 0 : index
    %82 = vector.load %arg11[%c0_92, %c0_93] : memref<1x2xf32, #tpu.memory_space<vmem>>, vector<1x2xf32>
    %83 = vector.broadcast %82 : vector<1x2xf32> to vector<256x2xf32>
    %84 = arith.addf %81, %83 : vector<256x2xf32>
    %cst_94 = arith.constant 0.000000e+00 : f32
    %85 = vector.broadcast %cst_94 : f32 to vector<256x2xf32>
    %86 = arith.maximumf %84, %85 : vector<256x2xf32>
    %c0_95 = arith.constant 0 : index
    %c0_96 = arith.constant 0 : index
    %87 = vector.load %arg12[%c0_95, %c0_96] : memref<1x2xf32, #tpu.memory_space<vmem>>, vector<1x2xf32>
    %88 = vector.broadcast %87 : vector<1x2xf32> to vector<256x2xf32>
    %89 = arith.mulf %86, %88 : vector<256x2xf32>
    %cst_97 = arith.constant dense<0.000000e+00> : vector<256xf32>
    %90 = vector.multi_reduction <add>, %89, %cst_97 [1] : vector<256x2xf32> to vector<256xf32>
    %91 = vector.shape_cast %90 : vector<256xf32> to vector<256x1xf32>
    %c0_98 = arith.constant 0 : index
    %c0_99 = arith.constant 0 : index
    %92 = vector.load %arg13[%c0_98, %c0_99] : memref<1x1xf32, #tpu.memory_space<vmem>>, vector<1x1xf32>
    %93 = vector.broadcast %92 : vector<1x1xf32> to vector<256x1xf32>
    %94 = arith.addf %91, %93 : vector<256x1xf32>
    %95 = arith.negf %94 : vector<256x1xf32>
    %96 = math.exp %95 : vector<256x1xf32>
    %cst_100 = arith.constant 1.000000e+00 : f32
    %97 = vector.broadcast %cst_100 : f32 to vector<256x1xf32>
    %98 = arith.addf %97, %96 : vector<256x1xf32>
    %99 = arith.divf %97, %98 : vector<256x1xf32>
    %100 = vector.broadcast %99 : vector<256x1xf32> to vector<256x16xf32>
    %101 = arith.mulf %79, %100 : vector<256x16xf32>
    %102 = arith.addf %101, %4 : vector<256x16xf32>
    %103 = vector.shape_cast %102 : vector<256x16xf32> to vector<1x16x16x16xf32>
    %c0_101 = arith.constant 0 : index
    %c0_102 = arith.constant 0 : index
    %c0_103 = arith.constant 0 : index
    %c0_104 = arith.constant 0 : index
    %104 = vector.load %arg14[%c0_101, %c0_102, %c0_103, %c0_104] : memref<1x16x16x16xf32, #tpu.memory_space<vmem>>, vector<1x16x16x16xf32>
    tpu.vector_store %arg14[%c0_101, %c0_102, %c0_103, %c0_104], %103 {strides = array<i32>} : memref<1x16x16x16xf32, #tpu.memory_space<vmem>>, vector<1x16x16x16xf32>,
    return
  }
  func.func @transform_0(%arg0: i32) -> (i32, i32, i32, i32) {
    %c0_i32 = arith.constant 0 : i32
    %c0_i32_0 = arith.constant 0 : i32
    %c0_i32_1 = arith.constant 0 : i32
    %c0_i32_2 = arith.constant 0 : i32
    return %arg0, %c0_i32, %c0_i32_0, %c0_i32_1 : i32, i32, i32, i32
  }
  func.func @transform_1(%arg0: i32) -> (i32, i32) {
    %c0_i32 = arith.constant 0 : i32
    %c0_i32_0 = arith.constant 0 : i32
    %c0_i32_1 = arith.constant 0 : i32
    return %c0_i32, %c0_i32_0 : i32, i32
  }
  func.func @transform_2(%arg0: i32) -> (i32, i32) {
    %c0_i32 = arith.constant 0 : i32
    %c0_i32_0 = arith.constant 0 : i32
    %c0_i32_1 = arith.constant 0 : i32
    return %c0_i32, %c0_i32_0 : i32, i32
  }
  func.func @transform_3(%arg0: i32) -> (i32, i32) {
    %c0_i32 = arith.constant 0 : i32
    %c0_i32_0 = arith.constant 0 : i32
    %c0_i32_1 = arith.constant 0 : i32
    return %c0_i32, %c0_i32_0 : i32, i32
  }
  func.func @transform_4(%arg0: i32) -> (i32, i32) {
    %c0_i32 = arith.constant 0 : i32
    %c0_i32_0 = arith.constant 0 : i32
    %c0_i32_1 = arith.constant 0 : i32
    return %c0_i32, %c0_i32_0 : i32, i32
  }
  func.func @transform_5(%arg0: i32) -> (i32, i32) {
    %c0_i32 = arith.constant 0 : i32
    %c0_i32_0 = arith.constant 0 : i32
    %c0_i32_1 = arith.constant 0 : i32
    return %c0_i32, %c0_i32_0 : i32, i32
  }
  func.func @transform_6(%arg0: i32) -> (i32, i32) {
    %c0_i32 = arith.constant 0 : i32
    %c0_i32_0 = arith.constant 0 : i32
    %c0_i32_1 = arith.constant 0 : i32
    return %c0_i32, %c0_i32_0 : i32, i32
  }
  func.func @transform_7(%arg0: i32) -> (i32, i32) {
    %c0_i32 = arith.constant 0 : i32
    %c0_i32_0 = arith.constant 0 : i32
    %c0_i32_1 = arith.constant 0 : i32
    return %c0_i32, %c0_i32_0 : i32, i32
  }
  func.func @transform_8(%arg0: i32) -> (i32, i32) {
    %c0_i32 = arith.constant 0 : i32
    %c0_i32_0 = arith.constant 0 : i32
    %c0_i32_1 = arith.constant 0 : i32
    return %c0_i32, %c0_i32_0 : i32, i32
  }
  func.func @transform_9(%arg0: i32) -> (i32, i32) {
    %c0_i32 = arith.constant 0 : i32
    %c0_i32_0 = arith.constant 0 : i32
    %c0_i32_1 = arith.constant 0 : i32
    return %c0_i32, %c0_i32_0 : i32, i32
  }
  func.func @transform_10(%arg0: i32) -> (i32, i32) {
    %c0_i32 = arith.constant 0 : i32
    %c0_i32_0 = arith.constant 0 : i32
    %c0_i32_1 = arith.constant 0 : i32
    return %c0_i32, %c0_i32_0 : i32, i32
  }
  func.func @transform_11(%arg0: i32) -> (i32, i32) {
    %c0_i32 = arith.constant 0 : i32
    %c0_i32_0 = arith.constant 0 : i32
    %c0_i32_1 = arith.constant 0 : i32
    return %c0_i32, %c0_i32_0 : i32, i32
  }
  func.func @transform_12(%arg0: i32) -> (i32, i32) {
    %c0_i32 = arith.constant 0 : i32
    %c0_i32_0 = arith.constant 0 : i32
    %c0_i32_1 = arith.constant 0 : i32
    return %c0_i32, %c0_i32_0 : i32, i32
  }
  func.func @transform_13(%arg0: i32) -> (i32, i32, i32, i32) {
    %c0_i32 = arith.constant 0 : i32
    %c0_i32_0 = arith.constant 0 : i32
    %c0_i32_1 = arith.constant 0 : i32
    %c0_i32_2 = arith.constant 0 : i32
    return %arg0, %c0_i32, %c0_i32_0, %c0_i32_1 : i32, i32, i32, i32
  }
}

</mosaic_0001>

<llo_original>
// kernel: block_forward_nchw.1
$region0: #{block_forward_nchw.1}
  #allocation0 [shape = 'u32[]', space=smem, size = 0x4, offset = 0x4, fixed_abs, tag = 'smem constant byte address 0x4 - core index']
  #allocation1 [shape = 'u32[72,128]{1,0:T(1,128)}', space=vmem, size = 0x9000, scoped, tag = 'internal scratch']
  #allocation2 [shape = 'f32[18,18,16]{2,1,0:T(8,128)}', space=vmem, size = 0x36000, scoped, tag = 'scratch operand']
  #allocation3 [shape = 'f32[1,1]{1,0:T(1,128)S(1)}', space=vmem, size = 0x200, scoped, tag = 'scoped memory for block_forward_nchw.1']
  %s0 = inlined_call_operand.vmem [shape: f32[2,16,16,16], index: 0, kind: input, shape index: {}]
  %s1 = inlined_call_operand.vmem [shape: f32[144,16], index: 1, kind: input, shape index: {}]
  %s2 = inlined_call_operand.vmem [shape: f32[1,16], index: 2, kind: input, shape index: {}]
  %s3 = inlined_call_operand.vmem [shape: f32[144,16], index: 3, kind: input, shape index: {}]
  %s4 = inlined_call_operand.vmem [shape: f32[1,16], index: 4, kind: input, shape index: {}]
  %s5 = inlined_call_operand.vmem [shape: f32[16,2], index: 5, kind: input, shape index: {}]
  %s6 = inlined_call_operand.vmem [shape: f32[1,2], index: 6, kind: input, shape index: {}]
  %s7 = inlined_call_operand.vmem [shape: f32[2,16], index: 7, kind: input, shape index: {}]
  %s8 = inlined_call_operand.vmem [shape: f32[1,16], index: 8, kind: input, shape index: {}]
  %s9 = inlined_call_operand.vmem [shape: f32[16,2], index: 9, kind: input, shape index: {}]
  %s10 = inlined_call_operand.vmem [shape: f32[1,2], index: 10, kind: input, shape index: {}]
  %s11 = inlined_call_operand.vmem [shape: f32[1,2], index: 11, kind: input, shape index: {}]
  %s12 = inlined_call_operand.<no memory space> [shape: f32[1,1], index: 12, kind: input, shape index: {}]
  %s13 = inlined_call_operand.vmem [shape: f32[2,16,16,16], index: 13, kind: output, shape index: {}]
  %s14 = sld [smem:[#allocation0]]
  $region85: #{block_forward_nchw.1} parent=0
    _
  %s16 = ssub.s32 1, %s14
  %s17 = scalar_select 0, %s16, %s14
  %v18 = vstv %s12
  %19 = vst [vmem:[#allocation3] sm:$0x1] %v18
  loop: start=0, step=1, limit=4
  $region2: #{block_forward_nchw.1} parent=0 // loop_pre_header
    _
  $region3: #{block_forward_nchw.1} parent=0 // loop_header
    %s21 = sphi 0, %s25
    %p22 = scmp.ge.s32.totalorder %s21, 4
    %s31 = sphi 0, %s33
    %s34 = sphi 0, %s31
    %s35 = sphi 0, %s34
    %s51 = sphi 0, %s35
    %s55 = sphi 0, %s55
    %s57 = sphi 0, %s55
    %s58 = sphi 0, %s57
    %s72 = sphi 0, %s58
    %s76 = sphi 0, %s76
    %s78 = sphi 0, %s76
    %s79 = sphi 0, %s78
    %s93 = sphi 0, %s79
    %s97 = sphi 0, %s97
    %s99 = sphi 0, %s97
    %s100 = sphi 0, %s99
    %s114 = sphi 0, %s100
    %s118 = sphi 0, %s118
    %s120 = sphi 0, %s118
    %s121 = sphi 0, %s120
    %s135 = sphi 0, %s121
    %s139 = sphi 0, %s139
    %s141 = sphi 0, %s139
    %s142 = sphi 0, %s141
    %s156 = sphi 0, %s142
    %s160 = sphi 0, %s160
    %s162 = sphi 0, %s160
    %s163 = sphi 0, %s162
    %s177 = sphi 0, %s163
    %s181 = sphi 0, %s181
    %s183 = sphi 0, %s181
    %s184 = sphi 0, %s183
    %s198 = sphi 0, %s184
    %s202 = sphi 0, %s202
    %s204 = sphi 0, %s202
    %s205 = sphi 0, %s204
    %s219 = sphi 0, %s205
    %s223 = sphi 0, %s223
    %s225 = sphi 0, %s223
    %s226 = sphi 0, %s225
    %s240 = sphi 0, %s226
    %s244 = sphi 0, %s244
    %s246 = sphi 0, %s244
    %s247 = sphi 0, %s246
    %s261 = sphi 0, %s247
    %s265 = sphi 0, %s265
    %s267 = sphi 0, %s265
    %s268 = sphi 0, %s267
    %s282 = sphi 0, %s268
    %s286 = sphi 0, %s286
    %s288 = sphi 0, %s286
    %s289 = sphi 0, %s288
    %s303 = sphi 0, %s289
    %s309 = sphi 0, %s311
    %s312 = sphi 0, %s309
    %s313 = sphi 0, %s312
    %s329 = sphi 0, %s313
  $region4: #{block_forward_nchw.1} parent=0 // loop_header_branch
    %24 = sbr.rel (%p22) target = $region8
  $region5: #{block_forward_nchw.1} parent=0 // loop_body
    %s26 = ssub.s32 %s21, 1
    %s27 = ssub.s32 %s21, 2
    %s28 = sadd.s32 %s21, 1
    %s29 = ssub.s32 %s21, %s28
    %p30 = scmp.eq.s32.totalorder %s29, 0
    %s32 = sadd.s32 %s31, 1
    %s33 = scalar_select %p30, %s31, %s32
    %p36 = pneg %p30
    %p37 = scmp.eq.s32.totalorder %s21, 1
    %p38 = por %p36, %p37
    %p39 = scmp.ne.s32.totalorder %s31, %s34
    %p40 = scmp.eq.s32.totalorder %s21, 0
    %p41 = por %p39, %p40
    %p42 = scmp.ne.s32.totalorder %s31, %s34
    %p43 = scmp.eq.s32.totalorder %s26, 1
    %p44 = por %p42, %p43
    %p45 = scmp.ne.s32.totalorder %s34, %s35
    %p46 = scmp.eq.s32.totalorder %s26, 0
    %p47 = por %p45, %p46
    %p48 = scmp.ne.s32.totalorder %s34, %s35
    %p49 = scmp.eq.s32.totalorder %s27, 1
    %p50 = por %p48, %p49
    %p52 = scmp.ne.s32.totalorder %s35, %s51
    %p53 = scmp.eq.s32.totalorder %s27, 0
    %p54 = por %p52, %p53
    %s56 = sadd.s32 %s55, 1
    %p59 = scmp.eq.s32.totalorder %s21, 1
    %p60 = scmp.ne.s32.totalorder %s55, %s57
    %p61 = scmp.eq.s32.totalorder %s21, 0
    %p62 = por %p60, %p61
    %p63 = scmp.ne.s32.totalorder %s55, %s57
    %p64 = scmp.eq.s32.totalorder %s26, 1
    %p65 = por %p63, %p64
    %p66 = scmp.ne.s32.totalorder %s57, %s58
    %p67 = scmp.eq.s32.totalorder %s26, 0
    %p68 = por %p66, %p67
    %p69 = scmp.ne.s32.totalorder %s57, %s58
    %p70 = scmp.eq.s32.totalorder %s27, 1
    %p71 = por %p69, %p70
    %p73 = scmp.ne.s32.totalorder %s58, %s72
    %p74 = scmp.eq.s32.totalorder %s27, 0
    %p75 = por %p73, %p74
    %s77 = sadd.s32 %s76, 1
    %p80 = scmp.eq.s32.totalorder %s21, 1
    %p81 = scmp.ne.s32.totalorder %s76, %s78
    %p82 = scmp.eq.s32.totalorder %s21, 0
    %p83 = por %p81, %p82
    %p84 = scmp.ne.s32.totalorder %s76, %s78
    %p85 = scmp.eq.s32.totalorder %s26, 1
    %p86 = por %p84, %p85
    %p87 = scmp.ne.s32.totalorder %s78, %s79
    %p88 = scmp.eq.s32.totalorder %s26, 0
    %p89 = por %p87, %p88
    %p90 = scmp.ne.s32.totalorder %s78, %s79
    %p91 = scmp.eq.s32.totalorder %s27, 1
    %p92 = por %p90, %p91
    %p94 = scmp.ne.s32.totalorder %s79, %s93
    %p95 = scmp.eq.s32.totalorder %s27, 0
    %p96 = por %p94, %p95
    %s98 = sadd.s32 %s97, 1
    %p101 = scmp.eq.s32.totalorder %s21, 1
    %p102 = scmp.ne.s32.totalorder %s97, %s99
    %p103 = scmp.eq.s32.totalorder %s21, 0
    %p104 = por %p102, %p103
    %p105 = scmp.ne.s32.totalorder %s97, %s99
    %p106 = scmp.eq.s32.totalorder %s26, 1
    %p107 = por %p105, %p106
    %p108 = scmp.ne.s32.totalorder %s99, %s100
    %p109 = scmp.eq.s32.totalorder %s26, 0
    %p110 = por %p108, %p109
    %p111 = scmp.ne.s32.totalorder %s99, %s100
    %p112 = scmp.eq.s32.totalorder %s27, 1
    %p113 = por %p111, %p112
    %p115 = scmp.ne.s32.totalorder %s100, %s114
    %p116 = scmp.eq.s32.totalorder %s27, 0
    %p117 = por %p115, %p116
    %s119 = sadd.s32 %s118, 1
    %p122 = scmp.eq.s32.totalorder %s21, 1
    %p123 = scmp.ne.s32.totalorder %s118, %s120
    %p124 = scmp.eq.s32.totalorder %s21, 0
    %p125 = por %p123, %p124
    %p126 = scmp.ne.s32.totalorder %s118, %s120
    %p127 = scmp.eq.s32.totalorder %s26, 1
    %p128 = por %p126, %p127
    %p129 = scmp.ne.s32.totalorder %s120, %s121
    %p130 = scmp.eq.s32.totalorder %s26, 0
    %p131 = por %p129, %p130
    %p132 = scmp.ne.s32.totalorder %s120, %s121
    %p133 = scmp.eq.s32.totalorder %s27, 1
    %p134 = por %p132, %p133
    %p136 = scmp.ne.s32.totalorder %s121, %s135
    %p137 = scmp.eq.s32.totalorder %s27, 0
    %p138 = por %p136, %p137
    %s140 = sadd.s32 %s139, 1
    %p143 = scmp.eq.s32.totalorder %s21, 1
    %p144 = scmp.ne.s32.totalorder %s139, %s141
    %p145 = scmp.eq.s32.totalorder %s21, 0
    %p146 = por %p144, %p145
    %p147 = scmp.ne.s32.totalorder %s139, %s141
    %p148 = scmp.eq.s32.totalorder %s26, 1
    %p149 = por %p147, %p148
    %p150 = scmp.ne.s32.totalorder %s141, %s142
    %p151 = scmp.eq.s32.totalorder %s26, 0
    %p152 = por %p150, %p151
    %p153 = scmp.ne.s32.totalorder %s141, %s142
    %p154 = scmp.eq.s32.totalorder %s27, 1
    %p155 = por %p153, %p154
    %p157 = scmp.ne.s32.totalorder %s142, %s156
    %p158 = scmp.eq.s32.totalorder %s27, 0
    %p159 = por %p157, %p158
    %s161 = sadd.s32 %s160, 1
    %p164 = scmp.eq.s32.totalorder %s21, 1
    %p165 = scmp.ne.s32.totalorder %s160, %s162
    %p166 = scmp.eq.s32.totalorder %s21, 0
    %p167 = por %p165, %p166
    %p168 = scmp.ne.s32.totalorder %s160, %s162
    %p169 = scmp.eq.s32.totalorder %s26, 1
    %p170 = por %p168, %p169
    %p171 = scmp.ne.s32.totalorder %s162, %s163
    %p172 = scmp.eq.s32.totalorder %s26, 0
    %p173 = por %p171, %p172
    %p174 = scmp.ne.s32.totalorder %s162, %s163
    %p175 = scmp.eq.s32.totalorder %s27, 1
    %p176 = por %p174, %p175
    %p178 = scmp.ne.s32.totalorder %s163, %s177
    %p179 = scmp.eq.s32.totalorder %s27, 0
    %p180 = por %p178, %p179
    %s182 = sadd.s32 %s181, 1
    %p185 = scmp.eq.s32.totalorder %s21, 1
    %p186 = scmp.ne.s32.totalorder %s181, %s183
    %p187 = scmp.eq.s32.totalorder %s21, 0
    %p188 = por %p186, %p187
    %p189 = scmp.ne.s32.totalorder %s181, %s183
    %p190 = scmp.eq.s32.totalorder %s26, 1
    %p191 = por %p189, %p190
    %p192 = scmp.ne.s32.totalorder %s183, %s184
    %p193 = scmp.eq.s32.totalorder %s26, 0
    %p194 = por %p192, %p193
    %p195 = scmp.ne.s32.totalorder %s183, %s184
    %p196 = scmp.eq.s32.totalorder %s27, 1
    %p197 = por %p195, %p196
    %p199 = scmp.ne.s32.totalorder %s184, %s198
    %p200 = scmp.eq.s32.totalorder %s27, 0
    %p201 = por %p199, %p200
    %s203 = sadd.s32 %s202, 1
    %p206 = scmp.eq.s32.totalorder %s21, 1
    %p207 = scmp.ne.s32.totalorder %s202, %s204
    %p208 = scmp.eq.s32.totalorder %s21, 0
    %p209 = por %p207, %p208
    %p210 = scmp.ne.s32.totalorder %s202, %s204
    %p211 = scmp.eq.s32.totalorder %s26, 1
    %p212 = por %p210, %p211
    %p213 = scmp.ne.s32.totalorder %s204, %s205
    %p214 = scmp.eq.s32.totalorder %s26, 0
    %p215 = por %p213, %p214
    %p216 = scmp.ne.s32.totalorder %s204, %s205
    %p217 = scmp.eq.s32.totalorder %s27, 1
    %p218 = por %p216, %p217
    %p220 = scmp.ne.s32.totalorder %s205, %s219
    %p221 = scmp.eq.s32.totalorder %s27, 0
    %p222 = por %p220, %p221
    %s224 = sadd.s32 %s223, 1
    %p227 = scmp.eq.s32.totalorder %s21, 1
    %p228 = scmp.ne.s32.totalorder %s223, %s225
    %p229 = scmp.eq.s32.totalorder %s21, 0
    %p230 = por %p228, %p229
    %p231 = scmp.ne.s32.totalorder %s223, %s225
    %p232 = scmp.eq.s32.totalorder %s26, 1
    %p233 = por %p231, %p232
    %p234 = scmp.ne.s32.totalorder %s225, %s226
    %p235 = scmp.eq.s32.totalorder %s26, 0
    %p236 = por %p234, %p235
    %p237 = scmp.ne.s32.totalorder %s225, %s226
    %p238 = scmp.eq.s32.totalorder %s27, 1
    %p239 = por %p237, %p238
    %p241 = scmp.ne.s32.totalorder %s226, %s240
    %p242 = scmp.eq.s32.totalorder %s27, 0
    %p243 = por %p241, %p242
    %s245 = sadd.s32 %s244, 1
    %p248 = scmp.eq.s32.totalorder %s21, 1
    %p249 = scmp.ne.s32.totalorder %s244, %s246
    %p250 = scmp.eq.s32.totalorder %s21, 0
    %p251 = por %p249, %p250
    %p252 = scmp.ne.s32.totalorder %s244, %s246
    %p253 = scmp.eq.s32.totalorder %s26, 1
    %p254 = por %p252, %p253
    %p255 = scmp.ne.s32.totalorder %s246, %s247
    %p256 = scmp.eq.s32.totalorder %s26, 0
    %p257 = por %p255, %p256
    %p258 = scmp.ne.s32.totalorder %s246, %s247
    %p259 = scmp.eq.s32.totalorder %s27, 1
    %p260 = por %p258, %p259
    %p262 = scmp.ne.s32.totalorder %s247, %s261
    %p263 = scmp.eq.s32.totalorder %s27, 0
    %p264 = por %p262, %p263
    %s266 = sadd.s32 %s265, 1
    %p269 = scmp.eq.s32.totalorder %s21, 1
    %p270 = scmp.ne.s32.totalorder %s265, %s267
    %p271 = scmp.eq.s32.totalorder %s21, 0
    %p272 = por %p270, %p271
    %p273 = scmp.ne.s32.totalorder %s265, %s267
    %p274 = scmp.eq.s32.totalorder %s26, 1
    %p275 = por %p273, %p274
    %p276 = scmp.ne.s32.totalorder %s267, %s268
    %p277 = scmp.eq.s32.totalorder %s26, 0
    %p278 = por %p276, %p277
    %p279 = scmp.ne.s32.totalorder %s267, %s268
    %p280 = scmp.eq.s32.totalorder %s27, 1
    %p281 = por %p279, %p280
    %p283 = scmp.ne.s32.totalorder %s268, %s282
    %p284 = scmp.eq.s32.totalorder %s27, 0
    %p285 = por %p283, %p284
    %s287 = sadd.s32 %s286, 1
    %p290 = scmp.eq.s32.totalorder %s21, 1
    %p291 = scmp.ne.s32.totalorder %s286, %s288
    %p292 = scmp.eq.s32.totalorder %s21, 0
    %p293 = por %p291, %p292
    %p294 = scmp.ne.s32.totalorder %s286, %s288
    %p295 = scmp.eq.s32.totalorder %s26, 1
    %p296 = por %p294, %p295
    %p297 = scmp.ne.s32.totalorder %s288, %s289
    %p298 = scmp.eq.s32.totalorder %s26, 0
    %p299 = por %p297, %p298
    %p300 = scmp.ne.s32.totalorder %s288, %s289
    %p301 = scmp.eq.s32.totalorder %s27, 1
    %p302 = por %p300, %p301
    %p304 = scmp.ne.s32.totalorder %s289, %s303
    %p305 = scmp.eq.s32.totalorder %s27, 0
    %p306 = por %p304, %p305
    %s307 = ssub.s32 %s21, %s28
    %p308 = scmp.eq.s32.totalorder %s307, 0
    %s310 = sadd.s32 %s309, 1
    %s311 = scalar_select %p308, %s309, %s310
    %p314 = pneg %p308
    %p315 = scmp.eq.s32.totalorder %s21, 1
    %p316 = por %p314, %p315
    %p317 = scmp.ne.s32.totalorder %s309, %s312
    %p318 = scmp.eq.s32.totalorder %s21, 0
    %p319 = por %p317, %p318
    %p320 = scmp.ne.s32.totalorder %s309, %s312
    %p321 = scmp.eq.s32.totalorder %s26, 1
    %p322 = por %p320, %p321
    %p323 = scmp.ne.s32.totalorder %s312, %s313
    %p324 = scmp.eq.s32.totalorder %s26, 0
    %p325 = por %p323, %p324
    %p326 = scmp.ne.s32.totalorder %s312, %s313
    %p327 = scmp.eq.s32.totalorder %s27, 1
    %p328 = por %p326, %p327
    %p330 = scmp.ne.s32.totalorder %s313, %s329
    %p331 = scmp.eq.s32.totalorder %s27, 0
    %p332 = por %p330, %p331
    %p333 = scmp.le.s32.totalorder 1, %s21
    %p334 = scmp.lt.s32.totalorder %s21, 3
    %p335 = pnand %p333, %p334
    %p336 = pneg %p335
    // Predicated region
    $region9: #{block_forward_nchw.1} parent=5 // pred_check
      _
    $region10: #{block_forward_nchw.1} parent=5 // pred_check_branch
      %338 = sbr.rel (%p335) target = $region12
    $region11: #{block_forward_nchw.1} parent=5 // pred_region
      %s339 = ssub.s32 %s21, 1
      // Predicated region
      $region13: #{block_forward_nchw.1} parent=11 // pred_check
        %p340 = pneg %p68
      $region14: #{block_forward_nchw.1} parent=11 // pred_check_branch
        %342 = sbr.rel (%p340) target = $region16
      $region15: #{block_forward_nchw.1} parent=11 // pred_region
        _
      $region16: #{block_forward_nchw.1} parent=11 // pred_fallthru
        _
      // Predicated region
      $region17: #{block_forward_nchw.1} parent=11 // pred_check
        %p343 = pneg %p89
      $region18: #{block_forward_nchw.1} parent=11 // pred_check_branch
        %345 = sbr.rel (%p343) target = $region20
      $region19: #{block_forward_nchw.1} parent=11 // pred_region
        _
      $region20: #{block_forward_nchw.1} parent=11 // pred_fallthru
        _
      // Predicated region
      $region21: #{block_forward_nchw.1} parent=11 // pred_check
        %p346 = pneg %p110
      $region22: #{block_forward_nchw.1} parent=11 // pred_check_branch
        %348 = sbr.rel (%p346) target = $region24
      $region23: #{block_forward_nchw.1} parent=11 // pred_region
        _
      $region24: #{block_forward_nchw.1} parent=11 // pred_fallthru
        _
      // Predicated region
      $region25: #{block_forward_nchw.1} parent=11 // pred_check
        %p349 = pneg %p131
      $region26: #{block_forward_nchw.1} parent=11 // pred_check_branch
        %351 = sbr.rel (%p349) target = $region28
      $region27: #{block_forward_nchw.1} parent=11 // pred_region
        _
      $region28: #{block_forward_nchw.1} parent=11 // pred_fallthru
        _
      // Predicated region
      $region29: #{block_forward_nchw.1} parent=11 // pred_check
        %p352 = pneg %p152
      $region30: #{block_forward_nchw.1} parent=11 // pred_check_branch
        %354 = sbr.rel (%p352) target = $region32
      $region31: #{block_forward_nchw.1} parent=11 // pred_region
        _
      $region32: #{block_forward_nchw.1} parent=11 // pred_fallthru
        _
      // Predicated region
      $region33: #{block_forward_nchw.1} parent=11 // pred_check
        %p355 = pneg %p173
      $region34: #{block_forward_nchw.1} parent=11 // pred_check_branch
        %357 = sbr.rel (%p355) target = $region36
      $region35: #{block_forward_nchw.1} parent=11 // pred_region
        _
      $region36: #{block_forward_nchw.1} parent=11 // pred_fallthru
        _
      // Predicated region
      $region37: #{block_forward_nchw.1} parent=11 // pred_check
        %p358 = pneg %p194
      $region38: #{block_forward_nchw.1} parent=11 // pred_check_branch
        %360 = sbr.rel (%p358) target = $region40
      $region39: #{block_forward_nchw.1} parent=11 // pred_region
        _
      $region40: #{block_forward_nchw.1} parent=11 // pred_fallthru
        _
      // Predicated region
      $region41: #{block_forward_nchw.1} parent=11 // pred_check
        %p361 = pneg %p215
      $region42: #{block_forward_nchw.1} parent=11 // pred_check_branch
        %363 = sbr.rel (%p361) target = $region44
      $region43: #{block_forward_nchw.1} parent=11 // pred_region
        _
      $region44: #{block_forward_nchw.1} parent=11 // pred_fallthru
        _
      // Predicated region
      $region45: #{block_forward_nchw.1} parent=11 // pred_check
        %p364 = pneg %p236
      $region46: #{block_forward_nchw.1} parent=11 // pred_check_branch
        %366 = sbr.rel (%p364) target = $region48
      $region47: #{block_forward_nchw.1} parent=11 // pred_region
        _
      $region48: #{block_forward_nchw.1} parent=11 // pred_fallthru
        _
      // Predicated region
      $region49: #{block_forward_nchw.1} parent=11 // pred_check
        %p367 = pneg %p257
      $region50: #{block_forward_nchw.1} parent=11 // pred_check_branch
        %369 = sbr.rel (%p367) target = $region52
      $region51: #{block_forward_nchw.1} parent=11 // pred_region
        _
      $region52: #{block_forward_nchw.1} parent=11 // pred_fallthru
        _
      // Predicated region
      $region53: #{block_forward_nchw.1} parent=11 // pred_check
        %p370 = pneg %p278
      $region54: #{block_forward_nchw.1} parent=11 // pred_check_branch
        %372 = sbr.rel (%p370) target = $region56
      $region55: #{block_forward_nchw.1} parent=11 // pred_region
        _
      $region56: #{block_forward_nchw.1} parent=11 // pred_fallthru
        _
      // Predicated region
      $region57: #{block_forward_nchw.1} parent=11 // pred_check
        %p373 = pneg %p299
      $region58: #{block_forward_nchw.1} parent=11 // pred_check_branch
        %375 = sbr.rel (%p373) target = $region60
      $region59: #{block_forward_nchw.1} parent=11 // pred_region
        _
      $region60: #{block_forward_nchw.1} parent=11 // pred_fallthru
        _
    $region12: #{block_forward_nchw.1} parent=5 // pred_fallthru
      _
    %p376 = scmp.lt.s32.totalorder %s21, 2
    // Predicated region
    $region61: #{block_forward_nchw.1} parent=5 // pred_check
      %p377 = pneg %p376
    $region62: #{block_forward_nchw.1} parent=5 // pred_check_branch
      %379 = sbr.rel (%p377) target = $region64
    $region63: #{block_forward_nchw.1} parent=5 // pred_region
      // Predicated region
      $region65: #{block_forward_nchw.1} parent=63 // pred_check
        %p380 = pneg %p41
      $region66: #{block_forward_nchw.1} parent=63 // pred_check_branch
        %382 = sbr.rel (%p380) target = $region68
      $region67: #{block_forward_nchw.1} parent=63 // pred_region
        %p383 = scmp.lt.s32.totalorder %s21, 1
        %s384 = scalar_select %p383, %s21, 1
        %s385 = smul.addr %s384, 32
        %s386 = smul.addr %s385, 8
        %s387 = scalar_lea.vmem %s0, %s386
      $region68: #{block_forward_nchw.1} parent=63 // pred_fallthru
        _
    $region64: #{block_forward_nchw.1} parent=5 // pred_fallthru
      _
    %p388 = scmp.le.s32.totalorder 1, %s21
    %p389 = scmp.lt.s32.totalorder %s21, 3
    %p390 = pnand %p388, %p389
    %p391 = pneg %p390
    // Predicated region
    $region69: #{block_forward_nchw.1} parent=5 // pred_check
      _
    $region70: #{block_forward_nchw.1} parent=5 // pred_check_branch
      %393 = sbr.rel (%p390) target = $region72
    $region71: #{block_forward_nchw.1} parent=5 // pred_region
      %s394 = ssub.s32 %s21, 1
      %p395 = scmp.lt.s32.totalorder %s26, 1
      %s396 = scalar_select %p395, %s26, 1
      %s397 = smul.addr %s396, 32
      %s398 = smul.addr %s397, 8
      %s399 = scalar_lea.vmem %s0, %s398
      %p400 = pneg %p47
      %p401 = pneg %p44
      %p402 = pneg %p68
      %p403 = pneg %p65
      %p404 = pneg %p89
      %p405 = pneg %p86
      %p406 = pneg %p110
      %p407 = pneg %p107
      %p408 = pneg %p131
      %p409 = pneg %p128
      %p410 = pneg %p152
      %p411 = pneg %p149
      %p412 = pneg %p173
      %p413 = pneg %p170
      %p414 = pneg %p194
      %p415 = pneg %p191
      %p416 = pneg %p215
      %p417 = pneg %p212
      %p418 = pneg %p236
      %p419 = pneg %p233
      %p420 = pneg %p257
      %p421 = pneg %p254
      %p422 = pneg %p278
      %p423 = pneg %p275
      %p424 = pneg %p299
      %p425 = pneg %p296
      %p426 = pneg %p325
      %p427 = pneg %p322
      %p428 = scmp.lt.s32.totalorder %s26, 1
      %s429 = scalar_select %p428, %s26, 1
      %s430 = smul.addr %s429, 32
      %s431 = smul.addr %s430, 8
      %s432 = scalar_lea.vmem %s13, %s431
      %p433 = scmp.lt.s32.totalorder %s26, 1
      %s434 = scalar_select %p433, %s26, 1
      %s435 = smul.addr %s434, 32
      %s436 = smul.addr %s435, 8
      %s437 = scalar_lea.vmem %s0, %s436
      %p438 = scmp.lt.s32.totalorder %s26, 1
      %s439 = scalar_select %p438, %s26, 1
      %s440 = smul.addr %s439, 32
      %s441 = smul.addr %s440, 8
      %s442 = scalar_lea.vmem %s13, %s441
      %vm443 = vcmask 130048
      %444 = vst.msk [vmem:[#allocation2] sm:$0xff] %vm443, 0.0
      %445 = vst.msk [vmem:[#allocation2 + $0x8] sm:$0xff] %vm443, 0.0
      %vm446 = vcmask 123904
      %447 = vst.msk [vmem:[#allocation2 + $0x10] sm:$0x3] %vm446, 0.0
      %448 = vst.msk [vmem:[#allocation2 + $0x18] sm:$0xff] %vm443, 0.0
      %449 = vst.msk [vmem:[#allocation2 + $0x20] sm:$0xff] %vm443, 0.0
      %450 = vst.msk [vmem:[#allocation2 + $0x28] sm:$0x3] %vm446, 0.0
      %451 = vst.msk [vmem:[#allocation2 + $0x30] sm:$0xff] %vm443, 0.0
      %452 = vst.msk [vmem:[#allocation2 + $0x38] sm:$0xff] %vm443, 0.0
      %453 = vst.msk [vmem:[#allocation2 + $0x40] sm:$0x3] %vm446, 0.0
      %454 = vst.msk [vmem:[#allocation2 + $0x48] sm:$0xff] %vm443, 0.0
      %455 = vst.msk [vmem:[#allocation2 + $0x50] sm:$0xff] %vm443, 0.0
      %456 = vst.msk [vmem:[#allocation2 + $0x58] sm:$0x3] %vm446, 0.0
      %457 = vst.msk [vmem:[#allocation2 + $0x60] sm:$0xff] %vm443, 0.0
      %458 = vst.msk [vmem:[#allocation2 + $0x68] sm:$0xff] %vm443, 0.0
      %459 = vst.msk [vmem:[#allocation2 + $0x70] sm:$0x3] %vm446, 0.0
      %460 = vst.msk [vmem:[#allocation2 + $0x78] sm:$0xff] %vm443, 0.0
      %461 = vst.msk [vmem:[#allocation2 + $0x80] sm:$0xff] %vm443, 0.0
      %462 = vst.msk [vmem:[#allocation2 + $0x88] sm:$0x3] %vm446, 0.0
      %463 = vst.msk [vmem:[#allocation2 + $0x90] sm:$0xff] %vm443, 0.0
      %464 = vst.msk [vmem:[#allocation2 + $0x98] sm:$0xff] %vm443, 0.0
      %465 = vst.msk [vmem:[#allocation2 + $0xa0] sm:$0x3] %vm446, 0.0
      %466 = vst.msk [vmem:[#allocation2 + $0xa8] sm:$0xff] %vm443, 0.0
      %467 = vst.msk [vmem:[#allocation2 + $0xb0] sm:$0xff] %vm443, 0.0
      %468 = vst.msk [vmem:[#allocation2 + $0xb8] sm:$0x3] %vm446, 0.0
      %469 = vst.msk [vmem:[#allocation2 + $0xc0] sm:$0xff] %vm443, 0.0
      %470 = vst.msk [vmem:[#allocation2 + $0xc8] sm:$0xff] %vm443, 0.0
      %471 = vst.msk [vmem:[#allocation2 + $0xd0] sm:$0x3] %vm446, 0.0
      %472 = vst.msk [vmem:[#allocation2 + $0xd8] sm:$0xff] %vm443, 0.0
      %473 = vst.msk [vmem:[#allocation2 + $0xe0] sm:$0xff] %vm443, 0.0
      %474 = vst.msk [vmem:[#allocation2 + $0xe8] sm:$0x3] %vm446, 0.0
      %475 = vst.msk [vmem:[#allocation2 + $0xf0] sm:$0xff] %vm443, 0.0
      %476 = vst.msk [vmem:[#allocation2 + $0xf8] sm:$0xff] %vm443, 0.0
      %477 = vst.msk [vmem:[#allocation2 + $0x100] sm:$0x3] %vm446, 0.0
      %478 = vst.msk [vmem:[#allocation2 + $0x108] sm:$0xff] %vm443, 0.0
      %479 = vst.msk [vmem:[#allocation2 + $0x110] sm:$0xff] %vm443, 0.0
      %480 = vst.msk [vmem:[#allocation2 + $0x118] sm:$0x3] %vm446, 0.0
      %481 = vst.msk [vmem:[#allocation2 + $0x120] sm:$0xff] %vm443, 0.0
      %482 = vst.msk [vmem:[#allocation2 + $0x128] sm:$0xff] %vm443, 0.0
      %483 = vst.msk [vmem:[#allocation2 + $0x130] sm:$0x3] %vm446, 0.0
      %484 = vst.msk [vmem:[#allocation2 + $0x138] sm:$0xff] %vm443, 0.0
      %485 = vst.msk [vmem:[#allocation2 + $0x140] sm:$0xff] %vm443, 0.0
      %486 = vst.msk [vmem:[#allocation2 + $0x148] sm:$0x3] %vm446, 0.0
      %487 = vst.msk [vmem:[#allocation2 + $0x150] sm:$0xff] %vm443, 0.0
      %488 = vst.msk [vmem:[#allocation2 + $0x158] sm:$0xff] %vm443, 0.0
      %489 = vst.msk [vmem:[#allocation2 + $0x160] sm:$0x3] %vm446, 0.0
      %490 = vst.msk [vmem:[#allocation2 + $0x168] sm:$0xff] %vm443, 0.0
      %491 = vst.msk [vmem:[#allocation2 + $0x170] sm:$0xff] %vm443, 0.0
      %492 = vst.msk [vmem:[#allocation2 + $0x178] sm:$0x3] %vm446, 0.0
      %493 = vst.msk [vmem:[#allocation2 + $0x180] sm:$0xff] %vm443, 0.0
      %494 = vst.msk [vmem:[#allocation2 + $0x188] sm:$0xff] %vm443, 0.0
      %495 = vst.msk [vmem:[#allocation2 + $0x190] sm:$0x3] %vm446, 0.0
      %496 = vst.msk [vmem:[#allocation2 + $0x198] sm:$0xff] %vm443, 0.0
      %497 = vst.msk [vmem:[#allocation2 + $0x1a0] sm:$0xff] %vm443, 0.0
      %498 = vst.msk [vmem:[#allocation2 + $0x1a8] sm:$0x3] %vm446, 0.0
      %v499 = vld [vmem:[%s437] sm:$0xff]
      %v500 = vld [vmem:[%s437 + $0x8] sm:$0xff]
      %v501 = vld [vmem:[%s437 + $0x10] sm:$0xff]
      %v502 = vld [vmem:[%s437 + $0x18] sm:$0xff]
      %v503 = vld [vmem:[%s437 + $0x20] sm:$0xff]
      %v504 = vld [vmem:[%s437 + $0x28] sm:$0xff]
      %v505 = vld [vmem:[%s437 + $0x30] sm:$0xff]
      %v506 = vld [vmem:[%s437 + $0x38] sm:$0xff]
      %v507 = vld [vmem:[%s437 + $0x40] sm:$0xff]
      %v508 = vld [vmem:[%s437 + $0x48] sm:$0xff]
      %v509 = vld [vmem:[%s437 + $0x50] sm:$0xff]
      %v510 = vld [vmem:[%s437 + $0x58] sm:$0xff]
      %v511 = vld [vmem:[%s437 + $0x60] sm:$0xff]
      %v512 = vld [vmem:[%s437 + $0x68] sm:$0xff]
      %v513 = vld [vmem:[%s437 + $0x70] sm:$0xff]
      %v514 = vld [vmem:[%s437 + $0x78] sm:$0xff]
      %v515 = vld [vmem:[%s437 + $0x80] sm:$0xff]
      %v516 = vld [vmem:[%s437 + $0x88] sm:$0xff]
      %v517 = vld [vmem:[%s437 + $0x90] sm:$0xff]
      %v518 = vld [vmem:[%s437 + $0x98] sm:$0xff]
      %v519 = vld [vmem:[%s437 + $0xa0] sm:$0xff]
      %v520 = vld [vmem:[%s437 + $0xa8] sm:$0xff]
      %v521 = vld [vmem:[%s437 + $0xb0] sm:$0xff]
      %v522 = vld [vmem:[%s437 + $0xb8] sm:$0xff]
      %v523 = vld [vmem:[%s437 + $0xc0] sm:$0xff]
      %v524 = vld [vmem:[%s437 + $0xc8] sm:$0xff]
      %v525 = vld [vmem:[%s437 + $0xd0] sm:$0xff]
      %v526 = vld [vmem:[%s437 + $0xd8] sm:$0xff]
      %v527 = vld [vmem:[%s437 + $0xe0] sm:$0xff]
      %v528 = vld [vmem:[%s437 + $0xe8] sm:$0xff]
      %v529 = vld [vmem:[%s437 + $0xf0] sm:$0xff]
      %v530 = vld [vmem:[%s437 + $0xf8] sm:$0xff]
      %s531 = scalar_lea.vmem [#allocation2], 24
      %532 = vst.msk [vmem:[%s531 + $0x1] sm:$0xff] %vm443, %v499
      %533 = vst.msk [vmem:[%s531 + $0x9] sm:$0xff] %vm443, %v500
      %534 = vst.msk [vmem:[%s531 + $0x19] sm:$0xff] %vm443, %v501
      %535 = vst.msk [vmem:[%s531 + $0x21] sm:$0xff] %vm443, %v502
      %536 = vst.msk [vmem:[%s531 + $0x31] sm:$0xff] %vm443, %v503
      %537 = vst.msk [vmem:[%s531 + $0x39] sm:$0xff] %vm443, %v504
      %538 = vst.msk [vmem:[%s531 + $0x49] sm:$0xff] %vm443, %v505
      %539 = vst.msk [vmem:[%s531 + $0x51] sm:$0xff] %vm443, %v506
      %540 = vst.msk [vmem:[%s531 + $0x61] sm:$0xff] %vm443, %v507
      %541 = vst.msk [vmem:[%s531 + $0x69] sm:$0xff] %vm443, %v508
      %542 = vst.msk [vmem:[%s531 + $0x79] sm:$0xff] %vm443, %v509
      %543 = vst.msk [vmem:[%s531 + $0x81] sm:$0xff] %vm443, %v510
      %544 = vst.msk [vmem:[%s531 + $0x91] sm:$0xff] %vm443, %v511
      %545 = vst.msk [vmem:[%s531 + $0x99] sm:$0xff] %vm443, %v512
      %546 = vst.msk [vmem:[%s531 + $0xa9] sm:$0xff] %vm443, %v513
      %547 = vst.msk [vmem:[%s531 + $0xb1] sm:$0xff] %vm443, %v514
      %548 = vst.msk [vmem:[%s531 + $0xc1] sm:$0xff] %vm443, %v515
      %549 = vst.msk [vmem:[%s531 + $0xc9] sm:$0xff] %vm443, %v516
      %550 = vst.msk [vmem:[%s531 + $0xd9] sm:$0xff] %vm443, %v517
      %551 = vst.msk [vmem:[%s531 + $0xe1] sm:$0xff] %vm443, %v518
      %552 = vst.msk [vmem:[%s531 + $0xf1] sm:$0xff] %vm443, %v519
      %553 = vst.msk [vmem:[%s531 + $0xf9] sm:$0xff] %vm443, %v520
      %554 = vst.msk [vmem:[%s531 + $0x109] sm:$0xff] %vm443, %v521
      %555 = vst.msk [vmem:[%s531 + $0x111] sm:$0xff] %vm443, %v522
      %556 = vst.msk [vmem:[%s531 + $0x121] sm:$0xff] %vm443, %v523
      %557 = vst.msk [vmem:[%s531 + $0x129] sm:$0xff] %vm443, %v524
      %558 = vst.msk [vmem:[%s531 + $0x139] sm:$0xff] %vm443, %v525
      %559 = vst.msk [vmem:[%s531 + $0x141] sm:$0xff] %vm443, %v526
      %560 = vst.msk [vmem:[%s531 + $0x151] sm:$0xff] %vm443, %v527
      %561 = vst.msk [vmem:[%s531 + $0x159] sm:$0xff] %vm443, %v528
      %562 = vst.msk [vmem:[%s531 + $0x169] sm:$0xff] %vm443, %v529
      %563 = vst.msk [vmem:[%s531 + $0x171] sm:$0xff] %vm443, %v530
      %v564 = vld [vmem:[#allocation2] sm:$0xff]
      %v565 = vld [vmem:[#allocation2 + $0x8] sm:$0xff]
      %v566 = vld [vmem:[#allocation2 + $0x18] sm:$0xff]
      %v567 = vld [vmem:[#allocation2 + $0x20] sm:$0xff]
      %v568 = vld [vmem:[#allocation2 + $0x30] sm:$0xff]
      %v569 = vld [vmem:[#allocation2 + $0x38] sm:$0xff]
      %v570 = vld [vmem:[#allocation2 + $0x48] sm:$0xff]
      %v571 = vld [vmem:[#allocation2 + $0x50] sm:$0xff]
      %v572 = vld [vmem:[#allocation2 + $0x60] sm:$0xff]
      %v573 = vld [vmem:[#allocation2 + $0x68] sm:$0xff]
      %v574 = vld [vmem:[#allocation2 + $0x78] sm:$0xff]
      %v575 = vld [vmem:[#allocation2 + $0x80] sm:$0xff]
      %v576 = vld [vmem:[#allocation2 + $0x90] sm:$0xff]
      %v577 = vld [vmem:[#allocation2 + $0x98] sm:$0xff]
      %v578 = vld [vmem:[#allocation2 + $0xa8] sm:$0xff]
      %v579 = vld [vmem:[#allocation2 + $0xb0] sm:$0xff]
      %v580 = vld [vmem:[#allocation2 + $0xc0] sm:$0xff]
      %v581 = vld [vmem:[#allocation2 + $0xc8] sm:$0xff]
      %v582 = vld [vmem:[#allocation2 + $0xd8] sm:$0xff]
      %v583 = vld [vmem:[#allocation2 + $0xe0] sm:$0xff]
      %v584 = vld [vmem:[#allocation2 + $0xf0] sm:$0xff]
      %v585 = vld [vmem:[#allocation2 + $0xf8] sm:$0xff]
      %v586 = vld [vmem:[#allocation2 + $0x108] sm:$0xff]
      %v587 = vld [vmem:[#allocation2 + $0x110] sm:$0xff]
      %v588 = vld [vmem:[#allocation2 + $0x120] sm:$0xff]
      %v589 = vld [vmem:[#allocation2 + $0x128] sm:$0xff]
      %v590 = vld [vmem:[#allocation2 + $0x138] sm:$0xff]
      %v591 = vld [vmem:[#allocation2 + $0x140] sm:$0xff]
      %v592 = vld [vmem:[#allocation2 + $0x150] sm:$0xff]
      %v593 = vld [vmem:[#allocation2 + $0x158] sm:$0xff]
      %v594 = vld [vmem:[#allocation2 + $0x168] sm:$0xff]
      %v595 = vld [vmem:[#allocation2 + $0x170] sm:$0xff]
      %v596 = vld [vmem:[#allocation2 + $0x1] sm:$0xff]
      %v597 = vld [vmem:[#allocation2 + $0x9] sm:$0xff]
      %v598 = vld [vmem:[#allocation2 + $0x19] sm:$0xff]
      %v599 = vld [vmem:[#allocation2 + $0x21] sm:$0xff]
      %v600 = vld [vmem:[#allocation2 + $0x31] sm:$0xff]
      %v601 = vld [vmem:[#allocation2 + $0x39] sm:$0xff]
      %v602 = vld [vmem:[#allocation2 + $0x49] sm:$0xff]
      %v603 = vld [vmem:[#allocation2 + $0x51] sm:$0xff]
      %v604 = vld [vmem:[#allocation2 + $0x61] sm:$0xff]
      %v605 = vld [vmem:[#allocation2 + $0x69] sm:$0xff]
      %v606 = vld [vmem:[#allocation2 + $0x79] sm:$0xff]
      %v607 = vld [vmem:[#allocation2 + $0x81] sm:$0xff]
      %v608 = vld [vmem:[#allocation2 + $0x91] sm:$0xff]
      %v609 = vld [vmem:[#allocation2 + $0x99] sm:$0xff]
      %v610 = vld [vmem:[#allocation2 + $0xa9] sm:$0xff]
      %v611 = vld [vmem:[#allocation2 + $0xb1] sm:$0xff]
      %v612 = vld [vmem:[#allocation2 + $0xc1] sm:$0xff]
      %v613 = vld [vmem:[#allocation2 + $0xc9] sm:$0xff]
      %v614 = vld [vmem:[#allocation2 + $0xd9] sm:$0xff]
      %v615 = vld [vmem:[#allocation2 + $0xe1] sm:$0xff]
      %v616 = vld [vmem:[#allocation2 + $0xf1] sm:$0xff]
      %v617 = vld [vmem:[#allocation2 + $0xf9] sm:$0xff]
      %v618 = vld [vmem:[#allocation2 + $0x109] sm:$0xff]
      %v619 = vld [vmem:[#allocation2 + $0x111] sm:$0xff]
      %v620 = vld [vmem:[#allocation2 + $0x121] sm:$0xff]
      %v621 = vld [vmem:[#allocation2 + $0x129] sm:$0xff]
      %v622 = vld [vmem:[#allocation2 + $0x139] sm:$0xff]
      %v623 = vld [vmem:[#allocation2 + $0x141] sm:$0xff]
      %v624 = vld [vmem:[#allocation2 + $0x151] sm:$0xff]
      %v625 = vld [vmem:[#allocation2 + $0x159] sm:$0xff]
      %v626 = vld [vmem:[#allocation2 + $0x169] sm:$0xff]
      %v627 = vld [vmem:[#allocation2 + $0x171] sm:$0xff]
      %v628 = vld [vmem:[#allocation2 + $0x2] sm:$0xff]
      %v629 = vld [vmem:[#allocation2 + $0xa] sm:$0xff]
      %v630 = vld [vmem:[#allocation2 + $0x1a] sm:$0xff]
      %v631 = vld [vmem:[#allocation2 + $0x22] sm:$0xff]
      %v632 = vld [vmem:[#allocation2 + $0x32] sm:$0xff]
      %v633 = vld [vmem:[#allocation2 + $0x3a] sm:$0xff]
      %v634 = vld [vmem:[#allocation2 + $0x4a] sm:$0xff]
      %v635 = vld [vmem:[#allocation2 + $0x52] sm:$0xff]
      %v636 = vld [vmem:[#allocation2 + $0x62] sm:$0xff]
      %v637 = vld [vmem:[#allocation2 + $0x6a] sm:$0xff]
      %v638 = vld [vmem:[#allocation2 + $0x7a] sm:$0xff]
      %v639 = vld [vmem:[#allocation2 + $0x82] sm:$0xff]
      %v640 = vld [vmem:[#allocation2 + $0x92] sm:$0xff]
      %v641 = vld [vmem:[#allocation2 + $0x9a] sm:$0xff]
      %v642 = vld [vmem:[#allocation2 + $0xaa] sm:$0xff]
      %v643 = vld [vmem:[#allocation2 + $0xb2] sm:$0xff]
      %v644 = vld [vmem:[#allocation2 + $0xc2] sm:$0xff]
      %v645 = vld [vmem:[#allocation2 + $0xca] sm:$0xff]
      %v646 = vld [vmem:[#allocation2 + $0xda] sm:$0xff]
      %v647 = vld [vmem:[#allocation2 + $0xe2] sm:$0xff]
      %v648 = vld [vmem:[#allocation2 + $0xf2] sm:$0xff]
      %v649 = vld [vmem:[#allocation2 + $0xfa] sm:$0xff]
      %v650 = vld [vmem:[#allocation2 + $0x10a] sm:$0xff]
      %v651 = vld [vmem:[#allocation2 + $0x112] sm:$0xff]
      %v652 = vld [vmem:[#allocation2 + $0x122] sm:$0xff]
      %v653 = vld [vmem:[#allocation2 + $0x12a] sm:$0xff]
      %v654 = vld [vmem:[#allocation2 + $0x13a] sm:$0xff]
      %v655 = vld [vmem:[#allocation2 + $0x142] sm:$0xff]
      %v656 = vld [vmem:[#allocation2 + $0x152] sm:$0xff]
      %v657 = vld [vmem:[#allocation2 + $0x15a] sm:$0xff]
      %v658 = vld [vmem:[#allocation2 + $0x16a] sm:$0xff]
      %v659 = vld [vmem:[#allocation2 + $0x172] sm:$0xff]
      %v660 = vld [vmem:[%s531] sm:$0xff]
      %v661 = vld [vmem:[%s531 + $0x8] sm:$0xff]
      %v662 = vld [vmem:[%s531 + $0x18] sm:$0xff]
      %v663 = vld [vmem:[%s531 + $0x20] sm:$0xff]
      %v664 = vld [vmem:[%s531 + $0x30] sm:$0xff]
      %v665 = vld [vmem:[%s531 + $0x38] sm:$0xff]
      %v666 = vld [vmem:[%s531 + $0x48] sm:$0xff]
      %v667 = vld [vmem:[%s531 + $0x50] sm:$0xff]
      %v668 = vld [vmem:[%s531 + $0x60] sm:$0xff]
      %v669 = vld [vmem:[%s531 + $0x68] sm:$0xff]
      %v670 = vld [vmem:[%s531 + $0x78] sm:$0xff]
      %v671 = vld [vmem:[%s531 + $0x80] sm:$0xff]
      %v672 = vld [vmem:[%s531 + $0x90] sm:$0xff]
      %v673 = vld [vmem:[%s531 + $0x98] sm:$0xff]
      %v674 = vld [vmem:[%s531 + $0xa8] sm:$0xff]
      %v675 = vld [vmem:[%s531 + $0xb0] sm:$0xff]
      %v676 = vld [vmem:[%s531 + $0xc0] sm:$0xff]
      %v677 = vld [vmem:[%s531 + $0xc8] sm:$0xff]
      %v678 = vld [vmem:[%s531 + $0xd8] sm:$0xff]
      %v679 = vld [vmem:[%s531 + $0xe0] sm:$0xff]
      %v680 = vld [vmem:[%s531 + $0xf0] sm:$0xff]
      %v681 = vld [vmem:[%s531 + $0xf8] sm:$0xff]
      %v682 = vld [vmem:[%s531 + $0x108] sm:$0xff]
      %v683 = vld [vmem:[%s531 + $0x110] sm:$0xff]
      %v684 = vld [vmem:[%s531 + $0x120] sm:$0xff]
      %v685 = vld [vmem:[%s531 + $0x128] sm:$0xff]
      %v686 = vld [vmem:[%s531 + $0x138] sm:$0xff]
      %v687 = vld [vmem:[%s531 + $0x140] sm:$0xff]
      %v688 = vld [vmem:[%s531 + $0x150] sm:$0xff]
      %v689 = vld [vmem:[%s531 + $0x158] sm:$0xff]
      %v690 = vld [vmem:[%s531 + $0x168] sm:$0xff]
      %v691 = vld [vmem:[%s531 + $0x170] sm:$0xff]
      %v692 = vld [vmem:[%s531 + $0x1] sm:$0xff]
      %v693 = vld [vmem:[%s531 + $0x9] sm:$0xff]
      %v694 = vld [vmem:[%s531 + $0x19] sm:$0xff]
      %v695 = vld [vmem:[%s531 + $0x21] sm:$0xff]
      %v696 = vld [vmem:[%s531 + $0x31] sm:$0xff]
      %v697 = vld [vmem:[%s531 + $0x39] sm:$0xff]
      %v698 = vld [vmem:[%s531 + $0x49] sm:$0xff]
      %v699 = vld [vmem:[%s531 + $0x51] sm:$0xff]
      %v700 = vld [vmem:[%s531 + $0x61] sm:$0xff]
      %v701 = vld [vmem:[%s531 + $0x69] sm:$0xff]
      %v702 = vld [vmem:[%s531 + $0x79] sm:$0xff]
      %v703 = vld [vmem:[%s531 + $0x81] sm:$0xff]
      %v704 = vld [vmem:[%s531 + $0x91] sm:$0xff]
      %v705 = vld [vmem:[%s531 + $0x99] sm:$0xff]
      %v706 = vld [vmem:[%s531 + $0xa9] sm:$0xff]
      %v707 = vld [vmem:[%s531 + $0xb1] sm:$0xff]
      %v708 = vld [vmem:[%s531 + $0xc1] sm:$0xff]
      %v709 = vld [vmem:[%s531 + $0xc9] sm:$0xff]
      %v710 = vld [vmem:[%s531 + $0xd9] sm:$0xff]
      %v711 = vld [vmem:[%s531 + $0xe1] sm:$0xff]
      %v712 = vld [vmem:[%s531 + $0xf1] sm:$0xff]
      %v713 = vld [vmem:[%s531 + $0xf9] sm:$0xff]
      %v714 = vld [vmem:[%s531 + $0x109] sm:$0xff]
      %v715 = vld [vmem:[%s531 + $0x111] sm:$0xff]
      %v716 = vld [vmem:[%s531 + $0x121] sm:$0xff]
      %v717 = vld [vmem:[%s531 + $0x129] sm:$0xff]
      %v718 = vld [vmem:[%s531 + $0x139] sm:$0xff]
      %v719 = vld [vmem:[%s531 + $0x141] sm:$0xff]
      %v720 = vld [vmem:[%s531 + $0x151] sm:$0xff]
      %v721 = vld [vmem:[%s531 + $0x159] sm:$0xff]
      %v722 = vld [vmem:[%s531 + $0x169] sm:$0xff]
      %v723 = vld [vmem:[%s531 + $0x171] sm:$0xff]
      %v724 = vld [vmem:[%s531 + $0x2] sm:$0xff]
      %v725 = vld [vmem:[%s531 + $0xa] sm:$0xff]
      %v726 = vld [vmem:[%s531 + $0x1a] sm:$0xff]
      %v727 = vld [vmem:[%s531 + $0x22] sm:$0xff]
      %v728 = vld [vmem:[%s531 + $0x32] sm:$0xff]
      %v729 = vld [vmem:[%s531 + $0x3a] sm:$0xff]
      %v730 = vld [vmem:[%s531 + $0x4a] sm:$0xff]
      %v731 = vld [vmem:[%s531 + $0x52] sm:$0xff]
      %v732 = vld [vmem:[%s531 + $0x62] sm:$0xff]
      %v733 = vld [vmem:[%s531 + $0x6a] sm:$0xff]
      %v734 = vld [vmem:[%s531 + $0x7a] sm:$0xff]
      %v735 = vld [vmem:[%s531 + $0x82] sm:$0xff]
      %v736 = vld [vmem:[%s531 + $0x92] sm:$0xff]
      %v737 = vld [vmem:[%s531 + $0x9a] sm:$0xff]
      %v738 = vld [vmem:[%s531 + $0xaa] sm:$0xff]
      %v739 = vld [vmem:[%s531 + $0xb2] sm:$0xff]
      %v740 = vld [vmem:[%s531 + $0xc2] sm:$0xff]
      %v741 = vld [vmem:[%s531 + $0xca] sm:$0xff]
      %v742 = vld [vmem:[%s531 + $0xda] sm:$0xff]
      %v743 = vld [vmem:[%s531 + $0xe2] sm:$0xff]
      %v744 = vld [vmem:[%s531 + $0xf2] sm:$0xff]
      %v745 = vld [vmem:[%s531 + $0xfa] sm:$0xff]
      %v746 = vld [vmem:[%s531 + $0x10a] sm:$0xff]
      %v747 = vld [vmem:[%s531 + $0x112] sm:$0xff]
      %v748 = vld [vmem:[%s531 + $0x122] sm:$0xff]
      %v749 = vld [vmem:[%s531 + $0x12a] sm:$0xff]
      %v750 = vld [vmem:[%s531 + $0x13a] sm:$0xff]
      %v751 = vld [vmem:[%s531 + $0x142] sm:$0xff]
      %v752 = vld [vmem:[%s531 + $0x152] sm:$0xff]
      %v753 = vld [vmem:[%s531 + $0x15a] sm:$0xff]
      %v754 = vld [vmem:[%s531 + $0x16a] sm:$0xff]
      %v755 = vld [vmem:[%s531 + $0x172] sm:$0xff]
      %s756 = scalar_lea.vmem [#allocation2], 48
      %v757 = vld [vmem:[%s756] sm:$0xff]
      %v758 = vld [vmem:[%s756 + $0x8] sm:$0xff]
      %v759 = vld [vmem:[%s756 + $0x18] sm:$0xff]
      %v760 = vld [vmem:[%s756 + $0x20] sm:$0xff]
      %v761 = vld [vmem:[%s756 + $0x30] sm:$0xff]
      %v762 = vld [vmem:[%s756 + $0x38] sm:$0xff]
      %v763 = vld [vmem:[%s756 + $0x48] sm:$0xff]
      %v764 = vld [vmem:[%s756 + $0x50] sm:$0xff]
      %v765 = vld [vmem:[%s756 + $0x60] sm:$0xff]
      %v766 = vld [vmem:[%s756 + $0x68] sm:$0xff]
      %v767 = vld [vmem:[%s756 + $0x78] sm:$0xff]
      %v768 = vld [vmem:[%s756 + $0x80] sm:$0xff]
      %v769 = vld [vmem:[%s756 + $0x90] sm:$0xff]
      %v770 = vld [vmem:[%s756 + $0x98] sm:$0xff]
      %v771 = vld [vmem:[%s756 + $0xa8] sm:$0xff]
      %v772 = vld [vmem:[%s756 + $0xb0] sm:$0xff]
      %v773 = vld [vmem:[%s756 + $0xc0] sm:$0xff]
      %v774 = vld [vmem:[%s756 + $0xc8] sm:$0xff]
      %v775 = vld [vmem:[%s756 + $0xd8] sm:$0xff]
      %v776 = vld [vmem:[%s756 + $0xe0] sm:$0xff]
      %v777 = vld [vmem:[%s756 + $0xf0] sm:$0xff]
      %v778 = vld [vmem:[%s756 + $0xf8] sm:$0xff]
      %v779 = vld [vmem:[%s756 + $0x108] sm:$0xff]
      %v780 = vld [vmem:[%s756 + $0x110] sm:$0xff]
      %v781 = vld [vmem:[%s756 + $0x120] sm:$0xff]
      %v782 = vld [vmem:[%s756 + $0x128] sm:$0xff]
      %v783 = vld [vmem:[%s756 + $0x138] sm:$0xff]
      %v784 = vld [vmem:[%s756 + $0x140] sm:$0xff]
      %v785 = vld [vmem:[%s756 + $0x150] sm:$0xff]
      %v786 = vld [vmem:[%s756 + $0x158] sm:$0xff]
      %v787 = vld [vmem:[%s756 + $0x168] sm:$0xff]
      %v788 = vld [vmem:[%s756 + $0x170] sm:$0xff]
      %v789 = vld [vmem:[%s756 + $0x1] sm:$0xff]
      %v790 = vld [vmem:[%s756 + $0x9] sm:$0xff]
      %v791 = vld [vmem:[%s756 + $0x19] sm:$0xff]
      %v792 = vld [vmem:[%s756 + $0x21] sm:$0xff]
      %v793 = vld [vmem:[%s756 + $0x31] sm:$0xff]
      %v794 = vld [vmem:[%s756 + $0x39] sm:$0xff]
      %v795 = vld [vmem:[%s756 + $0x49] sm:$0xff]
      %v796 = vld [vmem:[%s756 + $0x51] sm:$0xff]
      %v797 = vld [vmem:[%s756 + $0x61] sm:$0xff]
      %v798 = vld [vmem:[%s756 + $0x69] sm:$0xff]
      %v799 = vld [vmem:[%s756 + $0x79] sm:$0xff]
      %v800 = vld [vmem:[%s756 + $0x81] sm:$0xff]
      %v801 = vld [vmem:[%s756 + $0x91] sm:$0xff]
      %v802 = vld [vmem:[%s756 + $0x99] sm:$0xff]
      %v803 = vld [vmem:[%s756 + $0xa9] sm:$0xff]
      %v804 = vld [vmem:[%s756 + $0xb1] sm:$0xff]
      %v805 = vld [vmem:[%s756 + $0xc1] sm:$0xff]
      %v806 = vld [vmem:[%s756 + $0xc9] sm:$0xff]
      %v807 = vld [vmem:[%s756 + $0xd9] sm:$0xff]
      %v808 = vld [vmem:[%s756 + $0xe1] sm:$0xff]
      %v809 = vld [vmem:[%s756 + $0xf1] sm:$0xff]
      %v810 = vld [vmem:[%s756 + $0xf9] sm:$0xff]
      %v811 = vld [vmem:[%s756 + $0x109] sm:$0xff]
      %v812 = vld [vmem:[%s756 + $0x111] sm:$0xff]
      %v813 = vld [vmem:[%s756 + $0x121] sm:$0xff]
      %v814 = vld [vmem:[%s756 + $0x129] sm:$0xff]
      %v815 = vld [vmem:[%s756 + $0x139] sm:$0xff]
      %v816 = vld [vmem:[%s756 + $0x141] sm:$0xff]
      %v817 = vld [vmem:[%s756 + $0x151] sm:$0xff]
      %v818 = vld [vmem:[%s756 + $0x159] sm:$0xff]
      %v819 = vld [vmem:[%s756 + $0x169] sm:$0xff]
      %v820 = vld [vmem:[%s756 + $0x171] sm:$0xff]
      %v821 = vld [vmem:[%s756 + $0x2] sm:$0xff]
      %v822 = vld [vmem:[%s756 + $0xa] sm:$0xff]
      %v823 = vld [vmem:[%s756 + $0x1a] sm:$0xff]
      %v824 = vld [vmem:[%s756 + $0x22] sm:$0xff]
      %v825 = vld [vmem:[%s756 + $0x32] sm:$0xff]
      %v826 = vld [vmem:[%s756 + $0x3a] sm:$0xff]
      %v827 = vld [vmem:[%s756 + $0x4a] sm:$0xff]
      %v828 = vld [vmem:[%s756 + $0x52] sm:$0xff]
      %v829 = vld [vmem:[%s756 + $0x62] sm:$0xff]
      %v830 = vld [vmem:[%s756 + $0x6a] sm:$0xff]
      %v831 = vld [vmem:[%s756 + $0x7a] sm:$0xff]
      %v832 = vld [vmem:[%s756 + $0x82] sm:$0xff]
      %v833 = vld [vmem:[%s756 + $0x92] sm:$0xff]
      %v834 = vld [vmem:[%s756 + $0x9a] sm:$0xff]
      %v835 = vld [vmem:[%s756 + $0xaa] sm:$0xff]
      %v836 = vld [vmem:[%s756 + $0xb2] sm:$0xff]
      %v837 = vld [vmem:[%s756 + $0xc2] sm:$0xff]
      %v838 = vld [vmem:[%s756 + $0xca] sm:$0xff]
      %v839 = vld [vmem:[%s756 + $0xda] sm:$0xff]
      %v840 = vld [vmem:[%s756 + $0xe2] sm:$0xff]
      %v841 = vld [vmem:[%s756 + $0xf2] sm:$0xff]
      %v842 = vld [vmem:[%s756 + $0xfa] sm:$0xff]
      %v843 = vld [vmem:[%s756 + $0x10a] sm:$0xff]
      %v844 = vld [vmem:[%s756 + $0x112] sm:$0xff]
      %v845 = vld [vmem:[%s756 + $0x122] sm:$0xff]
      %v846 = vld [vmem:[%s756 + $0x12a] sm:$0xff]
      %v847 = vld [vmem:[%s756 + $0x13a] sm:$0xff]
      %v848 = vld [vmem:[%s756 + $0x142] sm:$0xff]
      %v849 = vld [vmem:[%s756 + $0x152] sm:$0xff]
      %v850 = vld [vmem:[%s756 + $0x15a] sm:$0xff]
      %v851 = vld [vmem:[%s756 + $0x16a] sm:$0xff]
      %v852 = vld [vmem:[%s756 + $0x172] sm:$0xff]
      %885 = vrot.lane.b32.xlu0 %v596, 16
      %v886 = vpop.permute.xlu0 %885
      %887 = vrot.lane.b32.xlu0 %v597, 16
      %v888 = vpop.permute.xlu0 %887
      %889 = vrot.lane.b32.xlu0 %v598, 16
      %v890 = vpop.permute.xlu0 %889
      %891 = vrot.lane.b32.xlu0 %v599, 16
      %v892 = vpop.permute.xlu0 %891
      %893 = vrot.lane.b32.xlu0 %v600, 16
      %v894 = vpop.permute.xlu0 %893
      %895 = vrot.lane.b32.xlu0 %v601, 16
      %v896 = vpop.permute.xlu0 %895
      %897 = vrot.lane.b32.xlu0 %v602, 16
      %v898 = vpop.permute.xlu0 %897
      %899 = vrot.lane.b32.xlu0 %v603, 16
      %v900 = vpop.permute.xlu0 %899
      %901 = vrot.lane.b32.xlu0 %v604, 16
      %v902 = vpop.permute.xlu0 %901
      %903 = vrot.lane.b32.xlu0 %v605, 16
      %v904 = vpop.permute.xlu0 %903
      %905 = vrot.lane.b32.xlu0 %v606, 16
      %v906 = vpop.permute.xlu0 %905
      %907 = vrot.lane.b32.xlu0 %v607, 16
      %v908 = vpop.permute.xlu0 %907
      %909 = vrot.lane.b32.xlu0 %v608, 16
      %v910 = vpop.permute.xlu0 %909
      %911 = vrot.lane.b32.xlu0 %v609, 16
      %v912 = vpop.permute.xlu0 %911
      %913 = vrot.lane.b32.xlu0 %v610, 16
      %v914 = vpop.permute.xlu0 %913
      %915 = vrot.lane.b32.xlu0 %v611, 16
      %v916 = vpop.permute.xlu0 %915
      %917 = vrot.lane.b32.xlu0 %v612, 16
      %v918 = vpop.permute.xlu0 %917
      %919 = vrot.lane.b32.xlu0 %v613, 16
      %v920 = vpop.permute.xlu0 %919
      %921 = vrot.lane.b32.xlu0 %v614, 16
      %v922 = vpop.permute.xlu0 %921
      %923 = vrot.lane.b32.xlu0 %v615, 16
      %v924 = vpop.permute.xlu0 %923
      %925 = vrot.lane.b32.xlu0 %v616, 16
      %v926 = vpop.permute.xlu0 %925
      %927 = vrot.lane.b32.xlu0 %v617, 16
      %v928 = vpop.permute.xlu0 %927
      %929 = vrot.lane.b32.xlu0 %v618, 16
      %v930 = vpop.permute.xlu0 %929
      %931 = vrot.lane.b32.xlu0 %v619, 16
      %v932 = vpop.permute.xlu0 %931
      %933 = vrot.lane.b32.xlu0 %v620, 16
      %v934 = vpop.permute.xlu0 %933
      %935 = vrot.lane.b32.xlu0 %v621, 16
      %v936 = vpop.permute.xlu0 %935
      %937 = vrot.lane.b32.xlu0 %v622, 16
      %v938 = vpop.permute.xlu0 %937
      %939 = vrot.lane.b32.xlu0 %v623, 16
      %v940 = vpop.permute.xlu0 %939
      %941 = vrot.lane.b32.xlu0 %v624, 16
      %v942 = vpop.permute.xlu0 %941
      %943 = vrot.lane.b32.xlu0 %v625, 16
      %v944 = vpop.permute.xlu0 %943
      %945 = vrot.lane.b32.xlu0 %v626, 16
      %v946 = vpop.permute.xlu0 %945
      %947 = vrot.lane.b32.xlu0 %v627, 16
      %v948 = vpop.permute.xlu0 %947
      %1013 = vrot.lane.b32.xlu0 %v628, 32
      %v1014 = vpop.permute.xlu0 %1013
      %1015 = vrot.lane.b32.xlu0 %v629, 32
      %v1016 = vpop.permute.xlu0 %1015
      %1017 = vrot.lane.b32.xlu0 %v630, 32
      %v1018 = vpop.permute.xlu0 %1017
      %1019 = vrot.lane.b32.xlu0 %v631, 32
      %v1020 = vpop.permute.xlu0 %1019
      %1021 = vrot.lane.b32.xlu0 %v632, 32
      %v1022 = vpop.permute.xlu0 %1021
      %1023 = vrot.lane.b32.xlu0 %v633, 32
      %v1024 = vpop.permute.xlu0 %1023
      %1025 = vrot.lane.b32.xlu0 %v634, 32
      %v1026 = vpop.permute.xlu0 %1025
      %1027 = vrot.lane.b32.xlu0 %v635, 32
      %v1028 = vpop.permute.xlu0 %1027
      %1029 = vrot.lane.b32.xlu0 %v636, 32
      %v1030 = vpop.permute.xlu0 %1029
      %1031 = vrot.lane.b32.xlu0 %v637, 32
      %v1032 = vpop.permute.xlu0 %1031
      %1033 = vrot.lane.b32.xlu0 %v638, 32
      %v1034 = vpop.permute.xlu0 %1033
      %1035 = vrot.lane.b32.xlu0 %v639, 32
      %v1036 = vpop.permute.xlu0 %1035
      %1037 = vrot.lane.b32.xlu0 %v640, 32
      %v1038 = vpop.permute.xlu0 %1037
      %1039 = vrot.lane.b32.xlu0 %v641, 32
      %v1040 = vpop.permute.xlu0 %1039
      %1041 = vrot.lane.b32.xlu0 %v642, 32
      %v1042 = vpop.permute.xlu0 %1041
      %1043 = vrot.lane.b32.xlu0 %v643, 32
      %v1044 = vpop.permute.xlu0 %1043
      %1045 = vrot.lane.b32.xlu0 %v644, 32
      %v1046 = vpop.permute.xlu0 %1045
      %1047 = vrot.lane.b32.xlu0 %v645, 32
      %v1048 = vpop.permute.xlu0 %1047
      %1049 = vrot.lane.b32.xlu0 %v646, 32
      %v1050 = vpop.permute.xlu0 %1049
      %1051 = vrot.lane.b32.xlu0 %v647, 32
      %v1052 = vpop.permute.xlu0 %1051
      %1053 = vrot.lane.b32.xlu0 %v648, 32
      %v1054 = vpop.permute.xlu0 %1053
      %1055 = vrot.lane.b32.xlu0 %v649, 32
      %v1056 = vpop.permute.xlu0 %1055
      %1057 = vrot.lane.b32.xlu0 %v650, 32
      %v1058 = vpop.permute.xlu0 %1057
      %1059 = vrot.lane.b32.xlu0 %v651, 32
      %v1060 = vpop.permute.xlu0 %1059
      %1061 = vrot.lane.b32.xlu0 %v652, 32
      %v1062 = vpop.permute.xlu0 %1061
      %1063 = vrot.lane.b32.xlu0 %v653, 32
      %v1064 = vpop.permute.xlu0 %1063
      %1065 = vrot.lane.b32.xlu0 %v654, 32
      %v1066 = vpop.permute.xlu0 %1065
      %1067 = vrot.lane.b32.xlu0 %v655, 32
      %v1068 = vpop.permute.xlu0 %1067
      %1069 = vrot.lane.b32.xlu0 %v656, 32
      %v1070 = vpop.permute.xlu0 %1069
      %1071 = vrot.lane.b32.xlu0 %v657, 32
      %v1072 = vpop.permute.xlu0 %1071
      %1073 = vrot.lane.b32.xlu0 %v658, 32
      %v1074 = vpop.permute.xlu0 %1073
      %1075 = vrot.lane.b32.xlu0 %v659, 32
      %v1076 = vpop.permute.xlu0 %1075
      %1141 = vrot.lane.b32.xlu0 %v660, 48
      %v1142 = vpop.permute.xlu0 %1141
      %1143 = vrot.lane.b32.xlu0 %v661, 48
      %v1144 = vpop.permute.xlu0 %1143
      %1145 = vrot.lane.b32.xlu0 %v662, 48
      %v1146 = vpop.permute.xlu0 %1145
      %1147 = vrot.lane.b32.xlu0 %v663, 48
      %v1148 = vpop.permute.xlu0 %1147
      %1149 = vrot.lane.b32.xlu0 %v664, 48
      %v1150 = vpop.permute.xlu0 %1149
      %1151 = vrot.lane.b32.xlu0 %v665, 48
      %v1152 = vpop.permute.xlu0 %1151
      %1153 = vrot.lane.b32.xlu0 %v666, 48
      %v1154 = vpop.permute.xlu0 %1153
      %1155 = vrot.lane.b32.xlu0 %v667, 48
      %v1156 = vpop.permute.xlu0 %1155
      %1157 = vrot.lane.b32.xlu0 %v668, 48
      %v1158 = vpop.permute.xlu0 %1157
      %1159 = vrot.lane.b32.xlu0 %v669, 48
      %v1160 = vpop.permute.xlu0 %1159
      %1161 = vrot.lane.b32.xlu0 %v670, 48
      %v1162 = vpop.permute.xlu0 %1161
      %1163 = vrot.lane.b32.xlu0 %v671, 48
      %v1164 = vpop.permute.xlu0 %1163
      %1165 = vrot.lane.b32.xlu0 %v672, 48
      %v1166 = vpop.permute.xlu0 %1165
      %1167 = vrot.lane.b32.xlu0 %v673, 48
      %v1168 = vpop.permute.xlu0 %1167
      %1169 = vrot.lane.b32.xlu0 %v674, 48
      %v1170 = vpop.permute.xlu0 %1169
      %1171 = vrot.lane.b32.xlu0 %v675, 48
      %v1172 = vpop.permute.xlu0 %1171
      %1173 = vrot.lane.b32.xlu0 %v676, 48
      %v1174 = vpop.permute.xlu0 %1173
      %1175 = vrot.lane.b32.xlu0 %v677, 48
      %v1176 = vpop.permute.xlu0 %1175
      %1177 = vrot.lane.b32.xlu0 %v678, 48
      %v1178 = vpop.permute.xlu0 %1177
      %1179 = vrot.lane.b32.xlu0 %v679, 48
      %v1180 = vpop.permute.xlu0 %1179
      %1181 = vrot.lane.b32.xlu0 %v680, 48
      %v1182 = vpop.permute.xlu0 %1181
      %1183 = vrot.lane.b32.xlu0 %v681, 48
      %v1184 = vpop.permute.xlu0 %1183
      %1185 = vrot.lane.b32.xlu0 %v682, 48
      %v1186 = vpop.permute.xlu0 %1185
      %1187 = vrot.lane.b32.xlu0 %v683, 48
      %v1188 = vpop.permute.xlu0 %1187
      %1189 = vrot.lane.b32.xlu0 %v684, 48
      %v1190 = vpop.permute.xlu0 %1189
      %1191 = vrot.lane.b32.xlu0 %v685, 48
      %v1192 = vpop.permute.xlu0 %1191
      %1193 = vrot.lane.b32.xlu0 %v686, 48
      %v1194 = vpop.permute.xlu0 %1193
      %1195 = vrot.lane.b32.xlu0 %v687, 48
      %v1196 = vpop.permute.xlu0 %1195
      %1197 = vrot.lane.b32.xlu0 %v688, 48
      %v1198 = vpop.permute.xlu0 %1197
      %1199 = vrot.lane.b32.xlu0 %v689, 48
      %v1200 = vpop.permute.xlu0 %1199
      %1201 = vrot.lane.b32.xlu0 %v690, 48
      %v1202 = vpop.permute.xlu0 %1201
      %1203 = vrot.lane.b32.xlu0 %v691, 48
      %v1204 = vpop.permute.xlu0 %1203
      %1269 = vrot.lane.b32.xlu0 %v692, 64
      %v1270 = vpop.permute.xlu0 %1269
      %1271 = vrot.lane.b32.xlu0 %v693, 64
      %v1272 = vpop.permute.xlu0 %1271
      %1273 = vrot.lane.b32.xlu0 %v694, 64
      %v1274 = vpop.permute.xlu0 %1273
      %1275 = vrot.lane.b32.xlu0 %v695, 64
      %v1276 = vpop.permute.xlu0 %1275
      %1277 = vrot.lane.b32.xlu0 %v696, 64
      %v1278 = vpop.permute.xlu0 %1277
      %1279 = vrot.lane.b32.xlu0 %v697, 64
      %v1280 = vpop.permute.xlu0 %1279
      %1281 = vrot.lane.b32.xlu0 %v698, 64
      %v1282 = vpop.permute.xlu0 %1281
      %1283 = vrot.lane.b32.xlu0 %v699, 64
      %v1284 = vpop.permute.xlu0 %1283
      %1285 = vrot.lane.b32.xlu0 %v700, 64
      %v1286 = vpop.permute.xlu0 %1285
      %1287 = vrot.lane.b32.xlu0 %v701, 64
      %v1288 = vpop.permute.xlu0 %1287
      %1289 = vrot.lane.b32.xlu0 %v702, 64
      %v1290 = vpop.permute.xlu0 %1289
      %1291 = vrot.lane.b32.xlu0 %v703, 64
      %v1292 = vpop.permute.xlu0 %1291
      %1293 = vrot.lane.b32.xlu0 %v704, 64
      %v1294 = vpop.permute.xlu0 %1293
      %1295 = vrot.lane.b32.xlu0 %v705, 64
      %v1296 = vpop.permute.xlu0 %1295
      %1297 = vrot.lane.b32.xlu0 %v706, 64
      %v1298 = vpop.permute.xlu0 %1297
      %1299 = vrot.lane.b32.xlu0 %v707, 64
      %v1300 = vpop.permute.xlu0 %1299
      %1301 = vrot.lane.b32.xlu0 %v708, 64
      %v1302 = vpop.permute.xlu0 %1301
      %1303 = vrot.lane.b32.xlu0 %v709, 64
      %v1304 = vpop.permute.xlu0 %1303
      %1305 = vrot.lane.b32.xlu0 %v710, 64
      %v1306 = vpop.permute.xlu0 %1305
      %1307 = vrot.lane.b32.xlu0 %v711, 64
      %v1308 = vpop.permute.xlu0 %1307
      %1309 = vrot.lane.b32.xlu0 %v712, 64
      %v1310 = vpop.permute.xlu0 %1309
      %1311 = vrot.lane.b32.xlu0 %v713, 64
      %v1312 = vpop.permute.xlu0 %1311
      %1313 = vrot.lane.b32.xlu0 %v714, 64
      %v1314 = vpop.permute.xlu0 %1313
      %1315 = vrot.lane.b32.xlu0 %v715, 64
      %v1316 = vpop.permute.xlu0 %1315
      %1317 = vrot.lane.b32.xlu0 %v716, 64
      %v1318 = vpop.permute.xlu0 %1317
      %1319 = vrot.lane.b32.xlu0 %v717, 64
      %v1320 = vpop.permute.xlu0 %1319
      %1321 = vrot.lane.b32.xlu0 %v718, 64
      %v1322 = vpop.permute.xlu0 %1321
      %1323 = vrot.lane.b32.xlu0 %v719, 64
      %v1324 = vpop.permute.xlu0 %1323
      %1325 = vrot.lane.b32.xlu0 %v720, 64
      %v1326 = vpop.permute.xlu0 %1325
      %1327 = vrot.lane.b32.xlu0 %v721, 64
      %v1328 = vpop.permute.xlu0 %1327
      %1329 = vrot.lane.b32.xlu0 %v722, 64
      %v1330 = vpop.permute.xlu0 %1329
      %1331 = vrot.lane.b32.xlu0 %v723, 64
      %v1332 = vpop.permute.xlu0 %1331
      %1397 = vrot.lane.b32.xlu0 %v724, 80
      %v1398 = vpop.permute.xlu0 %1397
      %1399 = vrot.lane.b32.xlu0 %v725, 80
      %v1400 = vpop.permute.xlu0 %1399
      %1401 = vrot.lane.b32.xlu0 %v726, 80
      %v1402 = vpop.permute.xlu0 %1401
      %1403 = vrot.lane.b32.xlu0 %v727, 80
      %v1404 = vpop.permute.xlu0 %1403
      %1405 = vrot.lane.b32.xlu0 %v728, 80
      %v1406 = vpop.permute.xlu0 %1405
      %1407 = vrot.lane.b32.xlu0 %v729, 80
      %v1408 = vpop.permute.xlu0 %1407
      %1409 = vrot.lane.b32.xlu0 %v730, 80
      %v1410 = vpop.permute.xlu0 %1409
      %1411 = vrot.lane.b32.xlu0 %v731, 80
      %v1412 = vpop.permute.xlu0 %1411
      %1413 = vrot.lane.b32.xlu0 %v732, 80
      %v1414 = vpop.permute.xlu0 %1413
      %1415 = vrot.lane.b32.xlu0 %v733, 80
      %v1416 = vpop.permute.xlu0 %1415
      %1417 = vrot.lane.b32.xlu0 %v734, 80
      %v1418 = vpop.permute.xlu0 %1417
      %1419 = vrot.lane.b32.xlu0 %v735, 80
      %v1420 = vpop.permute.xlu0 %1419
      %1421 = vrot.lane.b32.xlu0 %v736, 80
      %v1422 = vpop.permute.xlu0 %1421
      %1423 = vrot.lane.b32.xlu0 %v737, 80
      %v1424 = vpop.permute.xlu0 %1423
      %1425 = vrot.lane.b32.xlu0 %v738, 80
      %v1426 = vpop.permute.xlu0 %1425
      %1427 = vrot.lane.b32.xlu0 %v739, 80
      %v1428 = vpop.permute.xlu0 %1427
      %1429 = vrot.lane.b32.xlu0 %v740, 80
      %v1430 = vpop.permute.xlu0 %1429
      %1431 = vrot.lane.b32.xlu0 %v741, 80
      %v1432 = vpop.permute.xlu0 %1431
      %1433 = vrot.lane.b32.xlu0 %v742, 80
      %v1434 = vpop.permute.xlu0 %1433
      %1435 = vrot.lane.b32.xlu0 %v743, 80
      %v1436 = vpop.permute.xlu0 %1435
      %1437 = vrot.lane.b32.xlu0 %v744, 80
      %v1438 = vpop.permute.xlu0 %1437
      %1439 = vrot.lane.b32.xlu0 %v745, 80
      %v1440 = vpop.permute.xlu0 %1439
      %1441 = vrot.lane.b32.xlu0 %v746, 80
      %v1442 = vpop.permute.xlu0 %1441
      %1443 = vrot.lane.b32.xlu0 %v747, 80
      %v1444 = vpop.permute.xlu0 %1443
      %1445 = vrot.lane.b32.xlu0 %v748, 80
      %v1446 = vpop.permute.xlu0 %1445
      %1447 = vrot.lane.b32.xlu0 %v749, 80
      %v1448 = vpop.permute.xlu0 %1447
      %1449 = vrot.lane.b32.xlu0 %v750, 80
      %v1450 = vpop.permute.xlu0 %1449
      %1451 = vrot.lane.b32.xlu0 %v751, 80
      %v1452 = vpop.permute.xlu0 %1451
      %1453 = vrot.lane.b32.xlu0 %v752, 80
      %v1454 = vpop.permute.xlu0 %1453
      %1455 = vrot.lane.b32.xlu0 %v753, 80
      %v1456 = vpop.permute.xlu0 %1455
      %1457 = vrot.lane.b32.xlu0 %v754, 80
      %v1458 = vpop.permute.xlu0 %1457
      %1459 = vrot.lane.b32.xlu0 %v755, 80
      %v1460 = vpop.permute.xlu0 %1459
      %1525 = vrot.lane.b32.xlu0 %v757, 96
      %v1526 = vpop.permute.xlu0 %1525
      %1527 = vrot.lane.b32.xlu0 %v758, 96
      %v1528 = vpop.permute.xlu0 %1527
      %1529 = vrot.lane.b32.xlu0 %v759, 96
      %v1530 = vpop.permute.xlu0 %1529
      %1531 = vrot.lane.b32.xlu0 %v760, 96
      %v1532 = vpop.permute.xlu0 %1531
      %1533 = vrot.lane.b32.xlu0 %v761, 96
      %v1534 = vpop.permute.xlu0 %1533
      %1535 = vrot.lane.b32.xlu0 %v762, 96
      %v1536 = vpop.permute.xlu0 %1535
      %1537 = vrot.lane.b32.xlu0 %v763, 96
      %v1538 = vpop.permute.xlu0 %1537
      %1539 = vrot.lane.b32.xlu0 %v764, 96
      %v1540 = vpop.permute.xlu0 %1539
      %1541 = vrot.lane.b32.xlu0 %v765, 96
      %v1542 = vpop.permute.xlu0 %1541
      %1543 = vrot.lane.b32.xlu0 %v766, 96
      %v1544 = vpop.permute.xlu0 %1543
      %1545 = vrot.lane.b32.xlu0 %v767, 96
      %v1546 = vpop.permute.xlu0 %1545
      %1547 = vrot.lane.b32.xlu0 %v768, 96
      %v1548 = vpop.permute.xlu0 %1547
      %1549 = vrot.lane.b32.xlu0 %v769, 96
      %v1550 = vpop.permute.xlu0 %1549
      %1551 = vrot.lane.b32.xlu0 %v770, 96
      %v1552 = vpop.permute.xlu0 %1551
      %1553 = vrot.lane.b32.xlu0 %v771, 96
      %v1554 = vpop.permute.xlu0 %1553
      %1555 = vrot.lane.b32.xlu0 %v772, 96
      %v1556 = vpop.permute.xlu0 %1555
      %1557 = vrot.lane.b32.xlu0 %v773, 96
      %v1558 = vpop.permute.xlu0 %1557
      %1559 = vrot.lane.b32.xlu0 %v774, 96
      %v1560 = vpop.permute.xlu0 %1559
      %1561 = vrot.lane.b32.xlu0 %v775, 96
      %v1562 = vpop.permute.xlu0 %1561
      %1563 = vrot.lane.b32.xlu0 %v776, 96
      %v1564 = vpop.permute.xlu0 %1563
      %1565 = vrot.lane.b32.xlu0 %v777, 96
      %v1566 = vpop.permute.xlu0 %1565
      %1567 = vrot.lane.b32.xlu0 %v778, 96
      %v1568 = vpop.permute.xlu0 %1567
      %1569 = vrot.lane.b32.xlu0 %v779, 96
      %v1570 = vpop.permute.xlu0 %1569
      %1571 = vrot.lane.b32.xlu0 %v780, 96
      %v1572 = vpop.permute.xlu0 %1571
      %1573 = vrot.lane.b32.xlu0 %v781, 96
      %v1574 = vpop.permute.xlu0 %1573
      %1575 = vrot.lane.b32.xlu0 %v782, 96
      %v1576 = vpop.permute.xlu0 %1575
      %1577 = vrot.lane.b32.xlu0 %v783, 96
      %v1578 = vpop.permute.xlu0 %1577
      %1579 = vrot.lane.b32.xlu0 %v784, 96
      %v1580 = vpop.permute.xlu0 %1579
      %1581 = vrot.lane.b32.xlu0 %v785, 96
      %v1582 = vpop.permute.xlu0 %1581
      %1583 = vrot.lane.b32.xlu0 %v786, 96
      %v1584 = vpop.permute.xlu0 %1583
      %1585 = vrot.lane.b32.xlu0 %v787, 96
      %v1586 = vpop.permute.xlu0 %1585
      %1587 = vrot.lane.b32.xlu0 %v788, 96
      %v1588 = vpop.permute.xlu0 %1587
      %1653 = vrot.lane.b32.xlu0 %v789, 112
      %v1654 = vpop.permute.xlu0 %1653
      %1655 = vrot.lane.b32.xlu0 %v790, 112
      %v1656 = vpop.permute.xlu0 %1655
      %1657 = vrot.lane.b32.xlu0 %v791, 112
      %v1658 = vpop.permute.xlu0 %1657
      %1659 = vrot.lane.b32.xlu0 %v792, 112
      %v1660 = vpop.permute.xlu0 %1659
      %1661 = vrot.lane.b32.xlu0 %v793, 112
      %v1662 = vpop.permute.xlu0 %1661
      %1663 = vrot.lane.b32.xlu0 %v794, 112
      %v1664 = vpop.permute.xlu0 %1663
      %1665 = vrot.lane.b32.xlu0 %v795, 112
      %v1666 = vpop.permute.xlu0 %1665
      %1667 = vrot.lane.b32.xlu0 %v796, 112
      %v1668 = vpop.permute.xlu0 %1667
      %1669 = vrot.lane.b32.xlu0 %v797, 112
      %v1670 = vpop.permute.xlu0 %1669
      %1671 = vrot.lane.b32.xlu0 %v798, 112
      %v1672 = vpop.permute.xlu0 %1671
      %1673 = vrot.lane.b32.xlu0 %v799, 112
      %v1674 = vpop.permute.xlu0 %1673
      %1675 = vrot.lane.b32.xlu0 %v800, 112
      %v1676 = vpop.permute.xlu0 %1675
      %1677 = vrot.lane.b32.xlu0 %v801, 112
      %v1678 = vpop.permute.xlu0 %1677
      %1679 = vrot.lane.b32.xlu0 %v802, 112
      %v1680 = vpop.permute.xlu0 %1679
      %1681 = vrot.lane.b32.xlu0 %v803, 112
      %v1682 = vpop.permute.xlu0 %1681
      %1683 = vrot.lane.b32.xlu0 %v804, 112
      %v1684 = vpop.permute.xlu0 %1683
      %1685 = vrot.lane.b32.xlu0 %v805, 112
      %v1686 = vpop.permute.xlu0 %1685
      %1687 = vrot.lane.b32.xlu0 %v806, 112
      %v1688 = vpop.permute.xlu0 %1687
      %1689 = vrot.lane.b32.xlu0 %v807, 112
      %v1690 = vpop.permute.xlu0 %1689
      %1691 = vrot.lane.b32.xlu0 %v808, 112
      %v1692 = vpop.permute.xlu0 %1691
      %1693 = vrot.lane.b32.xlu0 %v809, 112
      %v1694 = vpop.permute.xlu0 %1693
      %1695 = vrot.lane.b32.xlu0 %v810, 112
      %v1696 = vpop.permute.xlu0 %1695
      %1697 = vrot.lane.b32.xlu0 %v811, 112
      %v1698 = vpop.permute.xlu0 %1697
      %1699 = vrot.lane.b32.xlu0 %v812, 112
      %v1700 = vpop.permute.xlu0 %1699
      %1701 = vrot.lane.b32.xlu0 %v813, 112
      %v1702 = vpop.permute.xlu0 %1701
      %1703 = vrot.lane.b32.xlu0 %v814, 112
      %v1704 = vpop.permute.xlu0 %1703
      %1705 = vrot.lane.b32.xlu0 %v815, 112
      %v1706 = vpop.permute.xlu0 %1705
      %1707 = vrot.lane.b32.xlu0 %v816, 112
      %v1708 = vpop.permute.xlu0 %1707
      %1709 = vrot.lane.b32.xlu0 %v817, 112
      %v1710 = vpop.permute.xlu0 %1709
      %1711 = vrot.lane.b32.xlu0 %v818, 112
      %v1712 = vpop.permute.xlu0 %1711
      %1713 = vrot.lane.b32.xlu0 %v819, 112
      %v1714 = vpop.permute.xlu0 %1713
      %1715 = vrot.lane.b32.xlu0 %v820, 112
      %v1716 = vpop.permute.xlu0 %1715
      %v1749 = vsel %vm443, %v564, %v886
      %v1750 = vsel %vm443, %v565, %v888
      %v1751 = vsel %vm443, %v566, %v890
      %v1752 = vsel %vm443, %v567, %v892
      %v1753 = vsel %vm443, %v568, %v894
      %v1754 = vsel %vm443, %v569, %v896
      %v1755 = vsel %vm443, %v570, %v898
      %v1756 = vsel %vm443, %v571, %v900
      %v1757 = vsel %vm443, %v572, %v902
      %v1758 = vsel %vm443, %v573, %v904
      %v1759 = vsel %vm443, %v574, %v906
      %v1760 = vsel %vm443, %v575, %v908
      %v1761 = vsel %vm443, %v576, %v910
      %v1762 = vsel %vm443, %v577, %v912
      %v1763 = vsel %vm443, %v578, %v914
      %v1764 = vsel %vm443, %v579, %v916
      %v1765 = vsel %vm443, %v580, %v918
      %v1766 = vsel %vm443, %v581, %v920
      %v1767 = vsel %vm443, %v582, %v922
      %v1768 = vsel %vm443, %v583, %v924
      %v1769 = vsel %vm443, %v584, %v926
      %v1770 = vsel %vm443, %v585, %v928
      %v1771 = vsel %vm443, %v586, %v930
      %v1772 = vsel %vm443, %v587, %v932
      %v1773 = vsel %vm443, %v588, %v934
      %v1774 = vsel %vm443, %v589, %v936
      %v1775 = vsel %vm443, %v590, %v938
      %v1776 = vsel %vm443, %v591, %v940
      %v1777 = vsel %vm443, %v592, %v942
      %v1778 = vsel %vm443, %v593, %v944
      %v1779 = vsel %vm443, %v594, %v946
      %v1780 = vsel %vm443, %v595, %v948
      %vm1781 = vcmask 261120
      %v1782 = vsel %vm1781, %v1749, %v1014
      %v1783 = vsel %vm1781, %v1750, %v1016
      %v1784 = vsel %vm1781, %v1751, %v1018
      %v1785 = vsel %vm1781, %v1752, %v1020
      %v1786 = vsel %vm1781, %v1753, %v1022
      %v1787 = vsel %vm1781, %v1754, %v1024
      %v1788 = vsel %vm1781, %v1755, %v1026
      %v1789 = vsel %vm1781, %v1756, %v1028
      %v1790 = vsel %vm1781, %v1757, %v1030
      %v1791 = vsel %vm1781, %v1758, %v1032
      %v1792 = vsel %vm1781, %v1759, %v1034
      %v1793 = vsel %vm1781, %v1760, %v1036
      %v1794 = vsel %vm1781, %v1761, %v1038
      %v1795 = vsel %vm1781, %v1762, %v1040
      %v1796 = vsel %vm1781, %v1763, %v1042
      %v1797 = vsel %vm1781, %v1764, %v1044
      %v1798 = vsel %vm1781, %v1765, %v1046
      %v1799 = vsel %vm1781, %v1766, %v1048
      %v1800 = vsel %vm1781, %v1767, %v1050
      %v1801 = vsel %vm1781, %v1768, %v1052
      %v1802 = vsel %vm1781, %v1769, %v1054
      %v1803 = vsel %vm1781, %v1770, %v1056
      %v1804 = vsel %vm1781, %v1771, %v1058
      %v1805 = vsel %vm1781, %v1772, %v1060
      %v1806 = vsel %vm1781, %v1773, %v1062
      %v1807 = vsel %vm1781, %v1774, %v1064
      %v1808 = vsel %vm1781, %v1775, %v1066
      %v1809 = vsel %vm1781, %v1776, %v1068
      %v1810 = vsel %vm1781, %v1777, %v1070
      %v1811 = vsel %vm1781, %v1778, %v1072
      %v1812 = vsel %vm1781, %v1779, %v1074
      %v1813 = vsel %vm1781, %v1780, %v1076
      %vm1814 = vcmask 392192
      %v1815 = vsel %vm1814, %v1782, %v1142
      %v1816 = vsel %vm1814, %v1783, %v1144
      %v1817 = vsel %vm1814, %v1784, %v1146
      %v1818 = vsel %vm1814, %v1785, %v1148
      %v1819 = vsel %vm1814, %v1786, %v1150
      %v1820 = vsel %vm1814, %v1787, %v1152
      %v1821 = vsel %vm1814, %v1788, %v1154
      %v1822 = vsel %vm1814, %v1789, %v1156
      %v1823 = vsel %vm1814, %v1790, %v1158
      %v1824 = vsel %vm1814, %v1791, %v1160
      %v1825 = vsel %vm1814, %v1792, %v1162
      %v1826 = vsel %vm1814, %v1793, %v1164
      %v1827 = vsel %vm1814, %v1794, %v1166
      %v1828 = vsel %vm1814, %v1795, %v1168
      %v1829 = vsel %vm1814, %v1796, %v1170
      %v1830 = vsel %vm1814, %v1797, %v1172
      %v1831 = vsel %vm1814, %v1798, %v1174
      %v1832 = vsel %vm1814, %v1799, %v1176
      %v1833 = vsel %vm1814, %v1800, %v1178
      %v1834 = vsel %vm1814, %v1801, %v1180
      %v1835 = vsel %vm1814, %v1802, %v1182
      %v1836 = vsel %vm1814, %v1803, %v1184
      %v1837 = vsel %vm1814, %v1804, %v1186
      %v1838 = vsel %vm1814, %v1805, %v1188
      %v1839 = vsel %vm1814, %v1806, %v1190
      %v1840 = vsel %vm1814, %v1807, %v1192
      %v1841 = vsel %vm1814, %v1808, %v1194
      %v1842 = vsel %vm1814, %v1809, %v1196
      %v1843 = vsel %vm1814, %v1810, %v1198
      %v1844 = vsel %vm1814, %v1811, %v1200
      %v1845 = vsel %vm1814, %v1812, %v1202
      %v1846 = vsel %vm1814, %v1813, %v1204
      %vm1847 = vcmask 523264
      %v1848 = vsel %vm1847, %v1815, %v1270
      %v1849 = vsel %vm1847, %v1816, %v1272
      %v1850 = vsel %vm1847, %v1817, %v1274
      %v1851 = vsel %vm1847, %v1818, %v1276
      %v1852 = vsel %vm1847, %v1819, %v1278
      %v1853 = vsel %vm1847, %v1820, %v1280
      %v1854 = vsel %vm1847, %v1821, %v1282
      %v1855 = vsel %vm1847, %v1822, %v1284
      %v1856 = vsel %vm1847, %v1823, %v1286
      %v1857 = vsel %vm1847, %v1824, %v1288
      %v1858 = vsel %vm1847, %v1825, %v1290
      %v1859 = vsel %vm1847, %v1826, %v1292
      %v1860 = vsel %vm1847, %v1827, %v1294
      %v1861 = vsel %vm1847, %v1828, %v1296
      %v1862 = vsel %vm1847, %v1829, %v1298
      %v1863 = vsel %vm1847, %v1830, %v1300
      %v1864 = vsel %vm1847, %v1831, %v1302
      %v1865 = vsel %vm1847, %v1832, %v1304
      %v1866 = vsel %vm1847, %v1833, %v1306
      %v1867 = vsel %vm1847, %v1834, %v1308
      %v1868 = vsel %vm1847, %v1835, %v1310
      %v1869 = vsel %vm1847, %v1836, %v1312
      %v1870 = vsel %vm1847, %v1837, %v1314
      %v1871 = vsel %vm1847, %v1838, %v1316
      %v1872 = vsel %vm1847, %v1839, %v1318
      %v1873 = vsel %vm1847, %v1840, %v1320
      %v1874 = vsel %vm1847, %v1841, %v1322
      %v1875 = vsel %vm1847, %v1842, %v1324
      %v1876 = vsel %vm1847, %v1843, %v1326
      %v1877 = vsel %vm1847, %v1844, %v1328
      %v1878 = vsel %vm1847, %v1845, %v1330
      %v1879 = vsel %vm1847, %v1846, %v1332
      %vm1880 = vcmask 654336
      %v1881 = vsel %vm1880, %v1848, %v1398
      %v1882 = vsel %vm1880, %v1849, %v1400
      %v1883 = vsel %vm1880, %v1850, %v1402
      %v1884 = vsel %vm1880, %v1851, %v1404
      %v1885 = vsel %vm1880, %v1852, %v1406
      %v1886 = vsel %vm1880, %v1853, %v1408
      %v1887 = vsel %vm1880, %v1854, %v1410
      %v1888 = vsel %vm1880, %v1855, %v1412
      %v1889 = vsel %vm1880, %v1856, %v1414
      %v1890 = vsel %vm1880, %v1857, %v1416
      %v1891 = vsel %vm1880, %v1858, %v1418
      %v1892 = vsel %vm1880, %v1859, %v1420
      %v1893 = vsel %vm1880, %v1860, %v1422
      %v1894 = vsel %vm1880, %v1861, %v1424
      %v1895 = vsel %vm1880, %v1862, %v1426
      %v1896 = vsel %vm1880, %v1863, %v1428
      %v1897 = vsel %vm1880, %v1864, %v1430
      %v1898 = vsel %vm1880, %v1865, %v1432
      %v1899 = vsel %vm1880, %v1866, %v1434
      %v1900 = vsel %vm1880, %v1867, %v1436
      %v1901 = vsel %vm1880, %v1868, %v1438
      %v1902 = vsel %vm1880, %v1869, %v1440
      %v1903 = vsel %vm1880, %v1870, %v1442
      %v1904 = vsel %vm1880, %v1871, %v1444
      %v1905 = vsel %vm1880, %v1872, %v1446
      %v1906 = vsel %vm1880, %v1873, %v1448
      %v1907 = vsel %vm1880, %v1874, %v1450
      %v1908 = vsel %vm1880, %v1875, %v1452
      %v1909 = vsel %vm1880, %v1876, %v1454
      %v1910 = vsel %vm1880, %v1877, %v1456
      %v1911 = vsel %vm1880, %v1878, %v1458
      %v1912 = vsel %vm1880, %v1879, %v1460
      %vm1913 = vcmask 785408
      %v1914 = vsel %vm1913, %v1881, %v1526
      %v1915 = vsel %vm1913, %v1882, %v1528
      %v1916 = vsel %vm1913, %v1883, %v1530
      %v1917 = vsel %vm1913, %v1884, %v1532
      %v1918 = vsel %vm1913, %v1885, %v1534
      %v1919 = vsel %vm1913, %v1886, %v1536
      %v1920 = vsel %vm1913, %v1887, %v1538
      %v1921 = vsel %vm1913, %v1888, %v1540
      %v1922 = vsel %vm1913, %v1889, %v1542
      %v1923 = vsel %vm1913, %v1890, %v1544
      %v1924 = vsel %vm1913, %v1891, %v1546
      %v1925 = vsel %vm1913, %v1892, %v1548
      %v1926 = vsel %vm1913, %v1893, %v1550
      %v1927 = vsel %vm1913, %v1894, %v1552
      %v1928 = vsel %vm1913, %v1895, %v1554
      %v1929 = vsel %vm1913, %v1896, %v1556
      %v1930 = vsel %vm1913, %v1897, %v1558
      %v1931 = vsel %vm1913, %v1898, %v1560
      %v1932 = vsel %vm1913, %v1899, %v1562
      %v1933 = vsel %vm1913, %v1900, %v1564
      %v1934 = vsel %vm1913, %v1901, %v1566
      %v1935 = vsel %vm1913, %v1902, %v1568
      %v1936 = vsel %vm1913, %v1903, %v1570
      %v1937 = vsel %vm1913, %v1904, %v1572
      %v1938 = vsel %vm1913, %v1905, %v1574
      %v1939 = vsel %vm1913, %v1906, %v1576
      %v1940 = vsel %vm1913, %v1907, %v1578
      %v1941 = vsel %vm1913, %v1908, %v1580
      %v1942 = vsel %vm1913, %v1909, %v1582
      %v1943 = vsel %vm1913, %v1910, %v1584
      %v1944 = vsel %vm1913, %v1911, %v1586
      %v1945 = vsel %vm1913, %v1912, %v1588
      %vm1946 = vcmask 916480
      %v1947 = vsel %vm1946, %v1914, %v1654
      %v1948 = vsel %vm1946, %v1915, %v1656
      %v1949 = vsel %vm1946, %v1916, %v1658
      %v1950 = vsel %vm1946, %v1917, %v1660
      %v1951 = vsel %vm1946, %v1918, %v1662
      %v1952 = vsel %vm1946, %v1919, %v1664
      %v1953 = vsel %vm1946, %v1920, %v1666
      %v1954 = vsel %vm1946, %v1921, %v1668
      %v1955 = vsel %vm1946, %v1922, %v1670
      %v1956 = vsel %vm1946, %v1923, %v1672
      %v1957 = vsel %vm1946, %v1924, %v1674
      %v1958 = vsel %vm1946, %v1925, %v1676
      %v1959 = vsel %vm1946, %v1926, %v1678
      %v1960 = vsel %vm1946, %v1927, %v1680
      %v1961 = vsel %vm1946, %v1928, %v1682
      %v1962 = vsel %vm1946, %v1929, %v1684
      %v1963 = vsel %vm1946, %v1930, %v1686
      %v1964 = vsel %vm1946, %v1931, %v1688
      %v1965 = vsel %vm1946, %v1932, %v1690
      %v1966 = vsel %vm1946, %v1933, %v1692
      %v1967 = vsel %vm1946, %v1934, %v1694
      %v1968 = vsel %vm1946, %v1935, %v1696
      %v1969 = vsel %vm1946, %v1936, %v1698
      %v1970 = vsel %vm1946, %v1937, %v1700
      %v1971 = vsel %vm1946, %v1938, %v1702
      %v1972 = vsel %vm1946, %v1939, %v1704
      %v1973 = vsel %vm1946, %v1940, %v1706
      %v1974 = vsel %vm1946, %v1941, %v1708
      %v1975 = vsel %vm1946, %v1942, %v1710
      %v1976 = vsel %vm1946, %v1943, %v1712
      %v1977 = vsel %vm1946, %v1944, %v1714
      %v1978 = vsel %vm1946, %v1945, %v1716
      %v1979 = vld [vmem:[%s1] sm:$0xff]
      %v1980 = vld [vmem:[%s1 + $0x8] sm:$0xff]
      %v1981 = vld [vmem:[%s1 + $0x10] sm:$0xff]
      %v1982 = vld [vmem:[%s1 + $0x18] sm:$0xff]
      %v1983 = vld [vmem:[%s1 + $0x20] sm:$0xff]
      %v1984 = vld [vmem:[%s1 + $0x28] sm:$0xff]
      %v1985 = vld [vmem:[%s1 + $0x30] sm:$0xff]
      %v1986 = vld [vmem:[%s1 + $0x38] sm:$0xff]
      %v1987 = vld [vmem:[%s1 + $0x40] sm:$0xff]
      %v1988 = vld [vmem:[%s1 + $0x48] sm:$0xff]
      %v1989 = vld [vmem:[%s1 + $0x50] sm:$0xff]
      %v1990 = vld [vmem:[%s1 + $0x58] sm:$0xff]
      %v1991 = vld [vmem:[%s1 + $0x60] sm:$0xff]
      %v1992 = vld [vmem:[%s1 + $0x68] sm:$0xff]
      %v1993 = vld [vmem:[%s1 + $0x70] sm:$0xff]
      %v1994 = vld [vmem:[%s1 + $0x78] sm:$0xff]
      %v1995 = vld [vmem:[%s1 + $0x80] sm:$0xff]
      %v1996 = vld [vmem:[%s1 + $0x88] sm:$0xff]
      %v1997 = vld [vmem:[%s2] sm:$0x1]
      %v1999 = vperm.slane %v1997, 0
      %v2002 = vsel %vm443, %v821, 0
      %v2005 = vsel %vm443, %v822, 0
      %v2008 = vsel %vm443, %v823, 0
      %v2011 = vsel %vm443, %v824, 0
      %v2014 = vsel %vm443, %v825, 0
      %v2017 = vsel %vm443, %v826, 0
      %v2020 = vsel %vm443, %v827, 0
      %v2023 = vsel %vm443, %v828, 0
      %v2026 = vsel %vm443, %v829, 0
      %v2029 = vsel %vm443, %v830, 0
      %v2032 = vsel %vm443, %v831, 0
      %v2035 = vsel %vm443, %v832, 0
      %v2038 = vsel %vm443, %v833, 0
      %v2041 = vsel %vm443, %v834, 0
      %v2044 = vsel %vm443, %v835, 0
      %v2047 = vsel %vm443, %v836, 0
      %v2050 = vsel %vm443, %v837, 0
      %v2053 = vsel %vm443, %v838, 0
      %v2056 = vsel %vm443, %v839, 0
      %v2059 = vsel %vm443, %v840, 0
      %v2062 = vsel %vm443, %v841, 0
      %v2065 = vsel %vm443, %v842, 0
      %v2068 = vsel %vm443, %v843, 0
      %v2071 = vsel %vm443, %v844, 0
      %v2074 = vsel %vm443, %v845, 0
      %v2077 = vsel %vm443, %v846, 0
      %v2080 = vsel %vm443, %v847, 0
      %v2083 = vsel %vm443, %v848, 0
      %v2086 = vsel %vm443, %v849, 0
      %v2089 = vsel %vm443, %v850, 0
      %v2092 = vsel %vm443, %v851, 0
      %v2095 = vsel %vm443, %v852, 0
      %2097 = vmatpush.msra.mxu0 %v1994
      %2098 = vmatpush.msra.mxu0 %v1993
      %2099 = vmatpush.msra.mxu0 %v1992
      %2100 = vmatpush.msra.mxu0 %v1991
      %2101 = vmatpush.msra.mxu0 %v1990
      %2102 = vmatpush.msra.mxu0 %v1989
      %2103 = vmatpush.msra.mxu0 %v1988
      %2104 = vmatpush.msra.mxu0 %v1987
      %2105 = vmatpush.msra.mxu0 %v1986
      %2106 = vmatpush.msra.mxu0 %v1985
      %2107 = vmatpush.msra.mxu0 %v1984
      %2108 = vmatpush.msra.mxu0 %v1983
      %2109 = vmatpush.msra.mxu0 %v1982
      %2110 = vmatpush.msra.mxu0 %v1981
      %2111 = vmatpush.msra.mxu0 %v1980
      %2112 = vmatpush.msra.mxu0 %v1979
      %2113 = vmatmul.f32.gmra.mxu0 %v1947
      %v2114 = vpop.f32.mrf.mxu0
      %v2115 = vadd.f32 %v1999, %v2114
      %2116 = vmatmul.f32.gmra.mxu0 %v1948
      %v2117 = vpop.f32.mrf.mxu0
      %v2118 = vadd.f32 %v1999, %v2117
      %2119 = vmatmul.f32.gmra.mxu0 %v1949
      %v2120 = vpop.f32.mrf.mxu0
      %v2121 = vadd.f32 %v1999, %v2120
      %2122 = vmatmul.f32.gmra.mxu0 %v1950
      %v2123 = vpop.f32.mrf.mxu0
      %v2124 = vadd.f32 %v1999, %v2123
      %2125 = vmatmul.f32.gmra.mxu0 %v1951
      %v2126 = vpop.f32.mrf.mxu0
      %v2127 = vadd.f32 %v1999, %v2126
      %2128 = vmatmul.f32.gmra.mxu0 %v1952
      %v2129 = vpop.f32.mrf.mxu0
      %v2130 = vadd.f32 %v1999, %v2129
      %2131 = vmatmul.f32.gmra.mxu0 %v1953
      %v2132 = vpop.f32.mrf.mxu0
      %v2133 = vadd.f32 %v1999, %v2132
      %2134 = vmatmul.f32.gmra.mxu0 %v1954
      %v2135 = vpop.f32.mrf.mxu0
      %v2136 = vadd.f32 %v1999, %v2135
      %2137 = vmatmul.f32.gmra.mxu0 %v1955
      %v2138 = vpop.f32.mrf.mxu0
      %v2139 = vadd.f32 %v1999, %v2138
      %2140 = vmatmul.f32.gmra.mxu0 %v1956
      %v2141 = vpop.f32.mrf.mxu0
      %v2142 = vadd.f32 %v1999, %v2141
      %2143 = vmatmul.f32.gmra.mxu0 %v1957
      %v2144 = vpop.f32.mrf.mxu0
      %v2145 = vadd.f32 %v1999, %v2144
      %2146 = vmatmul.f32.gmra.mxu0 %v1958
      %v2147 = vpop.f32.mrf.mxu0
      %v2148 = vadd.f32 %v1999, %v2147
      %2149 = vmatmul.f32.gmra.mxu0 %v1959
      %v2150 = vpop.f32.mrf.mxu0
      %v2151 = vadd.f32 %v1999, %v2150
      %2152 = vmatmul.f32.gmra.mxu0 %v1960
      %v2153 = vpop.f32.mrf.mxu0
      %v2154 = vadd.f32 %v1999, %v2153
      %2155 = vmatmul.f32.gmra.mxu0 %v1961
      %v2156 = vpop.f32.mrf.mxu0
      %v2157 = vadd.f32 %v1999, %v2156
      %2158 = vmatmul.f32.gmra.mxu0 %v1962
      %v2159 = vpop.f32.mrf.mxu0
      %v2160 = vadd.f32 %v1999, %v2159
      %2161 = vmatmul.f32.gmra.mxu0 %v1963
      %v2162 = vpop.f32.mrf.mxu0
      %v2163 = vadd.f32 %v1999, %v2162
      %2164 = vmatmul.f32.gmra.mxu0 %v1964
      %v2165 = vpop.f32.mrf.mxu0
      %v2166 = vadd.f32 %v1999, %v2165
      %2167 = vmatmul.f32.gmra.mxu0 %v1965
      %v2168 = vpop.f32.mrf.mxu0
      %v2169 = vadd.f32 %v1999, %v2168
      %2170 = vmatmul.f32.gmra.mxu0 %v1966
      %v2171 = vpop.f32.mrf.mxu0
      %v2172 = vadd.f32 %v1999, %v2171
      %2173 = vmatmul.f32.gmra.mxu0 %v1967
      %v2174 = vpop.f32.mrf.mxu0
      %v2175 = vadd.f32 %v1999, %v2174
      %2176 = vmatmul.f32.gmra.mxu0 %v1968
      %v2177 = vpop.f32.mrf.mxu0
      %v2178 = vadd.f32 %v1999, %v2177
      %2179 = vmatmul.f32.gmra.mxu0 %v1969
      %v2180 = vpop.f32.mrf.mxu0
      %v2181 = vadd.f32 %v1999, %v2180
      %2182 = vmatmul.f32.gmra.mxu0 %v1970
      %v2183 = vpop.f32.mrf.mxu0
      %v2184 = vadd.f32 %v1999, %v2183
      %2185 = vmatmul.f32.gmra.mxu0 %v1971
      %v2186 = vpop.f32.mrf.mxu0
      %v2187 = vadd.f32 %v1999, %v2186
      %2188 = vmatmul.f32.gmra.mxu0 %v1972
      %v2189 = vpop.f32.mrf.mxu0
      %v2190 = vadd.f32 %v1999, %v2189
      %2191 = vmatmul.f32.gmra.mxu0 %v1973
      %v2192 = vpop.f32.mrf.mxu0
      %v2193 = vadd.f32 %v1999, %v2192
      %2194 = vmatmul.f32.gmra.mxu0 %v1974
      %v2195 = vpop.f32.mrf.mxu0
      %v2196 = vadd.f32 %v1999, %v2195
      %2197 = vmatmul.f32.gmra.mxu0 %v1975
      %v2198 = vpop.f32.mrf.mxu0
      %v2199 = vadd.f32 %v1999, %v2198
      %2200 = vmatmul.f32.gmra.mxu0 %v1976
      %v2201 = vpop.f32.mrf.mxu0
      %v2202 = vadd.f32 %v1999, %v2201
      %2203 = vmatmul.f32.gmra.mxu0 %v1977
      %v2204 = vpop.f32.mrf.mxu0
      %v2205 = vadd.f32 %v1999, %v2204
      %2206 = vmatmul.f32.gmra.mxu0 %v1978
      %v2207 = vpop.f32.mrf.mxu0
      %v2208 = vadd.f32 %v1999, %v2207
      %2209 = vdwg.mxu0
      %2210 = vmatpush.msra.mxu0 0.0
      %2211 = vmatpush.msra.mxu0 0.0
      %2212 = vmatpush.msra.mxu0 0.0
      %2213 = vmatpush.msra.mxu0 0.0
      %2214 = vmatpush.msra.mxu0 0.0
      %2215 = vmatpush.msra.mxu0 0.0
      %2216 = vmatpush.msra.mxu0 0.0
      %2217 = vmatpush.msra.mxu0 0.0
      %2218 = vmatpush.msra.mxu0 0.0
      %2219 = vmatpush.msra.mxu0 0.0
      %2220 = vmatpush.msra.mxu0 0.0
      %2221 = vmatpush.msra.mxu0 0.0
      %2222 = vmatpush.msra.mxu0 0.0
      %2223 = vmatpush.msra.mxu0 0.0
      %2224 = vmatpush.msra.mxu0 %v1996
      %2225 = vmatpush.msra.mxu0 %v1995
      %2226 = vmatmul.f32.gmra.mxu0 %v2002
      %v2227 = vpop.f32.mrf.mxu0
      %v2228 = vadd.f32 %v2115, %v2227
      %2229 = vmatmul.f32.gmra.mxu0 %v2005
      %v2230 = vpop.f32.mrf.mxu0
      %v2231 = vadd.f32 %v2118, %v2230
      %2232 = vmatmul.f32.gmra.mxu0 %v2008
      %v2233 = vpop.f32.mrf.mxu0
      %v2234 = vadd.f32 %v2121, %v2233
      %2235 = vmatmul.f32.gmra.mxu0 %v2011
      %v2236 = vpop.f32.mrf.mxu0
      %v2237 = vadd.f32 %v2124, %v2236
      %2238 = vmatmul.f32.gmra.mxu0 %v2014
      %v2239 = vpop.f32.mrf.mxu0
      %v2240 = vadd.f32 %v2127, %v2239
      %2241 = vmatmul.f32.gmra.mxu0 %v2017
      %v2242 = vpop.f32.mrf.mxu0
      %v2243 = vadd.f32 %v2130, %v2242
      %2244 = vmatmul.f32.gmra.mxu0 %v2020
      %v2245 = vpop.f32.mrf.mxu0
      %v2246 = vadd.f32 %v2133, %v2245
      %2247 = vmatmul.f32.gmra.mxu0 %v2023
      %v2248 = vpop.f32.mrf.mxu0
      %v2249 = vadd.f32 %v2136, %v2248
      %2250 = vmatmul.f32.gmra.mxu0 %v2026
      %v2251 = vpop.f32.mrf.mxu0
      %v2252 = vadd.f32 %v2139, %v2251
      %2253 = vmatmul.f32.gmra.mxu0 %v2029
      %v2254 = vpop.f32.mrf.mxu0
      %v2255 = vadd.f32 %v2142, %v2254
      %2256 = vmatmul.f32.gmra.mxu0 %v2032
      %v2257 = vpop.f32.mrf.mxu0
      %v2258 = vadd.f32 %v2145, %v2257
      %2259 = vmatmul.f32.gmra.mxu0 %v2035
      %v2260 = vpop.f32.mrf.mxu0
      %v2261 = vadd.f32 %v2148, %v2260
      %2262 = vmatmul.f32.gmra.mxu0 %v2038
      %v2263 = vpop.f32.mrf.mxu0
      %v2264 = vadd.f32 %v2151, %v2263
      %2265 = vmatmul.f32.gmra.mxu0 %v2041
      %v2266 = vpop.f32.mrf.mxu0
      %v2267 = vadd.f32 %v2154, %v2266
      %2268 = vmatmul.f32.gmra.mxu0 %v2044
      %v2269 = vpop.f32.mrf.mxu0
      %v2270 = vadd.f32 %v2157, %v2269
      %2271 = vmatmul.f32.gmra.mxu0 %v2047
      %v2272 = vpop.f32.mrf.mxu0
      %v2273 = vadd.f32 %v2160, %v2272
      %2274 = vmatmul.f32.gmra.mxu0 %v2050
      %v2275 = vpop.f32.mrf.mxu0
      %v2276 = vadd.f32 %v2163, %v2275
      %2277 = vmatmul.f32.gmra.mxu0 %v2053
      %v2278 = vpop.f32.mrf.mxu0
      %v2279 = vadd.f32 %v2166, %v2278
      %2280 = vmatmul.f32.gmra.mxu0 %v2056
      %v2281 = vpop.f32.mrf.mxu0
      %v2282 = vadd.f32 %v2169, %v2281
      %2283 = vmatmul.f32.gmra.mxu0 %v2059
      %v2284 = vpop.f32.mrf.mxu0
      %v2285 = vadd.f32 %v2172, %v2284
      %2286 = vmatmul.f32.gmra.mxu0 %v2062
      %v2287 = vpop.f32.mrf.mxu0
      %v2288 = vadd.f32 %v2175, %v2287
      %2289 = vmatmul.f32.gmra.mxu0 %v2065
      %v2290 = vpop.f32.mrf.mxu0
      %v2291 = vadd.f32 %v2178, %v2290
      %2292 = vmatmul.f32.gmra.mxu0 %v2068
      %v2293 = vpop.f32.mrf.mxu0
      %v2294 = vadd.f32 %v2181, %v2293
      %2295 = vmatmul.f32.gmra.mxu0 %v2071
      %v2296 = vpop.f32.mrf.mxu0
      %v2297 = vadd.f32 %v2184, %v2296
      %2298 = vmatmul.f32.gmra.mxu0 %v2074
      %v2299 = vpop.f32.mrf.mxu0
      %v2300 = vadd.f32 %v2187, %v2299
      %2301 = vmatmul.f32.gmra.mxu0 %v2077
      %v2302 = vpop.f32.mrf.mxu0
      %v2303 = vadd.f32 %v2190, %v2302
      %2304 = vmatmul.f32.gmra.mxu0 %v2080
      %v2305 = vpop.f32.mrf.mxu0
      %v2306 = vadd.f32 %v2193, %v2305
      %2307 = vmatmul.f32.gmra.mxu0 %v2083
      %v2308 = vpop.f32.mrf.mxu0
      %v2309 = vadd.f32 %v2196, %v2308
      %2310 = vmatmul.f32.gmra.mxu0 %v2086
      %v2311 = vpop.f32.mrf.mxu0
      %v2312 = vadd.f32 %v2199, %v2311
      %2313 = vmatmul.f32.gmra.mxu0 %v2089
      %v2314 = vpop.f32.mrf.mxu0
      %v2315 = vadd.f32 %v2202, %v2314
      %2316 = vmatmul.f32.gmra.mxu0 %v2092
      %v2317 = vpop.f32.mrf.mxu0
      %v2318 = vadd.f32 %v2205, %v2317
      %2319 = vmatmul.f32.gmra.mxu0 %v2095
      %v2320 = vpop.f32.mrf.mxu0
      %v2321 = vadd.f32 %v2208, %v2320
      %2322 = vdwg.mxu0
      %v2323 = vmax.f32 %v2228, 0.0
      %v2324 = vmax.f32 %v2231, 0.0
      %v2325 = vmax.f32 %v2234, 0.0
      %v2326 = vmax.f32 %v2237, 0.0
      %v2327 = vmax.f32 %v2240, 0.0
      %v2328 = vmax.f32 %v2243, 0.0
      %v2329 = vmax.f32 %v2246, 0.0
      %v2330 = vmax.f32 %v2249, 0.0
      %v2331 = vmax.f32 %v2252, 0.0
      %v2332 = vmax.f32 %v2255, 0.0
      %v2333 = vmax.f32 %v2258, 0.0
      %v2334 = vmax.f32 %v2261, 0.0
      %v2335 = vmax.f32 %v2264, 0.0
      %v2336 = vmax.f32 %v2267, 0.0
      %v2337 = vmax.f32 %v2270, 0.0
      %v2338 = vmax.f32 %v2273, 0.0
      %v2339 = vmax.f32 %v2276, 0.0
      %v2340 = vmax.f32 %v2279, 0.0
      %v2341 = vmax.f32 %v2282, 0.0
      %v2342 = vmax.f32 %v2285, 0.0
      %v2343 = vmax.f32 %v2288, 0.0
      %v2344 = vmax.f32 %v2291, 0.0
      %v2345 = vmax.f32 %v2294, 0.0
      %v2346 = vmax.f32 %v2297, 0.0
      %v2347 = vmax.f32 %v2300, 0.0
      %v2348 = vmax.f32 %v2303, 0.0
      %v2349 = vmax.f32 %v2306, 0.0
      %v2350 = vmax.f32 %v2309, 0.0
      %v2351 = vmax.f32 %v2312, 0.0
      %v2352 = vmax.f32 %v2315, 0.0
      %v2353 = vmax.f32 %v2318, 0.0
      %v2354 = vmax.f32 %v2321, 0.0
      %v2355 = vadd.f32 %v2323, %v499
      %v2356 = vadd.f32 %v2324, %v500
      %v2357 = vadd.f32 %v2325, %v501
      %v2358 = vadd.f32 %v2326, %v502
      %v2359 = vadd.f32 %v2327, %v503
      %v2360 = vadd.f32 %v2328, %v504
      %v2361 = vadd.f32 %v2329, %v505
      %v2362 = vadd.f32 %v2330, %v506
      %v2363 = vadd.f32 %v2331, %v507
      %v2364 = vadd.f32 %v2332, %v508
      %v2365 = vadd.f32 %v2333, %v509
      %v2366 = vadd.f32 %v2334, %v510
      %v2367 = vadd.f32 %v2335, %v511
      %v2368 = vadd.f32 %v2336, %v512
      %v2369 = vadd.f32 %v2337, %v513
      %v2370 = vadd.f32 %v2338, %v514
      %v2371 = vadd.f32 %v2339, %v515
      %v2372 = vadd.f32 %v2340, %v516
      %v2373 = vadd.f32 %v2341, %v517
      %v2374 = vadd.f32 %v2342, %v518
      %v2375 = vadd.f32 %v2343, %v519
      %v2376 = vadd.f32 %v2344, %v520
      %v2377 = vadd.f32 %v2345, %v521
      %v2378 = vadd.f32 %v2346, %v522
      %v2379 = vadd.f32 %v2347, %v523
      %v2380 = vadd.f32 %v2348, %v524
      %v2381 = vadd.f32 %v2349, %v525
      %v2382 = vadd.f32 %v2350, %v526
      %v2383 = vadd.f32 %v2351, %v527
      %v2384 = vadd.f32 %v2352, %v528
      %v2385 = vadd.f32 %v2353, %v529
      %v2386 = vadd.f32 %v2354, %v530
      %2387 = vst.msk [vmem:[%s531 + $0x1] sm:$0xff] %vm443, %v2355
      %2388 = vst.msk [vmem:[%s531 + $0x9] sm:$0xff] %vm443, %v2356
      %2389 = vst.msk [vmem:[%s531 + $0x19] sm:$0xff] %vm443, %v2357
      %2390 = vst.msk [vmem:[%s531 + $0x21] sm:$0xff] %vm443, %v2358
      %2391 = vst.msk [vmem:[%s531 + $0x31] sm:$0xff] %vm443, %v2359
      %2392 = vst.msk [vmem:[%s531 + $0x39] sm:$0xff] %vm443, %v2360
      %2393 = vst.msk [vmem:[%s531 + $0x49] sm:$0xff] %vm443, %v2361
      %2394 = vst.msk [vmem:[%s531 + $0x51] sm:$0xff] %vm443, %v2362
      %2395 = vst.msk [vmem:[%s531 + $0x61] sm:$0xff] %vm443, %v2363
      %2396 = vst.msk [vmem:[%s531 + $0x69] sm:$0xff] %vm443, %v2364
      %2397 = vst.msk [vmem:[%s531 + $0x79] sm:$0xff] %vm443, %v2365
      %2398 = vst.msk [vmem:[%s531 + $0x81] sm:$0xff] %vm443, %v2366
      %2399 = vst.msk [vmem:[%s531 + $0x91] sm:$0xff] %vm443, %v2367
      %2400 = vst.msk [vmem:[%s531 + $0x99] sm:$0xff] %vm443, %v2368
      %2401 = vst.msk [vmem:[%s531 + $0xa9] sm:$0xff] %vm443, %v2369
      %2402 = vst.msk [vmem:[%s531 + $0xb1] sm:$0xff] %vm443, %v2370
      %2403 = vst.msk [vmem:[%s531 + $0xc1] sm:$0xff] %vm443, %v2371
      %2404 = vst.msk [vmem:[%s531 + $0xc9] sm:$0xff] %vm443, %v2372
      %2405 = vst.msk [vmem:[%s531 + $0xd9] sm:$0xff] %vm443, %v2373
      %2406 = vst.msk [vmem:[%s531 + $0xe1] sm:$0xff] %vm443, %v2374
      %2407 = vst.msk [vmem:[%s531 + $0xf1] sm:$0xff] %vm443, %v2375
      %2408 = vst.msk [vmem:[%s531 + $0xf9] sm:$0xff] %vm443, %v2376
      %2409 = vst.msk [vmem:[%s531 + $0x109] sm:$0xff] %vm443, %v2377
      %2410 = vst.msk [vmem:[%s531 + $0x111] sm:$0xff] %vm443, %v2378
      %2411 = vst.msk [vmem:[%s531 + $0x121] sm:$0xff] %vm443, %v2379
      %2412 = vst.msk [vmem:[%s531 + $0x129] sm:$0xff] %vm443, %v2380
      %2413 = vst.msk [vmem:[%s531 + $0x139] sm:$0xff] %vm443, %v2381
      %2414 = vst.msk [vmem:[%s531 + $0x141] sm:$0xff] %vm443, %v2382
      %2415 = vst.msk [vmem:[%s531 + $0x151] sm:$0xff] %vm443, %v2383
      %2416 = vst.msk [vmem:[%s531 + $0x159] sm:$0xff] %vm443, %v2384
      %2417 = vst.msk [vmem:[%s531 + $0x169] sm:$0xff] %vm443, %v2385
      %2418 = vst.msk [vmem:[%s531 + $0x171] sm:$0xff] %vm443, %v2386
      %v2419 = vld [vmem:[#allocation2] sm:$0xff]
      %v2420 = vld [vmem:[#allocation2 + $0x8] sm:$0xff]
      %v2421 = vld [vmem:[#allocation2 + $0x18] sm:$0xff]
      %v2422 = vld [vmem:[#allocation2 + $0x20] sm:$0xff]
      %v2423 = vld [vmem:[#allocation2 + $0x30] sm:$0xff]
      %v2424 = vld [vmem:[#allocation2 + $0x38] sm:$0xff]
      %v2425 = vld [vmem:[#allocation2 + $0x48] sm:$0xff]
      %v2426 = vld [vmem:[#allocation2 + $0x50] sm:$0xff]
      %v2427 = vld [vmem:[#allocation2 + $0x60] sm:$0xff]
      %v2428 = vld [vmem:[#allocation2 + $0x68] sm:$0xff]
      %v2429 = vld [vmem:[#allocation2 + $0x78] sm:$0xff]
      %v2430 = vld [vmem:[#allocation2 + $0x80] sm:$0xff]
      %v2431 = vld [vmem:[#allocation2 + $0x90] sm:$0xff]
      %v2432 = vld [vmem:[#allocation2 + $0x98] sm:$0xff]
      %v2433 = vld [vmem:[#allocation2 + $0xa8] sm:$0xff]
      %v2434 = vld [vmem:[#allocation2 + $0xb0] sm:$0xff]
      %v2435 = vld [vmem:[#allocation2 + $0xc0] sm:$0xff]
      %v2436 = vld [vmem:[#allocation2 + $0xc8] sm:$0xff]
      %v2437 = vld [vmem:[#allocation2 + $0xd8] sm:$0xff]
      %v2438 = vld [vmem:[#allocation2 + $0xe0] sm:$0xff]
      %v2439 = vld [vmem:[#allocation2 + $0xf0] sm:$0xff]
      %v2440 = vld [vmem:[#allocation2 + $0xf8] sm:$0xff]
      %v2441 = vld [vmem:[#allocation2 + $0x108] sm:$0xff]
      %v2442 = vld [vmem:[#allocation2 + $0x110] sm:$0xff]
      %v2443 = vld [vmem:[#allocation2 + $0x120] sm:$0xff]
      %v2444 = vld [vmem:[#allocation2 + $0x128] sm:$0xff]
      %v2445 = vld [vmem:[#allocation2 + $0x138] sm:$0xff]
      %v2446 = vld [vmem:[#allocation2 + $0x140] sm:$0xff]
      %v2447 = vld [vmem:[#allocation2 + $0x150] sm:$0xff]
      %v2448 = vld [vmem:[#allocation2 + $0x158] sm:$0xff]
      %v2449 = vld [vmem:[#allocation2 + $0x168] sm:$0xff]
      %v2450 = vld [vmem:[#allocation2 + $0x170] sm:$0xff]
      %v2451 = vld [vmem:[#allocation2 + $0x1] sm:$0xff]
      %v2452 = vld [vmem:[#allocation2 + $0x9] sm:$0xff]
      %v2453 = vld [vmem:[#allocation2 + $0x19] sm:$0xff]
      %v2454 = vld [vmem:[#allocation2 + $0x21] sm:$0xff]
      %v2455 = vld [vmem:[#allocation2 + $0x31] sm:$0xff]
      %v2456 = vld [vmem:[#allocation2 + $0x39] sm:$0xff]
      %v2457 = vld [vmem:[#allocation2 + $0x49] sm:$0xff]
      %v2458 = vld [vmem:[#allocation2 + $0x51] sm:$0xff]
      %v2459 = vld [vmem:[#allocation2 + $0x61] sm:$0xff]
      %v2460 = vld [vmem:[#allocation2 + $0x69] sm:$0xff]
      %v2461 = vld [vmem:[#allocation2 + $0x79] sm:$0xff]
      %v2462 = vld [vmem:[#allocation2 + $0x81] sm:$0xff]
      %v2463 = vld [vmem:[#allocation2 + $0x91] sm:$0xff]
      %v2464 = vld [vmem:[#allocation2 + $0x99] sm:$0xff]
      %v2465 = vld [vmem:[#allocation2 + $0xa9] sm:$0xff]
      %v2466 = vld [vmem:[#allocation2 + $0xb1] sm:$0xff]
      %v2467 = vld [vmem:[#allocation2 + $0xc1] sm:$0xff]
      %v2468 = vld [vmem:[#allocation2 + $0xc9] sm:$0xff]
      %v2469 = vld [vmem:[#allocation2 + $0xd9] sm:$0xff]
      %v2470 = vld [vmem:[#allocation2 + $0xe1] sm:$0xff]
      %v2471 = vld [vmem:[#allocation2 + $0xf1] sm:$0xff]
      %v2472 = vld [vmem:[#allocation2 + $0xf9] sm:$0xff]
      %v2473 = vld [vmem:[#allocation2 + $0x109] sm:$0xff]
      %v2474 = vld [vmem:[#allocation2 + $0x111] sm:$0xff]
      %v2475 = vld [vmem:[#allocation2 + $0x121] sm:$0xff]
      %v2476 = vld [vmem:[#allocation2 + $0x129] sm:$0xff]
      %v2477 = vld [vmem:[#allocation2 + $0x139] sm:$0xff]
      %v2478 = vld [vmem:[#allocation2 + $0x141] sm:$0xff]
      %v2479 = vld [vmem:[#allocation2 + $0x151] sm:$0xff]
      %v2480 = vld [vmem:[#allocation2 + $0x159] sm:$0xff]
      %v2481 = vld [vmem:[#allocation2 + $0x169] sm:$0xff]
      %v2482 = vld [vmem:[#allocation2 + $0x171] sm:$0xff]
      %v2483 = vld [vmem:[#allocation2 + $0x2] sm:$0xff]
      %v2484 = vld [vmem:[#allocation2 + $0xa] sm:$0xff]
      %v2485 = vld [vmem:[#allocation2 + $0x1a] sm:$0xff]
      %v2486 = vld [vmem:[#allocation2 + $0x22] sm:$0xff]
      %v2487 = vld [vmem:[#allocation2 + $0x32] sm:$0xff]
      %v2488 = vld [vmem:[#allocation2 + $0x3a] sm:$0xff]
      %v2489 = vld [vmem:[#allocation2 + $0x4a] sm:$0xff]
      %v2490 = vld [vmem:[#allocation2 + $0x52] sm:$0xff]
      %v2491 = vld [vmem:[#allocation2 + $0x62] sm:$0xff]
      %v2492 = vld [vmem:[#allocation2 + $0x6a] sm:$0xff]
      %v2493 = vld [vmem:[#allocation2 + $0x7a] sm:$0xff]
      %v2494 = vld [vmem:[#allocation2 + $0x82] sm:$0xff]
      %v2495 = vld [vmem:[#allocation2 + $0x92] sm:$0xff]
      %v2496 = vld [vmem:[#allocation2 + $0x9a] sm:$0xff]
      %v2497 = vld [vmem:[#allocation2 + $0xaa] sm:$0xff]
      %v2498 = vld [vmem:[#allocation2 + $0xb2] sm:$0xff]
      %v2499 = vld [vmem:[#allocation2 + $0xc2] sm:$0xff]
      %v2500 = vld [vmem:[#allocation2 + $0xca] sm:$0xff]
      %v2501 = vld [vmem:[#allocation2 + $0xda] sm:$0xff]
      %v2502 = vld [vmem:[#allocation2 + $0xe2] sm:$0xff]
      %v2503 = vld [vmem:[#allocation2 + $0xf2] sm:$0xff]
      %v2504 = vld [vmem:[#allocation2 + $0xfa] sm:$0xff]
      %v2505 = vld [vmem:[#allocation2 + $0x10a] sm:$0xff]
      %v2506 = vld [vmem:[#allocation2 + $0x112] sm:$0xff]
      %v2507 = vld [vmem:[#allocation2 + $0x122] sm:$0xff]
      %v2508 = vld [vmem:[#allocation2 + $0x12a] sm:$0xff]
      %v2509 = vld [vmem:[#allocation2 + $0x13a] sm:$0xff]
      %v2510 = vld [vmem:[#allocation2 + $0x142] sm:$0xff]
      %v2511 = vld [vmem:[#allocation2 + $0x152] sm:$0xff]
      %v2512 = vld [vmem:[#allocation2 + $0x15a] sm:$0xff]
      %v2513 = vld [vmem:[#allocation2 + $0x16a] sm:$0xff]
      %v2514 = vld [vmem:[#allocation2 + $0x172] sm:$0xff]
      %v2515 = vld [vmem:[%s531] sm:$0xff]
      %v2516 = vld [vmem:[%s531 + $0x8] sm:$0xff]
      %v2517 = vld [vmem:[%s531 + $0x18] sm:$0xff]
      %v2518 = vld [vmem:[%s531 + $0x20] sm:$0xff]
      %v2519 = vld [vmem:[%s531 + $0x30] sm:$0xff]
      %v2520 = vld [vmem:[%s531 + $0x38] sm:$0xff]
      %v2521 = vld [vmem:[%s531 + $0x48] sm:$0xff]
      %v2522 = vld [vmem:[%s531 + $0x50] sm:$0xff]
      %v2523 = vld [vmem:[%s531 + $0x60] sm:$0xff]
      %v2524 = vld [vmem:[%s531 + $0x68] sm:$0xff]
      %v2525 = vld [vmem:[%s531 + $0x78] sm:$0xff]
      %v2526 = vld [vmem:[%s531 + $0x80] sm:$0xff]
      %v2527 = vld [vmem:[%s531 + $0x90] sm:$0xff]
      %v2528 = vld [vmem:[%s531 + $0x98] sm:$0xff]
      %v2529 = vld [vmem:[%s531 + $0xa8] sm:$0xff]
      %v2530 = vld [vmem:[%s531 + $0xb0] sm:$0xff]
      %v2531 = vld [vmem:[%s531 + $0xc0] sm:$0xff]
      %v2532 = vld [vmem:[%s531 + $0xc8] sm:$0xff]
      %v2533 = vld [vmem:[%s531 + $0xd8] sm:$0xff]
      %v2534 = vld [vmem:[%s531 + $0xe0] sm:$0xff]
      %v2535 = vld [vmem:[%s531 + $0xf0] sm:$0xff]
      %v2536 = vld [vmem:[%s531 + $0xf8] sm:$0xff]
      %v2537 = vld [vmem:[%s531 + $0x108] sm:$0xff]
      %v2538 = vld [vmem:[%s531 + $0x110] sm:$0xff]
      %v2539 = vld [vmem:[%s531 + $0x120] sm:$0xff]
      %v2540 = vld [vmem:[%s531 + $0x128] sm:$0xff]
      %v2541 = vld [vmem:[%s531 + $0x138] sm:$0xff]
      %v2542 = vld [vmem:[%s531 + $0x140] sm:$0xff]
      %v2543 = vld [vmem:[%s531 + $0x150] sm:$0xff]
      %v2544 = vld [vmem:[%s531 + $0x158] sm:$0xff]
      %v2545 = vld [vmem:[%s531 + $0x168] sm:$0xff]
      %v2546 = vld [vmem:[%s531 + $0x170] sm:$0xff]
      %v2547 = vld [vmem:[%s531 + $0x1] sm:$0xff]
      %v2548 = vld [vmem:[%s531 + $0x9] sm:$0xff]
      %v2549 = vld [vmem:[%s531 + $0x19] sm:$0xff]
      %v2550 = vld [vmem:[%s531 + $0x21] sm:$0xff]
      %v2551 = vld [vmem:[%s531 + $0x31] sm:$0xff]
      %v2552 = vld [vmem:[%s531 + $0x39] sm:$0xff]
      %v2553 = vld [vmem:[%s531 + $0x49] sm:$0xff]
      %v2554 = vld [vmem:[%s531 + $0x51] sm:$0xff]
      %v2555 = vld [vmem:[%s531 + $0x61] sm:$0xff]
      %v2556 = vld [vmem:[%s531 + $0x69] sm:$0xff]
      %v2557 = vld [vmem:[%s531 + $0x79] sm:$0xff]
      %v2558 = vld [vmem:[%s531 + $0x81] sm:$0xff]
      %v2559 = vld [vmem:[%s531 + $0x91] sm:$0xff]
      %v2560 = vld [vmem:[%s531 + $0x99] sm:$0xff]
      %v2561 = vld [vmem:[%s531 + $0xa9] sm:$0xff]
      %v2562 = vld [vmem:[%s531 + $0xb1] sm:$0xff]
      %v2563 = vld [vmem:[%s531 + $0xc1] sm:$0xff]
      %v2564 = vld [vmem:[%s531 + $0xc9] sm:$0xff]
      %v2565 = vld [vmem:[%s531 + $0xd9] sm:$0xff]
      %v2566 = vld [vmem:[%s531 + $0xe1] sm:$0xff]
      %v2567 = vld [vmem:[%s531 + $0xf1] sm:$0xff]
      %v2568 = vld [vmem:[%s531 + $0xf9] sm:$0xff]
      %v2569 = vld [vmem:[%s531 + $0x109] sm:$0xff]
      %v2570 = vld [vmem:[%s531 + $0x111] sm:$0xff]
      %v2571 = vld [vmem:[%s531 + $0x121] sm:$0xff]
      %v2572 = vld [vmem:[%s531 + $0x129] sm:$0xff]
      %v2573 = vld [vmem:[%s531 + $0x139] sm:$0xff]
      %v2574 = vld [vmem:[%s531 + $0x141] sm:$0xff]
      %v2575 = vld [vmem:[%s531 + $0x151] sm:$0xff]
      %v2576 = vld [vmem:[%s531 + $0x159] sm:$0xff]
      %v2577 = vld [vmem:[%s531 + $0x169] sm:$0xff]
      %v2578 = vld [vmem:[%s531 + $0x171] sm:$0xff]
      %v2579 = vld [vmem:[%s531 + $0x2] sm:$0xff]
      %v2580 = vld [vmem:[%s531 + $0xa] sm:$0xff]
      %v2581 = vld [vmem:[%s531 + $0x1a] sm:$0xff]
      %v2582 = vld [vmem:[%s531 + $0x22] sm:$0xff]
      %v2583 = vld [vmem:[%s531 + $0x32] sm:$0xff]
      %v2584 = vld [vmem:[%s531 + $0x3a] sm:$0xff]
      %v2585 = vld [vmem:[%s531 + $0x4a] sm:$0xff]
      %v2586 = vld [vmem:[%s531 + $0x52] sm:$0xff]
      %v2587 = vld [vmem:[%s531 + $0x62] sm:$0xff]
      %v2588 = vld [vmem:[%s531 + $0x6a] sm:$0xff]
      %v2589 = vld [vmem:[%s531 + $0x7a] sm:$0xff]
      %v2590 = vld [vmem:[%s531 + $0x82] sm:$0xff]
      %v2591 = vld [vmem:[%s531 + $0x92] sm:$0xff]
      %v2592 = vld [vmem:[%s531 + $0x9a] sm:$0xff]
      %v2593 = vld [vmem:[%s531 + $0xaa] sm:$0xff]
      %v2594 = vld [vmem:[%s531 + $0xb2] sm:$0xff]
      %v2595 = vld [vmem:[%s531 + $0xc2] sm:$0xff]
      %v2596 = vld [vmem:[%s531 + $0xca] sm:$0xff]
      %v2597 = vld [vmem:[%s531 + $0xda] sm:$0xff]
      %v2598 = vld [vmem:[%s531 + $0xe2] sm:$0xff]
      %v2599 = vld [vmem:[%s531 + $0xf2] sm:$0xff]
      %v2600 = vld [vmem:[%s531 + $0xfa] sm:$0xff]
      %v2601 = vld [vmem:[%s531 + $0x10a] sm:$0xff]
      %v2602 = vld [vmem:[%s531 + $0x112] sm:$0xff]
      %v2603 = vld [vmem:[%s531 + $0x122] sm:$0xff]
      %v2604 = vld [vmem:[%s531 + $0x12a] sm:$0xff]
      %v2605 = vld [vmem:[%s531 + $0x13a] sm:$0xff]
      %v2606 = vld [vmem:[%s531 + $0x142] sm:$0xff]
      %v2607 = vld [vmem:[%s531 + $0x152] sm:$0xff]
      %v2608 = vld [vmem:[%s531 + $0x15a] sm:$0xff]
      %v2609 = vld [vmem:[%s531 + $0x16a] sm:$0xff]
      %v2610 = vld [vmem:[%s531 + $0x172] sm:$0xff]
      %v2611 = vld [vmem:[%s756] sm:$0xff]
      %v2612 = vld [vmem:[%s756 + $0x8] sm:$0xff]
      %v2613 = vld [vmem:[%s756 + $0x18] sm:$0xff]
      %v2614 = vld [vmem:[%s756 + $0x20] sm:$0xff]
      %v2615 = vld [vmem:[%s756 + $0x30] sm:$0xff]
      %v2616 = vld [vmem:[%s756 + $0x38] sm:$0xff]
      %v2617 = vld [vmem:[%s756 + $0x48] sm:$0xff]
      %v2618 = vld [vmem:[%s756 + $0x50] sm:$0xff]
      %v2619 = vld [vmem:[%s756 + $0x60] sm:$0xff]
      %v2620 = vld [vmem:[%s756 + $0x68] sm:$0xff]
      %v2621 = vld [vmem:[%s756 + $0x78] sm:$0xff]
      %v2622 = vld [vmem:[%s756 + $0x80] sm:$0xff]
      %v2623 = vld [vmem:[%s756 + $0x90] sm:$0xff]
      %v2624 = vld [vmem:[%s756 + $0x98] sm:$0xff]
      %v2625 = vld [vmem:[%s756 + $0xa8] sm:$0xff]
      %v2626 = vld [vmem:[%s756 + $0xb0] sm:$0xff]
      %v2627 = vld [vmem:[%s756 + $0xc0] sm:$0xff]
      %v2628 = vld [vmem:[%s756 + $0xc8] sm:$0xff]
      %v2629 = vld [vmem:[%s756 + $0xd8] sm:$0xff]
      %v2630 = vld [vmem:[%s756 + $0xe0] sm:$0xff]
      %v2631 = vld [vmem:[%s756 + $0xf0] sm:$0xff]
      %v2632 = vld [vmem:[%s756 + $0xf8] sm:$0xff]
      %v2633 = vld [vmem:[%s756 + $0x108] sm:$0xff]
      %v2634 = vld [vmem:[%s756 + $0x110] sm:$0xff]
      %v2635 = vld [vmem:[%s756 + $0x120] sm:$0xff]
      %v2636 = vld [vmem:[%s756 + $0x128] sm:$0xff]
      %v2637 = vld [vmem:[%s756 + $0x138] sm:$0xff]
      %v2638 = vld [vmem:[%s756 + $0x140] sm:$0xff]
      %v2639 = vld [vmem:[%s756 + $0x150] sm:$0xff]
      %v2640 = vld [vmem:[%s756 + $0x158] sm:$0xff]
      %v2641 = vld [vmem:[%s756 + $0x168] sm:$0xff]
      %v2642 = vld [vmem:[%s756 + $0x170] sm:$0xff]
      %v2643 = vld [vmem:[%s756 + $0x1] sm:$0xff]
      %v2644 = vld [vmem:[%s756 + $0x9] sm:$0xff]
      %v2645 = vld [vmem:[%s756 + $0x19] sm:$0xff]
      %v2646 = vld [vmem:[%s756 + $0x21] sm:$0xff]
      %v2647 = vld [vmem:[%s756 + $0x31] sm:$0xff]
      %v2648 = vld [vmem:[%s756 + $0x39] sm:$0xff]
      %v2649 = vld [vmem:[%s756 + $0x49] sm:$0xff]
      %v2650 = vld [vmem:[%s756 + $0x51] sm:$0xff]
      %v2651 = vld [vmem:[%s756 + $0x61] sm:$0xff]
      %v2652 = vld [vmem:[%s756 + $0x69] sm:$0xff]
      %v2653 = vld [vmem:[%s756 + $0x79] sm:$0xff]
      %v2654 = vld [vmem:[%s756 + $0x81] sm:$0xff]
      %v2655 = vld [vmem:[%s756 + $0x91] sm:$0xff]
      %v2656 = vld [vmem:[%s756 + $0x99] sm:$0xff]
      %v2657 = vld [vmem:[%s756 + $0xa9] sm:$0xff]
      %v2658 = vld [vmem:[%s756 + $0xb1] sm:$0xff]
      %v2659 = vld [vmem:[%s756 + $0xc1] sm:$0xff]
      %v2660 = vld [vmem:[%s756 + $0xc9] sm:$0xff]
      %v2661 = vld [vmem:[%s756 + $0xd9] sm:$0xff]
      %v2662 = vld [vmem:[%s756 + $0xe1] sm:$0xff]
      %v2663 = vld [vmem:[%s756 + $0xf1] sm:$0xff]
      %v2664 = vld [vmem:[%s756 + $0xf9] sm:$0xff]
      %v2665 = vld [vmem:[%s756 + $0x109] sm:$0xff]
      %v2666 = vld [vmem:[%s756 + $0x111] sm:$0xff]
      %v2667 = vld [vmem:[%s756 + $0x121] sm:$0xff]
      %v2668 = vld [vmem:[%s756 + $0x129] sm:$0xff]
      %v2669 = vld [vmem:[%s756 + $0x139] sm:$0xff]
      %v2670 = vld [vmem:[%s756 + $0x141] sm:$0xff]
      %v2671 = vld [vmem:[%s756 + $0x151] sm:$0xff]
      %v2672 = vld [vmem:[%s756 + $0x159] sm:$0xff]
      %v2673 = vld [vmem:[%s756 + $0x169] sm:$0xff]
      %v2674 = vld [vmem:[%s756 + $0x171] sm:$0xff]
      %v2675 = vld [vmem:[%s756 + $0x2] sm:$0xff]
      %v2676 = vld [vmem:[%s756 + $0xa] sm:$0xff]
      %v2677 = vld [vmem:[%s756 + $0x1a] sm:$0xff]
      %v2678 = vld [vmem:[%s756 + $0x22] sm:$0xff]
      %v2679 = vld [vmem:[%s756 + $0x32] sm:$0xff]
      %v2680 = vld [vmem:[%s756 + $0x3a] sm:$0xff]
      %v2681 = vld [vmem:[%s756 + $0x4a] sm:$0xff]
      %v2682 = vld [vmem:[%s756 + $0x52] sm:$0xff]
      %v2683 = vld [vmem:[%s756 + $0x62] sm:$0xff]
      %v2684 = vld [vmem:[%s756 + $0x6a] sm:$0xff]
      %v2685 = vld [vmem:[%s756 + $0x7a] sm:$0xff]
      %v2686 = vld [vmem:[%s756 + $0x82] sm:$0xff]
      %v2687 = vld [vmem:[%s756 + $0x92] sm:$0xff]
      %v2688 = vld [vmem:[%s756 + $0x9a] sm:$0xff]
      %v2689 = vld [vmem:[%s756 + $0xaa] sm:$0xff]
      %v2690 = vld [vmem:[%s756 + $0xb2] sm:$0xff]
      %v2691 = vld [vmem:[%s756 + $0xc2] sm:$0xff]
      %v2692 = vld [vmem:[%s756 + $0xca] sm:$0xff]
      %v2693 = vld [vmem:[%s756 + $0xda] sm:$0xff]
      %v2694 = vld [vmem:[%s756 + $0xe2] sm:$0xff]
      %v2695 = vld [vmem:[%s756 + $0xf2] sm:$0xff]
      %v2696 = vld [vmem:[%s756 + $0xfa] sm:$0xff]
      %v2697 = vld [vmem:[%s756 + $0x10a] sm:$0xff]
      %v2698 = vld [vmem:[%s756 + $0x112] sm:$0xff]
      %v2699 = vld [vmem:[%s756 + $0x122] sm:$0xff]
      %v2700 = vld [vmem:[%s756 + $0x12a] sm:$0xff]
      %v2701 = vld [vmem:[%s756 + $0x13a] sm:$0xff]
      %v2702 = vld [vmem:[%s756 + $0x142] sm:$0xff]
      %v2703 = vld [vmem:[%s756 + $0x152] sm:$0xff]
      %v2704 = vld [vmem:[%s756 + $0x15a] sm:$0xff]
      %v2705 = vld [vmem:[%s756 + $0x16a] sm:$0xff]
      %v2706 = vld [vmem:[%s756 + $0x172] sm:$0xff]
      %2739 = vrot.lane.b32.xlu0 %v2451, 16
      %v2740 = vpop.permute.xlu0 %2739
      %2741 = vrot.lane.b32.xlu0 %v2452, 16
      %v2742 = vpop.permute.xlu0 %2741
      %2743 = vrot.lane.b32.xlu0 %v2453, 16
      %v2744 = vpop.permute.xlu0 %2743
      %2745 = vrot.lane.b32.xlu0 %v2454, 16
      %v2746 = vpop.permute.xlu0 %2745
      %2747 = vrot.lane.b32.xlu0 %v2455, 16
      %v2748 = vpop.permute.xlu0 %2747
      %2749 = vrot.lane.b32.xlu0 %v2456, 16
      %v2750 = vpop.permute.xlu0 %2749
      %2751 = vrot.lane.b32.xlu0 %v2457, 16
      %v2752 = vpop.permute.xlu0 %2751
      %2753 = vrot.lane.b32.xlu0 %v2458, 16
      %v2754 = vpop.permute.xlu0 %2753
      %2755 = vrot.lane.b32.xlu0 %v2459, 16
      %v2756 = vpop.permute.xlu0 %2755
      %2757 = vrot.lane.b32.xlu0 %v2460, 16
      %v2758 = vpop.permute.xlu0 %2757
      %2759 = vrot.lane.b32.xlu0 %v2461, 16
      %v2760 = vpop.permute.xlu0 %2759
      %2761 = vrot.lane.b32.xlu0 %v2462, 16
      %v2762 = vpop.permute.xlu0 %2761
      %2763 = vrot.lane.b32.xlu0 %v2463, 16
      %v2764 = vpop.permute.xlu0 %2763
      %2765 = vrot.lane.b32.xlu0 %v2464, 16
      %v2766 = vpop.permute.xlu0 %2765
      %2767 = vrot.lane.b32.xlu0 %v2465, 16
      %v2768 = vpop.permute.xlu0 %2767
      %2769 = vrot.lane.b32.xlu0 %v2466, 16
      %v2770 = vpop.permute.xlu0 %2769
      %2771 = vrot.lane.b32.xlu0 %v2467, 16
      %v2772 = vpop.permute.xlu0 %2771
      %2773 = vrot.lane.b32.xlu0 %v2468, 16
      %v2774 = vpop.permute.xlu0 %2773
      %2775 = vrot.lane.b32.xlu0 %v2469, 16
      %v2776 = vpop.permute.xlu0 %2775
      %2777 = vrot.lane.b32.xlu0 %v2470, 16
      %v2778 = vpop.permute.xlu0 %2777
      %2779 = vrot.lane.b32.xlu0 %v2471, 16
      %v2780 = vpop.permute.xlu0 %2779
      %2781 = vrot.lane.b32.xlu0 %v2472, 16
      %v2782 = vpop.permute.xlu0 %2781
      %2783 = vrot.lane.b32.xlu0 %v2473, 16
      %v2784 = vpop.permute.xlu0 %2783
      %2785 = vrot.lane.b32.xlu0 %v2474, 16
      %v2786 = vpop.permute.xlu0 %2785
      %2787 = vrot.lane.b32.xlu0 %v2475, 16
      %v2788 = vpop.permute.xlu0 %2787
      %2789 = vrot.lane.b32.xlu0 %v2476, 16
      %v2790 = vpop.permute.xlu0 %2789
      %2791 = vrot.lane.b32.xlu0 %v2477, 16
      %v2792 = vpop.permute.xlu0 %2791
      %2793 = vrot.lane.b32.xlu0 %v2478, 16
      %v2794 = vpop.permute.xlu0 %2793
      %2795 = vrot.lane.b32.xlu0 %v2479, 16
      %v2796 = vpop.permute.xlu0 %2795
      %2797 = vrot.lane.b32.xlu0 %v2480, 16
      %v2798 = vpop.permute.xlu0 %2797
      %2799 = vrot.lane.b32.xlu0 %v2481, 16
      %v2800 = vpop.permute.xlu0 %2799
      %2801 = vrot.lane.b32.xlu0 %v2482, 16
      %v2802 = vpop.permute.xlu0 %2801
      %2867 = vrot.lane.b32.xlu0 %v2483, 32
      %v2868 = vpop.permute.xlu0 %2867
      %2869 = vrot.lane.b32.xlu0 %v2484, 32
      %v2870 = vpop.permute.xlu0 %2869
      %2871 = vrot.lane.b32.xlu0 %v2485, 32
      %v2872 = vpop.permute.xlu0 %2871
      %2873 = vrot.lane.b32.xlu0 %v2486, 32
      %v2874 = vpop.permute.xlu0 %2873
      %2875 = vrot.lane.b32.xlu0 %v2487, 32
      %v2876 = vpop.permute.xlu0 %2875
      %2877 = vrot.lane.b32.xlu0 %v2488, 32
      %v2878 = vpop.permute.xlu0 %2877
      %2879 = vrot.lane.b32.xlu0 %v2489, 32
      %v2880 = vpop.permute.xlu0 %2879
      %2881 = vrot.lane.b32.xlu0 %v2490, 32
      %v2882 = vpop.permute.xlu0 %2881
      %2883 = vrot.lane.b32.xlu0 %v2491, 32
      %v2884 = vpop.permute.xlu0 %2883
      %2885 = vrot.lane.b32.xlu0 %v2492, 32
      %v2886 = vpop.permute.xlu0 %2885
      %2887 = vrot.lane.b32.xlu0 %v2493, 32
      %v2888 = vpop.permute.xlu0 %2887
      %2889 = vrot.lane.b32.xlu0 %v2494, 32
      %v2890 = vpop.permute.xlu0 %2889
      %2891 = vrot.lane.b32.xlu0 %v2495, 32
      %v2892 = vpop.permute.xlu0 %2891
      %2893 = vrot.lane.b32.xlu0 %v2496, 32
      %v2894 = vpop.permute.xlu0 %2893
      %2895 = vrot.lane.b32.xlu0 %v2497, 32
      %v2896 = vpop.permute.xlu0 %2895
      %2897 = vrot.lane.b32.xlu0 %v2498, 32
      %v2898 = vpop.permute.xlu0 %2897
      %2899 = vrot.lane.b32.xlu0 %v2499, 32
      %v2900 = vpop.permute.xlu0 %2899
      %2901 = vrot.lane.b32.xlu0 %v2500, 32
      %v2902 = vpop.permute.xlu0 %2901
      %2903 = vrot.lane.b32.xlu0 %v2501, 32
      %v2904 = vpop.permute.xlu0 %2903
      %2905 = vrot.lane.b32.xlu0 %v2502, 32
      %v2906 = vpop.permute.xlu0 %2905
      %2907 = vrot.lane.b32.xlu0 %v2503, 32
      %v2908 = vpop.permute.xlu0 %2907
      %2909 = vrot.lane.b32.xlu0 %v2504, 32
      %v2910 = vpop.permute.xlu0 %2909
      %2911 = vrot.lane.b32.xlu0 %v2505, 32
      %v2912 = vpop.permute.xlu0 %2911
      %2913 = vrot.lane.b32.xlu0 %v2506, 32
      %v2914 = vpop.permute.xlu0 %2913
      %2915 = vrot.lane.b32.xlu0 %v2507, 32
      %v2916 = vpop.permute.xlu0 %2915
      %2917 = vrot.lane.b32.xlu0 %v2508, 32
      %v2918 = vpop.permute.xlu0 %2917
      %2919 = vrot.lane.b32.xlu0 %v2509, 32
      %v2920 = vpop.permute.xlu0 %2919
      %2921 = vrot.lane.b32.xlu0 %v2510, 32
      %v2922 = vpop.permute.xlu0 %2921
      %2923 = vrot.lane.b32.xlu0 %v2511, 32
      %v2924 = vpop.permute.xlu0 %2923
      %2925 = vrot.lane.b32.xlu0 %v2512, 32
      %v2926 = vpop.permute.xlu0 %2925
      %2927 = vrot.lane.b32.xlu0 %v2513, 32
      %v2928 = vpop.permute.xlu0 %2927
      %2929 = vrot.lane.b32.xlu0 %v2514, 32
      %v2930 = vpop.permute.xlu0 %2929
      %2995 = vrot.lane.b32.xlu0 %v2515, 48
      %v2996 = vpop.permute.xlu0 %2995
      %2997 = vrot.lane.b32.xlu0 %v2516, 48
      %v2998 = vpop.permute.xlu0 %2997
      %2999 = vrot.lane.b32.xlu0 %v2517, 48
      %v3000 = vpop.permute.xlu0 %2999
      %3001 = vrot.lane.b32.xlu0 %v2518, 48
      %v3002 = vpop.permute.xlu0 %3001
      %3003 = vrot.lane.b32.xlu0 %v2519, 48
      %v3004 = vpop.permute.xlu0 %3003
      %3005 = vrot.lane.b32.xlu0 %v2520, 48
      %v3006 = vpop.permute.xlu0 %3005
      %3007 = vrot.lane.b32.xlu0 %v2521, 48
      %v3008 = vpop.permute.xlu0 %3007
      %3009 = vrot.lane.b32.xlu0 %v2522, 48
      %v3010 = vpop.permute.xlu0 %3009
      %3011 = vrot.lane.b32.xlu0 %v2523, 48
      %v3012 = vpop.permute.xlu0 %3011
      %3013 = vrot.lane.b32.xlu0 %v2524, 48
      %v3014 = vpop.permute.xlu0 %3013
      %3015 = vrot.lane.b32.xlu0 %v2525, 48
      %v3016 = vpop.permute.xlu0 %3015
      %3017 = vrot.lane.b32.xlu0 %v2526, 48
      %v3018 = vpop.permute.xlu0 %3017
      %3019 = vrot.lane.b32.xlu0 %v2527, 48
      %v3020 = vpop.permute.xlu0 %3019
      %3021 = vrot.lane.b32.xlu0 %v2528, 48
      %v3022 = vpop.permute.xlu0 %3021
      %3023 = vrot.lane.b32.xlu0 %v2529, 48
      %v3024 = vpop.permute.xlu0 %3023
      %3025 = vrot.lane.b32.xlu0 %v2530, 48
      %v3026 = vpop.permute.xlu0 %3025
      %3027 = vrot.lane.b32.xlu0 %v2531, 48
      %v3028 = vpop.permute.xlu0 %3027
      %3029 = vrot.lane.b32.xlu0 %v2532, 48
      %v3030 = vpop.permute.xlu0 %3029
      %3031 = vrot.lane.b32.xlu0 %v2533, 48
      %v3032 = vpop.permute.xlu0 %3031
      %3033 = vrot.lane.b32.xlu0 %v2534, 48
      %v3034 = vpop.permute.xlu0 %3033
      %3035 = vrot.lane.b32.xlu0 %v2535, 48
      %v3036 = vpop.permute.xlu0 %3035
      %3037 = vrot.lane.b32.xlu0 %v2536, 48
      %v3038 = vpop.permute.xlu0 %3037
      %3039 = vrot.lane.b32.xlu0 %v2537, 48
      %v3040 = vpop.permute.xlu0 %3039
      %3041 = vrot.lane.b32.xlu0 %v2538, 48
      %v3042 = vpop.permute.xlu0 %3041
      %3043 = vrot.lane.b32.xlu0 %v2539, 48
      %v3044 = vpop.permute.xlu0 %3043
      %3045 = vrot.lane.b32.xlu0 %v2540, 48
      %v3046 = vpop.permute.xlu0 %3045
      %3047 = vrot.lane.b32.xlu0 %v2541, 48
      %v3048 = vpop.permute.xlu0 %3047
      %3049 = vrot.lane.b32.xlu0 %v2542, 48
      %v3050 = vpop.permute.xlu0 %3049
      %3051 = vrot.lane.b32.xlu0 %v2543, 48
      %v3052 = vpop.permute.xlu0 %3051
      %3053 = vrot.lane.b32.xlu0 %v2544, 48
      %v3054 = vpop.permute.xlu0 %3053
      %3055 = vrot.lane.b32.xlu0 %v2545, 48
      %v3056 = vpop.permute.xlu0 %3055
      %3057 = vrot.lane.b32.xlu0 %v2546, 48
      %v3058 = vpop.permute.xlu0 %3057
      %3123 = vrot.lane.b32.xlu0 %v2547, 64
      %v3124 = vpop.permute.xlu0 %3123
      %3125 = vrot.lane.b32.xlu0 %v2548, 64
      %v3126 = vpop.permute.xlu0 %3125
      %3127 = vrot.lane.b32.xlu0 %v2549, 64
      %v3128 = vpop.permute.xlu0 %3127
      %3129 = vrot.lane.b32.xlu0 %v2550, 64
      %v3130 = vpop.permute.xlu0 %3129
      %3131 = vrot.lane.b32.xlu0 %v2551, 64
      %v3132 = vpop.permute.xlu0 %3131
      %3133 = vrot.lane.b32.xlu0 %v2552, 64
      %v3134 = vpop.permute.xlu0 %3133
      %3135 = vrot.lane.b32.xlu0 %v2553, 64
      %v3136 = vpop.permute.xlu0 %3135
      %3137 = vrot.lane.b32.xlu0 %v2554, 64
      %v3138 = vpop.permute.xlu0 %3137
      %3139 = vrot.lane.b32.xlu0 %v2555, 64
      %v3140 = vpop.permute.xlu0 %3139
      %3141 = vrot.lane.b32.xlu0 %v2556, 64
      %v3142 = vpop.permute.xlu0 %3141
      %3143 = vrot.lane.b32.xlu0 %v2557, 64
      %v3144 = vpop.permute.xlu0 %3143
      %3145 = vrot.lane.b32.xlu0 %v2558, 64
      %v3146 = vpop.permute.xlu0 %3145
      %3147 = vrot.lane.b32.xlu0 %v2559, 64
      %v3148 = vpop.permute.xlu0 %3147
      %3149 = vrot.lane.b32.xlu0 %v2560, 64
      %v3150 = vpop.permute.xlu0 %3149
      %3151 = vrot.lane.b32.xlu0 %v2561, 64
      %v3152 = vpop.permute.xlu0 %3151
      %3153 = vrot.lane.b32.xlu0 %v2562, 64
      %v3154 = vpop.permute.xlu0 %3153
      %3155 = vrot.lane.b32.xlu0 %v2563, 64
      %v3156 = vpop.permute.xlu0 %3155
      %3157 = vrot.lane.b32.xlu0 %v2564, 64
      %v3158 = vpop.permute.xlu0 %3157
      %3159 = vrot.lane.b32.xlu0 %v2565, 64
      %v3160 = vpop.permute.xlu0 %3159
      %3161 = vrot.lane.b32.xlu0 %v2566, 64
      %v3162 = vpop.permute.xlu0 %3161
      %3163 = vrot.lane.b32.xlu0 %v2567, 64
      %v3164 = vpop.permute.xlu0 %3163
      %3165 = vrot.lane.b32.xlu0 %v2568, 64
      %v3166 = vpop.permute.xlu0 %3165
      %3167 = vrot.lane.b32.xlu0 %v2569, 64
      %v3168 = vpop.permute.xlu0 %3167
      %3169 = vrot.lane.b32.xlu0 %v2570, 64
      %v3170 = vpop.permute.xlu0 %3169
      %3171 = vrot.lane.b32.xlu0 %v2571, 64
      %v3172 = vpop.permute.xlu0 %3171
      %3173 = vrot.lane.b32.xlu0 %v2572, 64
      %v3174 = vpop.permute.xlu0 %3173
      %3175 = vrot.lane.b32.xlu0 %v2573, 64
      %v3176 = vpop.permute.xlu0 %3175
      %3177 = vrot.lane.b32.xlu0 %v2574, 64
      %v3178 = vpop.permute.xlu0 %3177
      %3179 = vrot.lane.b32.xlu0 %v2575, 64
      %v3180 = vpop.permute.xlu0 %3179
      %3181 = vrot.lane.b32.xlu0 %v2576, 64
      %v3182 = vpop.permute.xlu0 %3181
      %3183 = vrot.lane.b32.xlu0 %v2577, 64
      %v3184 = vpop.permute.xlu0 %3183
      %3185 = vrot.lane.b32.xlu0 %v2578, 64
      %v3186 = vpop.permute.xlu0 %3185
      %3251 = vrot.lane.b32.xlu0 %v2579, 80
      %v3252 = vpop.permute.xlu0 %3251
      %3253 = vrot.lane.b32.xlu0 %v2580, 80
      %v3254 = vpop.permute.xlu0 %3253
      %3255 = vrot.lane.b32.xlu0 %v2581, 80
      %v3256 = vpop.permute.xlu0 %3255
      %3257 = vrot.lane.b32.xlu0 %v2582, 80
      %v3258 = vpop.permute.xlu0 %3257
      %3259 = vrot.lane.b32.xlu0 %v2583, 80
      %v3260 = vpop.permute.xlu0 %3259
      %3261 = vrot.lane.b32.xlu0 %v2584, 80
      %v3262 = vpop.permute.xlu0 %3261
      %3263 = vrot.lane.b32.xlu0 %v2585, 80
      %v3264 = vpop.permute.xlu0 %3263
      %3265 = vrot.lane.b32.xlu0 %v2586, 80
      %v3266 = vpop.permute.xlu0 %3265
      %3267 = vrot.lane.b32.xlu0 %v2587, 80
      %v3268 = vpop.permute.xlu0 %3267
      %3269 = vrot.lane.b32.xlu0 %v2588, 80
      %v3270 = vpop.permute.xlu0 %3269
      %3271 = vrot.lane.b32.xlu0 %v2589, 80
      %v3272 = vpop.permute.xlu0 %3271
      %3273 = vrot.lane.b32.xlu0 %v2590, 80
      %v3274 = vpop.permute.xlu0 %3273
      %3275 = vrot.lane.b32.xlu0 %v2591, 80
      %v3276 = vpop.permute.xlu0 %3275
      %3277 = vrot.lane.b32.xlu0 %v2592, 80
      %v3278 = vpop.permute.xlu0 %3277
      %3279 = vrot.lane.b32.xlu0 %v2593, 80
      %v3280 = vpop.permute.xlu0 %3279
      %3281 = vrot.lane.b32.xlu0 %v2594, 80
      %v3282 = vpop.permute.xlu0 %3281
      %3283 = vrot.lane.b32.xlu0 %v2595, 80
      %v3284 = vpop.permute.xlu0 %3283
      %3285 = vrot.lane.b32.xlu0 %v2596, 80
      %v3286 = vpop.permute.xlu0 %3285
      %3287 = vrot.lane.b32.xlu0 %v2597, 80
      %v3288 = vpop.permute.xlu0 %3287
      %3289 = vrot.lane.b32.xlu0 %v2598, 80
      %v3290 = vpop.permute.xlu0 %3289
      %3291 = vrot.lane.b32.xlu0 %v2599, 80
      %v3292 = vpop.permute.xlu0 %3291
      %3293 = vrot.lane.b32.xlu0 %v2600, 80
      %v3294 = vpop.permute.xlu0 %3293
      %3295 = vrot.lane.b32.xlu0 %v2601, 80
      %v3296 = vpop.permute.xlu0 %3295
      %3297 = vrot.lane.b32.xlu0 %v2602, 80
      %v3298 = vpop.permute.xlu0 %3297
      %3299 = vrot.lane.b32.xlu0 %v2603, 80
      %v3300 = vpop.permute.xlu0 %3299
      %3301 = vrot.lane.b32.xlu0 %v2604, 80
      %v3302 = vpop.permute.xlu0 %3301
      %3303 = vrot.lane.b32.xlu0 %v2605, 80
      %v3304 = vpop.permute.xlu0 %3303
      %3305 = vrot.lane.b32.xlu0 %v2606, 80
      %v3306 = vpop.permute.xlu0 %3305
      %3307 = vrot.lane.b32.xlu0 %v2607, 80
      %v3308 = vpop.permute.xlu0 %3307
      %3309 = vrot.lane.b32.xlu0 %v2608, 80
      %v3310 = vpop.permute.xlu0 %3309
      %3311 = vrot.lane.b32.xlu0 %v2609, 80
      %v3312 = vpop.permute.xlu0 %3311
      %3313 = vrot.lane.b32.xlu0 %v2610, 80
      %v3314 = vpop.permute.xlu0 %3313
      %3379 = vrot.lane.b32.xlu0 %v2611, 96
      %v3380 = vpop.permute.xlu0 %3379
      %3381 = vrot.lane.b32.xlu0 %v2612, 96
      %v3382 = vpop.permute.xlu0 %3381
      %3383 = vrot.lane.b32.xlu0 %v2613, 96
      %v3384 = vpop.permute.xlu0 %3383
      %3385 = vrot.lane.b32.xlu0 %v2614, 96
      %v3386 = vpop.permute.xlu0 %3385
      %3387 = vrot.lane.b32.xlu0 %v2615, 96
      %v3388 = vpop.permute.xlu0 %3387
      %3389 = vrot.lane.b32.xlu0 %v2616, 96
      %v3390 = vpop.permute.xlu0 %3389
      %3391 = vrot.lane.b32.xlu0 %v2617, 96
      %v3392 = vpop.permute.xlu0 %3391
      %3393 = vrot.lane.b32.xlu0 %v2618, 96
      %v3394 = vpop.permute.xlu0 %3393
      %3395 = vrot.lane.b32.xlu0 %v2619, 96
      %v3396 = vpop.permute.xlu0 %3395
      %3397 = vrot.lane.b32.xlu0 %v2620, 96
      %v3398 = vpop.permute.xlu0 %3397
      %3399 = vrot.lane.b32.xlu0 %v2621, 96
      %v3400 = vpop.permute.xlu0 %3399
      %3401 = vrot.lane.b32.xlu0 %v2622, 96
      %v3402 = vpop.permute.xlu0 %3401
      %3403 = vrot.lane.b32.xlu0 %v2623, 96
      %v3404 = vpop.permute.xlu0 %3403
      %3405 = vrot.lane.b32.xlu0 %v2624, 96
      %v3406 = vpop.permute.xlu0 %3405
      %3407 = vrot.lane.b32.xlu0 %v2625, 96
      %v3408 = vpop.permute.xlu0 %3407
      %3409 = vrot.lane.b32.xlu0 %v2626, 96
      %v3410 = vpop.permute.xlu0 %3409
      %3411 = vrot.lane.b32.xlu0 %v2627, 96
      %v3412 = vpop.permute.xlu0 %3411
      %3413 = vrot.lane.b32.xlu0 %v2628, 96
      %v3414 = vpop.permute.xlu0 %3413
      %3415 = vrot.lane.b32.xlu0 %v2629, 96
      %v3416 = vpop.permute.xlu0 %3415
      %3417 = vrot.lane.b32.xlu0 %v2630, 96
      %v3418 = vpop.permute.xlu0 %3417
      %3419 = vrot.lane.b32.xlu0 %v2631, 96
      %v3420 = vpop.permute.xlu0 %3419
      %3421 = vrot.lane.b32.xlu0 %v2632, 96
      %v3422 = vpop.permute.xlu0 %3421
      %3423 = vrot.lane.b32.xlu0 %v2633, 96
      %v3424 = vpop.permute.xlu0 %3423
      %3425 = vrot.lane.b32.xlu0 %v2634, 96
      %v3426 = vpop.permute.xlu0 %3425
      %3427 = vrot.lane.b32.xlu0 %v2635, 96
      %v3428 = vpop.permute.xlu0 %3427
      %3429 = vrot.lane.b32.xlu0 %v2636, 96
      %v3430 = vpop.permute.xlu0 %3429
      %3431 = vrot.lane.b32.xlu0 %v2637, 96
      %v3432 = vpop.permute.xlu0 %3431
      %3433 = vrot.lane.b32.xlu0 %v2638, 96
      %v3434 = vpop.permute.xlu0 %3433
      %3435 = vrot.lane.b32.xlu0 %v2639, 96
      %v3436 = vpop.permute.xlu0 %3435
      %3437 = vrot.lane.b32.xlu0 %v2640, 96
      %v3438 = vpop.permute.xlu0 %3437
      %3439 = vrot.lane.b32.xlu0 %v2641, 96
      %v3440 = vpop.permute.xlu0 %3439
      %3441 = vrot.lane.b32.xlu0 %v2642, 96
      %v3442 = vpop.permute.xlu0 %3441
      %3507 = vrot.lane.b32.xlu0 %v2643, 112
      %v3508 = vpop.permute.xlu0 %3507
      %3509 = vrot.lane.b32.xlu0 %v2644, 112
      %v3510 = vpop.permute.xlu0 %3509
      %3511 = vrot.lane.b32.xlu0 %v2645, 112
      %v3512 = vpop.permute.xlu0 %3511
      %3513 = vrot.lane.b32.xlu0 %v2646, 112
      %v3514 = vpop.permute.xlu0 %3513
      %3515 = vrot.lane.b32.xlu0 %v2647, 112
      %v3516 = vpop.permute.xlu0 %3515
      %3517 = vrot.lane.b32.xlu0 %v2648, 112
      %v3518 = vpop.permute.xlu0 %3517
      %3519 = vrot.lane.b32.xlu0 %v2649, 112
      %v3520 = vpop.permute.xlu0 %3519
      %3521 = vrot.lane.b32.xlu0 %v2650, 112
      %v3522 = vpop.permute.xlu0 %3521
      %3523 = vrot.lane.b32.xlu0 %v2651, 112
      %v3524 = vpop.permute.xlu0 %3523
      %3525 = vrot.lane.b32.xlu0 %v2652, 112
      %v3526 = vpop.permute.xlu0 %3525
      %3527 = vrot.lane.b32.xlu0 %v2653, 112
      %v3528 = vpop.permute.xlu0 %3527
      %3529 = vrot.lane.b32.xlu0 %v2654, 112
      %v3530 = vpop.permute.xlu0 %3529
      %3531 = vrot.lane.b32.xlu0 %v2655, 112
      %v3532 = vpop.permute.xlu0 %3531
      %3533 = vrot.lane.b32.xlu0 %v2656, 112
      %v3534 = vpop.permute.xlu0 %3533
      %3535 = vrot.lane.b32.xlu0 %v2657, 112
      %v3536 = vpop.permute.xlu0 %3535
      %3537 = vrot.lane.b32.xlu0 %v2658, 112
      %v3538 = vpop.permute.xlu0 %3537
      %3539 = vrot.lane.b32.xlu0 %v2659, 112
      %v3540 = vpop.permute.xlu0 %3539
      %3541 = vrot.lane.b32.xlu0 %v2660, 112
      %v3542 = vpop.permute.xlu0 %3541
      %3543 = vrot.lane.b32.xlu0 %v2661, 112
      %v3544 = vpop.permute.xlu0 %3543
      %3545 = vrot.lane.b32.xlu0 %v2662, 112
      %v3546 = vpop.permute.xlu0 %3545
      %3547 = vrot.lane.b32.xlu0 %v2663, 112
      %v3548 = vpop.permute.xlu0 %3547
      %3549 = vrot.lane.b32.xlu0 %v2664, 112
      %v3550 = vpop.permute.xlu0 %3549
      %3551 = vrot.lane.b32.xlu0 %v2665, 112
      %v3552 = vpop.permute.xlu0 %3551
      %3553 = vrot.lane.b32.xlu0 %v2666, 112
      %v3554 = vpop.permute.xlu0 %3553
      %3555 = vrot.lane.b32.xlu0 %v2667, 112
      %v3556 = vpop.permute.xlu0 %3555
      %3557 = vrot.lane.b32.xlu0 %v2668, 112
      %v3558 = vpop.permute.xlu0 %3557
      %3559 = vrot.lane.b32.xlu0 %v2669, 112
      %v3560 = vpop.permute.xlu0 %3559
      %3561 = vrot.lane.b32.xlu0 %v2670, 112
      %v3562 = vpop.permute.xlu0 %3561
      %3563 = vrot.lane.b32.xlu0 %v2671, 112
      %v3564 = vpop.permute.xlu0 %3563
      %3565 = vrot.lane.b32.xlu0 %v2672, 112
      %v3566 = vpop.permute.xlu0 %3565
      %3567 = vrot.lane.b32.xlu0 %v2673, 112
      %v3568 = vpop.permute.xlu0 %3567
      %3569 = vrot.lane.b32.xlu0 %v2674, 112
      %v3570 = vpop.permute.xlu0 %3569
      %v3603 = vsel %vm443, %v2419, %v2740
      %v3604 = vsel %vm443, %v2420, %v2742
      %v3605 = vsel %vm443, %v2421, %v2744
      %v3606 = vsel %vm443, %v2422, %v2746
      %v3607 = vsel %vm443, %v2423, %v2748
      %v3608 = vsel %vm443, %v2424, %v2750
      %v3609 = vsel %vm443, %v2425, %v2752
      %v3610 = vsel %vm443, %v2426, %v2754
      %v3611 = vsel %vm443, %v2427, %v2756
      %v3612 = vsel %vm443, %v2428, %v2758
      %v3613 = vsel %vm443, %v2429, %v2760
      %v3614 = vsel %vm443, %v2430, %v2762
      %v3615 = vsel %vm443, %v2431, %v2764
      %v3616 = vsel %vm443, %v2432, %v2766
      %v3617 = vsel %vm443, %v2433, %v2768
      %v3618 = vsel %vm443, %v2434, %v2770
      %v3619 = vsel %vm443, %v2435, %v2772
      %v3620 = vsel %vm443, %v2436, %v2774
      %v3621 = vsel %vm443, %v2437, %v2776
      %v3622 = vsel %vm443, %v2438, %v2778
      %v3623 = vsel %vm443, %v2439, %v2780
      %v3624 = vsel %vm443, %v2440, %v2782
      %v3625 = vsel %vm443, %v2441, %v2784
      %v3626 = vsel %vm443, %v2442, %v2786
      %v3627 = vsel %vm443, %v2443, %v2788
      %v3628 = vsel %vm443, %v2444, %v2790
      %v3629 = vsel %vm443, %v2445, %v2792
      %v3630 = vsel %vm443, %v2446, %v2794
      %v3631 = vsel %vm443, %v2447, %v2796
      %v3632 = vsel %vm443, %v2448, %v2798
      %v3633 = vsel %vm443, %v2449, %v2800
      %v3634 = vsel %vm443, %v2450, %v2802
      %v3635 = vsel %vm1781, %v3603, %v2868
      %v3636 = vsel %vm1781, %v3604, %v2870
      %v3637 = vsel %vm1781, %v3605, %v2872
      %v3638 = vsel %vm1781, %v3606, %v2874
      %v3639 = vsel %vm1781, %v3607, %v2876
      %v3640 = vsel %vm1781, %v3608, %v2878
      %v3641 = vsel %vm1781, %v3609, %v2880
      %v3642 = vsel %vm1781, %v3610, %v2882
      %v3643 = vsel %vm1781, %v3611, %v2884
      %v3644 = vsel %vm1781, %v3612, %v2886
      %v3645 = vsel %vm1781, %v3613, %v2888
      %v3646 = vsel %vm1781, %v3614, %v2890
      %v3647 = vsel %vm1781, %v3615, %v2892
      %v3648 = vsel %vm1781, %v3616, %v2894
      %v3649 = vsel %vm1781, %v3617, %v2896
      %v3650 = vsel %vm1781, %v3618, %v2898
      %v3651 = vsel %vm1781, %v3619, %v2900
      %v3652 = vsel %vm1781, %v3620, %v2902
      %v3653 = vsel %vm1781, %v3621, %v2904
      %v3654 = vsel %vm1781, %v3622, %v2906
      %v3655 = vsel %vm1781, %v3623, %v2908
      %v3656 = vsel %vm1781, %v3624, %v2910
      %v3657 = vsel %vm1781, %v3625, %v2912
      %v3658 = vsel %vm1781, %v3626, %v2914
      %v3659 = vsel %vm1781, %v3627, %v2916
      %v3660 = vsel %vm1781, %v3628, %v2918
      %v3661 = vsel %vm1781, %v3629, %v2920
      %v3662 = vsel %vm1781, %v3630, %v2922
      %v3663 = vsel %vm1781, %v3631, %v2924
      %v3664 = vsel %vm1781, %v3632, %v2926
      %v3665 = vsel %vm1781, %v3633, %v2928
      %v3666 = vsel %vm1781, %v3634, %v2930
      %v3667 = vsel %vm1814, %v3635, %v2996
      %v3668 = vsel %vm1814, %v3636, %v2998
      %v3669 = vsel %vm1814, %v3637, %v3000
      %v3670 = vsel %vm1814, %v3638, %v3002
      %v3671 = vsel %vm1814, %v3639, %v3004
      %v3672 = vsel %vm1814, %v3640, %v3006
      %v3673 = vsel %vm1814, %v3641, %v3008
      %v3674 = vsel %vm1814, %v3642, %v3010
      %v3675 = vsel %vm1814, %v3643, %v3012
      %v3676 = vsel %vm1814, %v3644, %v3014
      %v3677 = vsel %vm1814, %v3645, %v3016
      %v3678 = vsel %vm1814, %v3646, %v3018
      %v3679 = vsel %vm1814, %v3647, %v3020
      %v3680 = vsel %vm1814, %v3648, %v3022
      %v3681 = vsel %vm1814, %v3649, %v3024
      %v3682 = vsel %vm1814, %v3650, %v3026
      %v3683 = vsel %vm1814, %v3651, %v3028
      %v3684 = vsel %vm1814, %v3652, %v3030
      %v3685 = vsel %vm1814, %v3653, %v3032
      %v3686 = vsel %vm1814, %v3654, %v3034
      %v3687 = vsel %vm1814, %v3655, %v3036
      %v3688 = vsel %vm1814, %v3656, %v3038
      %v3689 = vsel %vm1814, %v3657, %v3040
      %v3690 = vsel %vm1814, %v3658, %v3042
      %v3691 = vsel %vm1814, %v3659, %v3044
      %v3692 = vsel %vm1814, %v3660, %v3046
      %v3693 = vsel %vm1814, %v3661, %v3048
      %v3694 = vsel %vm1814, %v3662, %v3050
      %v3695 = vsel %vm1814, %v3663, %v3052
      %v3696 = vsel %vm1814, %v3664, %v3054
      %v3697 = vsel %vm1814, %v3665, %v3056
      %v3698 = vsel %vm1814, %v3666, %v3058
      %v3699 = vsel %vm1847, %v3667, %v3124
      %v3700 = vsel %vm1847, %v3668, %v3126
      %v3701 = vsel %vm1847, %v3669, %v3128
      %v3702 = vsel %vm1847, %v3670, %v3130
      %v3703 = vsel %vm1847, %v3671, %v3132
      %v3704 = vsel %vm1847, %v3672, %v3134
      %v3705 = vsel %vm1847, %v3673, %v3136
      %v3706 = vsel %vm1847, %v3674, %v3138
      %v3707 = vsel %vm1847, %v3675, %v3140
      %v3708 = vsel %vm1847, %v3676, %v3142
      %v3709 = vsel %vm1847, %v3677, %v3144
      %v3710 = vsel %vm1847, %v3678, %v3146
      %v3711 = vsel %vm1847, %v3679, %v3148
      %v3712 = vsel %vm1847, %v3680, %v3150
      %v3713 = vsel %vm1847, %v3681, %v3152
      %v3714 = vsel %vm1847, %v3682, %v3154
      %v3715 = vsel %vm1847, %v3683, %v3156
      %v3716 = vsel %vm1847, %v3684, %v3158
      %v3717 = vsel %vm1847, %v3685, %v3160
      %v3718 = vsel %vm1847, %v3686, %v3162
      %v3719 = vsel %vm1847, %v3687, %v3164
      %v3720 = vsel %vm1847, %v3688, %v3166
      %v3721 = vsel %vm1847, %v3689, %v3168
      %v3722 = vsel %vm1847, %v3690, %v3170
      %v3723 = vsel %vm1847, %v3691, %v3172
      %v3724 = vsel %vm1847, %v3692, %v3174
      %v3725 = vsel %vm1847, %v3693, %v3176
      %v3726 = vsel %vm1847, %v3694, %v3178
      %v3727 = vsel %vm1847, %v3695, %v3180
      %v3728 = vsel %vm1847, %v3696, %v3182
      %v3729 = vsel %vm1847, %v3697, %v3184
      %v3730 = vsel %vm1847, %v3698, %v3186
      %v3731 = vsel %vm1880, %v3699, %v3252
      %v3732 = vsel %vm1880, %v3700, %v3254
      %v3733 = vsel %vm1880, %v3701, %v3256
      %v3734 = vsel %vm1880, %v3702, %v3258
      %v3735 = vsel %vm1880, %v3703, %v3260
      %v3736 = vsel %vm1880, %v3704, %v3262
      %v3737 = vsel %vm1880, %v3705, %v3264
      %v3738 = vsel %vm1880, %v3706, %v3266
      %v3739 = vsel %vm1880, %v3707, %v3268
      %v3740 = vsel %vm1880, %v3708, %v3270
      %v3741 = vsel %vm1880, %v3709, %v3272
      %v3742 = vsel %vm1880, %v3710, %v3274
      %v3743 = vsel %vm1880, %v3711, %v3276
      %v3744 = vsel %vm1880, %v3712, %v3278
      %v3745 = vsel %vm1880, %v3713, %v3280
      %v3746 = vsel %vm1880, %v3714, %v3282
      %v3747 = vsel %vm1880, %v3715, %v3284
      %v3748 = vsel %vm1880, %v3716, %v3286
      %v3749 = vsel %vm1880, %v3717, %v3288
      %v3750 = vsel %vm1880, %v3718, %v3290
      %v3751 = vsel %vm1880, %v3719, %v3292
      %v3752 = vsel %vm1880, %v3720, %v3294
      %v3753 = vsel %vm1880, %v3721, %v3296
      %v3754 = vsel %vm1880, %v3722, %v3298
      %v3755 = vsel %vm1880, %v3723, %v3300
      %v3756 = vsel %vm1880, %v3724, %v3302
      %v3757 = vsel %vm1880, %v3725, %v3304
      %v3758 = vsel %vm1880, %v3726, %v3306
      %v3759 = vsel %vm1880, %v3727, %v3308
      %v3760 = vsel %vm1880, %v3728, %v3310
      %v3761 = vsel %vm1880, %v3729, %v3312
      %v3762 = vsel %vm1880, %v3730, %v3314
      %v3763 = vsel %vm1913, %v3731, %v3380
      %v3764 = vsel %vm1913, %v3732, %v3382
      %v3765 = vsel %vm1913, %v3733, %v3384
      %v3766 = vsel %vm1913, %v3734, %v3386
      %v3767 = vsel %vm1913, %v3735, %v3388
      %v3768 = vsel %vm1913, %v3736, %v3390
      %v3769 = vsel %vm1913, %v3737, %v3392
      %v3770 = vsel %vm1913, %v3738, %v3394
      %v3771 = vsel %vm1913, %v3739, %v3396
      %v3772 = vsel %vm1913, %v3740, %v3398
      %v3773 = vsel %vm1913, %v3741, %v3400
      %v3774 = vsel %vm1913, %v3742, %v3402
      %v3775 = vsel %vm1913, %v3743, %v3404
      %v3776 = vsel %vm1913, %v3744, %v3406
      %v3777 = vsel %vm1913, %v3745, %v3408
      %v3778 = vsel %vm1913, %v3746, %v3410
      %v3779 = vsel %vm1913, %v3747, %v3412
      %v3780 = vsel %vm1913, %v3748, %v3414
      %v3781 = vsel %vm1913, %v3749, %v3416
      %v3782 = vsel %vm1913, %v3750, %v3418
      %v3783 = vsel %vm1913, %v3751, %v3420
      %v3784 = vsel %vm1913, %v3752, %v3422
      %v3785 = vsel %vm1913, %v3753, %v3424
      %v3786 = vsel %vm1913, %v3754, %v3426
      %v3787 = vsel %vm1913, %v3755, %v3428
      %v3788 = vsel %vm1913, %v3756, %v3430
      %v3789 = vsel %vm1913, %v3757, %v3432
      %v3790 = vsel %vm1913, %v3758, %v3434
      %v3791 = vsel %vm1913, %v3759, %v3436
      %v3792 = vsel %vm1913, %v3760, %v3438
      %v3793 = vsel %vm1913, %v3761, %v3440
      %v3794 = vsel %vm1913, %v3762, %v3442
      %v3795 = vsel %vm1946, %v3763, %v3508
      %v3796 = vsel %vm1946, %v3764, %v3510
      %v3797 = vsel %vm1946, %v3765, %v3512
      %v3798 = vsel %vm1946, %v3766, %v3514
      %v3799 = vsel %vm1946, %v3767, %v3516
      %v3800 = vsel %vm1946, %v3768, %v3518
      %v3801 = vsel %vm1946, %v3769, %v3520
      %v3802 = vsel %vm1946, %v3770, %v3522
      %v3803 = vsel %vm1946, %v3771, %v3524
      %v3804 = vsel %vm1946, %v3772, %v3526
      %v3805 = vsel %vm1946, %v3773, %v3528
      %v3806 = vsel %vm1946, %v3774, %v3530
      %v3807 = vsel %vm1946, %v3775, %v3532
      %v3808 = vsel %vm1946, %v3776, %v3534
      %v3809 = vsel %vm1946, %v3777, %v3536
      %v3810 = vsel %vm1946, %v3778, %v3538
      %v3811 = vsel %vm1946, %v3779, %v3540
      %v3812 = vsel %vm1946, %v3780, %v3542
      %v3813 = vsel %vm1946, %v3781, %v3544
      %v3814 = vsel %vm1946, %v3782, %v3546
      %v3815 = vsel %vm1946, %v3783, %v3548
      %v3816 = vsel %vm1946, %v3784, %v3550
      %v3817 = vsel %vm1946, %v3785, %v3552
      %v3818 = vsel %vm1946, %v3786, %v3554
      %v3819 = vsel %vm1946, %v3787, %v3556
      %v3820 = vsel %vm1946, %v3788, %v3558
      %v3821 = vsel %vm1946, %v3789, %v3560
      %v3822 = vsel %vm1946, %v3790, %v3562
      %v3823 = vsel %vm1946, %v3791, %v3564
      %v3824 = vsel %vm1946, %v3792, %v3566
      %v3825 = vsel %vm1946, %v3793, %v3568
      %v3826 = vsel %vm1946, %v3794, %v3570
      %v3827 = vld [vmem:[%s3] sm:$0xff]
      %v3828 = vld [vmem:[%s3 + $0x8] sm:$0xff]
      %v3829 = vld [vmem:[%s3 + $0x10] sm:$0xff]
      %v3830 = vld [vmem:[%s3 + $0x18] sm:$0xff]
      %v3831 = vld [vmem:[%s3 + $0x20] sm:$0xff]
      %v3832 = vld [vmem:[%s3 + $0x28] sm:$0xff]
      %v3833 = vld [vmem:[%s3 + $0x30] sm:$0xff]
      %v3834 = vld [vmem:[%s3 + $0x38] sm:$0xff]
      %v3835 = vld [vmem:[%s3 + $0x40] sm:$0xff]
      %v3836 = vld [vmem:[%s3 + $0x48] sm:$0xff]
      %v3837 = vld [vmem:[%s3 + $0x50] sm:$0xff]
      %v3838 = vld [vmem:[%s3 + $0x58] sm:$0xff]
      %v3839 = vld [vmem:[%s3 + $0x60] sm:$0xff]
      %v3840 = vld [vmem:[%s3 + $0x68] sm:$0xff]
      %v3841 = vld [vmem:[%s3 + $0x70] sm:$0xff]
      %v3842 = vld [vmem:[%s3 + $0x78] sm:$0xff]
      %v3843 = vld [vmem:[%s3 + $0x80] sm:$0xff]
      %v3844 = vld [vmem:[%s3 + $0x88] sm:$0xff]
      %v3845 = vld [vmem:[%s4] sm:$0x1]
      %v3847 = vperm.slane %v3845, 0
      %v3850 = vsel %vm443, %v2675, 0
      %v3853 = vsel %vm443, %v2676, 0
      %v3856 = vsel %vm443, %v2677, 0
      %v3859 = vsel %vm443, %v2678, 0
      %v3862 = vsel %vm443, %v2679, 0
      %v3865 = vsel %vm443, %v2680, 0
      %v3868 = vsel %vm443, %v2681, 0
      %v3871 = vsel %vm443, %v2682, 0
      %v3874 = vsel %vm443, %v2683, 0
      %v3877 = vsel %vm443, %v2684, 0
      %v3880 = vsel %vm443, %v2685, 0
      %v3883 = vsel %vm443, %v2686, 0
      %v3886 = vsel %vm443, %v2687, 0
      %v3889 = vsel %vm443, %v2688, 0
      %v3892 = vsel %vm443, %v2689, 0
      %v3895 = vsel %vm443, %v2690, 0
      %v3898 = vsel %vm443, %v2691, 0
      %v3901 = vsel %vm443, %v2692, 0
      %v3904 = vsel %vm443, %v2693, 0
      %v3907 = vsel %vm443, %v2694, 0
      %v3910 = vsel %vm443, %v2695, 0
      %v3913 = vsel %vm443, %v2696, 0
      %v3916 = vsel %vm443, %v2697, 0
      %v3919 = vsel %vm443, %v2698, 0
      %v3922 = vsel %vm443, %v2699, 0
      %v3925 = vsel %vm443, %v2700, 0
      %v3928 = vsel %vm443, %v2701, 0
      %v3931 = vsel %vm443, %v2702, 0
      %v3934 = vsel %vm443, %v2703, 0
      %v3937 = vsel %vm443, %v2704, 0
      %v3940 = vsel %vm443, %v2705, 0
      %v3943 = vsel %vm443, %v2706, 0
      %3945 = vmatpush.msra.mxu0 %v3842
      %3946 = vmatpush.msra.mxu0 %v3841
      %3947 = vmatpush.msra.mxu0 %v3840
      %3948 = vmatpush.msra.mxu0 %v3839
      %3949 = vmatpush.msra.mxu0 %v3838
      %3950 = vmatpush.msra.mxu0 %v3837
      %3951 = vmatpush.msra.mxu0 %v3836
      %3952 = vmatpush.msra.mxu0 %v3835
      %3953 = vmatpush.msra.mxu0 %v3834
      %3954 = vmatpush.msra.mxu0 %v3833
      %3955 = vmatpush.msra.mxu0 %v3832
      %3956 = vmatpush.msra.mxu0 %v3831
      %3957 = vmatpush.msra.mxu0 %v3830
      %3958 = vmatpush.msra.mxu0 %v3829
      %3959 = vmatpush.msra.mxu0 %v3828
      %3960 = vmatpush.msra.mxu0 %v3827
      %3961 = vmatmul.f32.gmra.mxu0 %v3795
      %v3962 = vpop.f32.mrf.mxu0
      %v3963 = vadd.f32 %v3847, %v3962
      %3964 = vmatmul.f32.gmra.mxu0 %v3796
      %v3965 = vpop.f32.mrf.mxu0
      %v3966 = vadd.f32 %v3847, %v3965
      %3967 = vmatmul.f32.gmra.mxu0 %v3797
      %v3968 = vpop.f32.mrf.mxu0
      %v3969 = vadd.f32 %v3847, %v3968
      %3970 = vmatmul.f32.gmra.mxu0 %v3798
      %v3971 = vpop.f32.mrf.mxu0
      %v3972 = vadd.f32 %v3847, %v3971
      %3973 = vmatmul.f32.gmra.mxu0 %v3799
      %v3974 = vpop.f32.mrf.mxu0
      %v3975 = vadd.f32 %v3847, %v3974
      %3976 = vmatmul.f32.gmra.mxu0 %v3800
      %v3977 = vpop.f32.mrf.mxu0
      %v3978 = vadd.f32 %v3847, %v3977
      %3979 = vmatmul.f32.gmra.mxu0 %v3801
      %v3980 = vpop.f32.mrf.mxu0
      %v3981 = vadd.f32 %v3847, %v3980
      %3982 = vmatmul.f32.gmra.mxu0 %v3802
      %v3983 = vpop.f32.mrf.mxu0
      %v3984 = vadd.f32 %v3847, %v3983
      %3985 = vmatmul.f32.gmra.mxu0 %v3803
      %v3986 = vpop.f32.mrf.mxu0
      %v3987 = vadd.f32 %v3847, %v3986
      %3988 = vmatmul.f32.gmra.mxu0 %v3804
      %v3989 = vpop.f32.mrf.mxu0
      %v3990 = vadd.f32 %v3847, %v3989
      %3991 = vmatmul.f32.gmra.mxu0 %v3805
      %v3992 = vpop.f32.mrf.mxu0
      %v3993 = vadd.f32 %v3847, %v3992
      %3994 = vmatmul.f32.gmra.mxu0 %v3806
      %v3995 = vpop.f32.mrf.mxu0
      %v3996 = vadd.f32 %v3847, %v3995
      %3997 = vmatmul.f32.gmra.mxu0 %v3807
      %v3998 = vpop.f32.mrf.mxu0
      %v3999 = vadd.f32 %v3847, %v3998
      %4000 = vmatmul.f32.gmra.mxu0 %v3808
      %v4001 = vpop.f32.mrf.mxu0
      %v4002 = vadd.f32 %v3847, %v4001
      %4003 = vmatmul.f32.gmra.mxu0 %v3809
      %v4004 = vpop.f32.mrf.mxu0
      %v4005 = vadd.f32 %v3847, %v4004
      %4006 = vmatmul.f32.gmra.mxu0 %v3810
      %v4007 = vpop.f32.mrf.mxu0
      %v4008 = vadd.f32 %v3847, %v4007
      %4009 = vmatmul.f32.gmra.mxu0 %v3811
      %v4010 = vpop.f32.mrf.mxu0
      %v4011 = vadd.f32 %v3847, %v4010
      %4012 = vmatmul.f32.gmra.mxu0 %v3812
      %v4013 = vpop.f32.mrf.mxu0
      %v4014 = vadd.f32 %v3847, %v4013
      %4015 = vmatmul.f32.gmra.mxu0 %v3813
      %v4016 = vpop.f32.mrf.mxu0
      %v4017 = vadd.f32 %v3847, %v4016
      %4018 = vmatmul.f32.gmra.mxu0 %v3814
      %v4019 = vpop.f32.mrf.mxu0
      %v4020 = vadd.f32 %v3847, %v4019
      %4021 = vmatmul.f32.gmra.mxu0 %v3815
      %v4022 = vpop.f32.mrf.mxu0
      %v4023 = vadd.f32 %v3847, %v4022
      %4024 = vmatmul.f32.gmra.mxu0 %v3816
      %v4025 = vpop.f32.mrf.mxu0
      %v4026 = vadd.f32 %v3847, %v4025
      %4027 = vmatmul.f32.gmra.mxu0 %v3817
      %v4028 = vpop.f32.mrf.mxu0
      %v4029 = vadd.f32 %v3847, %v4028
      %4030 = vmatmul.f32.gmra.mxu0 %v3818
      %v4031 = vpop.f32.mrf.mxu0
      %v4032 = vadd.f32 %v3847, %v4031
      %4033 = vmatmul.f32.gmra.mxu0 %v3819
      %v4034 = vpop.f32.mrf.mxu0
      %v4035 = vadd.f32 %v3847, %v4034
      %4036 = vmatmul.f32.gmra.mxu0 %v3820
      %v4037 = vpop.f32.mrf.mxu0
      %v4038 = vadd.f32 %v3847, %v4037
      %4039 = vmatmul.f32.gmra.mxu0 %v3821
      %v4040 = vpop.f32.mrf.mxu0
      %v4041 = vadd.f32 %v3847, %v4040
      %4042 = vmatmul.f32.gmra.mxu0 %v3822
      %v4043 = vpop.f32.mrf.mxu0
      %v4044 = vadd.f32 %v3847, %v4043
      %4045 = vmatmul.f32.gmra.mxu0 %v3823
      %v4046 = vpop.f32.mrf.mxu0
      %v4047 = vadd.f32 %v3847, %v4046
      %4048 = vmatmul.f32.gmra.mxu0 %v3824
      %v4049 = vpop.f32.mrf.mxu0
      %v4050 = vadd.f32 %v3847, %v4049
      %4051 = vmatmul.f32.gmra.mxu0 %v3825
      %v4052 = vpop.f32.mrf.mxu0
      %v4053 = vadd.f32 %v3847, %v4052
      %4054 = vmatmul.f32.gmra.mxu0 %v3826
      %v4055 = vpop.f32.mrf.mxu0
      %v4056 = vadd.f32 %v3847, %v4055
      %4057 = vdwg.mxu0
      %4058 = vmatpush.msra.mxu0 0.0
      %4059 = vmatpush.msra.mxu0 0.0
      %4060 = vmatpush.msra.mxu0 0.0
      %4061 = vmatpush.msra.mxu0 0.0
      %4062 = vmatpush.msra.mxu0 0.0
      %4063 = vmatpush.msra.mxu0 0.0
      %4064 = vmatpush.msra.mxu0 0.0
      %4065 = vmatpush.msra.mxu0 0.0
      %4066 = vmatpush.msra.mxu0 0.0
      %4067 = vmatpush.msra.mxu0 0.0
      %4068 = vmatpush.msra.mxu0 0.0
      %4069 = vmatpush.msra.mxu0 0.0
      %4070 = vmatpush.msra.mxu0 0.0
      %4071 = vmatpush.msra.mxu0 0.0
      %4072 = vmatpush.msra.mxu0 %v3844
      %4073 = vmatpush.msra.mxu0 %v3843
      %4074 = vmatmul.f32.gmra.mxu0 %v3850
      %v4075 = vpop.f32.mrf.mxu0
      %v4076 = vadd.f32 %v3963, %v4075
      %4077 = vmatmul.f32.gmra.mxu0 %v3853
      %v4078 = vpop.f32.mrf.mxu0
      %v4079 = vadd.f32 %v3966, %v4078
      %4080 = vmatmul.f32.gmra.mxu0 %v3856
      %v4081 = vpop.f32.mrf.mxu0
      %v4082 = vadd.f32 %v3969, %v4081
      %4083 = vmatmul.f32.gmra.mxu0 %v3859
      %v4084 = vpop.f32.mrf.mxu0
      %v4085 = vadd.f32 %v3972, %v4084
      %4086 = vmatmul.f32.gmra.mxu0 %v3862
      %v4087 = vpop.f32.mrf.mxu0
      %v4088 = vadd.f32 %v3975, %v4087
      %4089 = vmatmul.f32.gmra.mxu0 %v3865
      %v4090 = vpop.f32.mrf.mxu0
      %v4091 = vadd.f32 %v3978, %v4090
      %4092 = vmatmul.f32.gmra.mxu0 %v3868
      %v4093 = vpop.f32.mrf.mxu0
      %v4094 = vadd.f32 %v3981, %v4093
      %4095 = vmatmul.f32.gmra.mxu0 %v3871
      %v4096 = vpop.f32.mrf.mxu0
      %v4097 = vadd.f32 %v3984, %v4096
      %4098 = vmatmul.f32.gmra.mxu0 %v3874
      %v4099 = vpop.f32.mrf.mxu0
      %v4100 = vadd.f32 %v3987, %v4099
      %4101 = vmatmul.f32.gmra.mxu0 %v3877
      %v4102 = vpop.f32.mrf.mxu0
      %v4103 = vadd.f32 %v3990, %v4102
      %4104 = vmatmul.f32.gmra.mxu0 %v3880
      %v4105 = vpop.f32.mrf.mxu0
      %v4106 = vadd.f32 %v3993, %v4105
      %4107 = vmatmul.f32.gmra.mxu0 %v3883
      %v4108 = vpop.f32.mrf.mxu0
      %v4109 = vadd.f32 %v3996, %v4108
      %4110 = vmatmul.f32.gmra.mxu0 %v3886
      %v4111 = vpop.f32.mrf.mxu0
      %v4112 = vadd.f32 %v3999, %v4111
      %4113 = vmatmul.f32.gmra.mxu0 %v3889
      %v4114 = vpop.f32.mrf.mxu0
      %v4115 = vadd.f32 %v4002, %v4114
      %4116 = vmatmul.f32.gmra.mxu0 %v3892
      %v4117 = vpop.f32.mrf.mxu0
      %v4118 = vadd.f32 %v4005, %v4117
      %4119 = vmatmul.f32.gmra.mxu0 %v3895
      %v4120 = vpop.f32.mrf.mxu0
      %v4121 = vadd.f32 %v4008, %v4120
      %4122 = vmatmul.f32.gmra.mxu0 %v3898
      %v4123 = vpop.f32.mrf.mxu0
      %v4124 = vadd.f32 %v4011, %v4123
      %4125 = vmatmul.f32.gmra.mxu0 %v3901
      %v4126 = vpop.f32.mrf.mxu0
      %v4127 = vadd.f32 %v4014, %v4126
      %4128 = vmatmul.f32.gmra.mxu0 %v3904
      %v4129 = vpop.f32.mrf.mxu0
      %v4130 = vadd.f32 %v4017, %v4129
      %4131 = vmatmul.f32.gmra.mxu0 %v3907
      %v4132 = vpop.f32.mrf.mxu0
      %v4133 = vadd.f32 %v4020, %v4132
      %4134 = vmatmul.f32.gmra.mxu0 %v3910
      %v4135 = vpop.f32.mrf.mxu0
      %v4136 = vadd.f32 %v4023, %v4135
      %4137 = vmatmul.f32.gmra.mxu0 %v3913
      %v4138 = vpop.f32.mrf.mxu0
      %v4139 = vadd.f32 %v4026, %v4138
      %4140 = vmatmul.f32.gmra.mxu0 %v3916
      %v4141 = vpop.f32.mrf.mxu0
      %v4142 = vadd.f32 %v4029, %v4141
      %4143 = vmatmul.f32.gmra.mxu0 %v3919
      %v4144 = vpop.f32.mrf.mxu0
      %v4145 = vadd.f32 %v4032, %v4144
      %4146 = vmatmul.f32.gmra.mxu0 %v3922
      %v4147 = vpop.f32.mrf.mxu0
      %v4148 = vadd.f32 %v4035, %v4147
      %4149 = vmatmul.f32.gmra.mxu0 %v3925
      %v4150 = vpop.f32.mrf.mxu0
      %v4151 = vadd.f32 %v4038, %v4150
      %4152 = vmatmul.f32.gmra.mxu0 %v3928
      %v4153 = vpop.f32.mrf.mxu0
      %v4154 = vadd.f32 %v4041, %v4153
      %4155 = vmatmul.f32.gmra.mxu0 %v3931
      %v4156 = vpop.f32.mrf.mxu0
      %v4157 = vadd.f32 %v4044, %v4156
      %4158 = vmatmul.f32.gmra.mxu0 %v3934
      %v4159 = vpop.f32.mrf.mxu0
      %v4160 = vadd.f32 %v4047, %v4159
      %4161 = vmatmul.f32.gmra.mxu0 %v3937
      %v4162 = vpop.f32.mrf.mxu0
      %v4163 = vadd.f32 %v4050, %v4162
      %4164 = vmatmul.f32.gmra.mxu0 %v3940
      %v4165 = vpop.f32.mrf.mxu0
      %v4166 = vadd.f32 %v4053, %v4165
      %4167 = vmatmul.f32.gmra.mxu0 %v3943
      %v4168 = vpop.f32.mrf.mxu0
      %v4169 = vadd.f32 %v4056, %v4168
      %4170 = vdwg.mxu0
      %v4171 = vsel %vm443, %v4076, 0.0
      %v4172 = vsel %vm443, %v4079, 0.0
      %v4173 = vadd.f32 %v4171, %v4172
      %v4174 = vsel %vm443, %v4082, 0.0
      %v4175 = vadd.f32 %v4173, %v4174
      %v4176 = vsel %vm443, %v4085, 0.0
      %v4177 = vadd.f32 %v4175, %v4176
      %v4178 = vsel %vm443, %v4088, 0.0
      %v4179 = vadd.f32 %v4177, %v4178
      %v4180 = vsel %vm443, %v4091, 0.0
      %v4181 = vadd.f32 %v4179, %v4180
      %v4182 = vsel %vm443, %v4094, 0.0
      %v4183 = vadd.f32 %v4181, %v4182
      %v4184 = vsel %vm443, %v4097, 0.0
      %v4185 = vadd.f32 %v4183, %v4184
      %v4186 = vsel %vm443, %v4100, 0.0
      %v4187 = vadd.f32 %v4185, %v4186
      %v4188 = vsel %vm443, %v4103, 0.0
      %v4189 = vadd.f32 %v4187, %v4188
      %v4190 = vsel %vm443, %v4106, 0.0
      %v4191 = vadd.f32 %v4189, %v4190
      %v4192 = vsel %vm443, %v4109, 0.0
      %v4193 = vadd.f32 %v4191, %v4192
      %v4194 = vsel %vm443, %v4112, 0.0
      %v4195 = vadd.f32 %v4193, %v4194
      %v4196 = vsel %vm443, %v4115, 0.0
      %v4197 = vadd.f32 %v4195, %v4196
      %v4198 = vsel %vm443, %v4118, 0.0
      %v4199 = vadd.f32 %v4197, %v4198
      %v4200 = vsel %vm443, %v4121, 0.0
      %v4201 = vadd.f32 %v4199, %v4200
      %v4202 = vsel %vm443, %v4124, 0.0
      %v4203 = vadd.f32 %v4201, %v4202
      %v4204 = vsel %vm443, %v4127, 0.0
      %v4205 = vadd.f32 %v4203, %v4204
      %v4206 = vsel %vm443, %v4130, 0.0
      %v4207 = vadd.f32 %v4205, %v4206
      %v4208 = vsel %vm443, %v4133, 0.0
      %v4209 = vadd.f32 %v4207, %v4208
      %v4210 = vsel %vm443, %v4136, 0.0
      %v4211 = vadd.f32 %v4209, %v4210
      %v4212 = vsel %vm443, %v4139, 0.0
      %v4213 = vadd.f32 %v4211, %v4212
      %v4214 = vsel %vm443, %v4142, 0.0
      %v4215 = vadd.f32 %v4213, %v4214
      %v4216 = vsel %vm443, %v4145, 0.0
      %v4217 = vadd.f32 %v4215, %v4216
      %v4218 = vsel %vm443, %v4148, 0.0
      %v4219 = vadd.f32 %v4217, %v4218
      %v4220 = vsel %vm443, %v4151, 0.0
      %v4221 = vadd.f32 %v4219, %v4220
      %v4222 = vsel %vm443, %v4154, 0.0
      %v4223 = vadd.f32 %v4221, %v4222
      %v4224 = vsel %vm443, %v4157, 0.0
      %v4225 = vadd.f32 %v4223, %v4224
      %v4226 = vsel %vm443, %v4160, 0.0
      %v4227 = vadd.f32 %v4225, %v4226
      %v4228 = vsel %vm443, %v4163, 0.0
      %v4229 = vadd.f32 %v4227, %v4228
      %v4230 = vsel %vm443, %v4166, 0.0
      %v4231 = vadd.f32 %v4229, %v4230
      %v4232 = vsel %vm443, %v4169, 0.0
      %v4233 = vadd.f32 %v4231, %v4232
      %v4234 = vrot.slane %v4233, 4
      %v4235 = vadd.f32 %v4233, %v4234
      %v4236 = vrot.slane %v4235, 2
      %v4237 = vadd.f32 %v4235, %v4236
      %v4238 = vrot.slane %v4237, 1
      %v4239 = vadd.f32 %v4237, %v4238
      %v4240 = vmul.f32 %v4239, 0.00390625
      %v4241 = vld [vmem:[%s5] sm:$0xff]
      %v4242 = vld [vmem:[%s5 + $0x8] sm:$0xff]
      %v4243 = vld [vmem:[%s6] sm:$0x1]
      %v4245 = vsel %vm443, %v4240, 0
      %4247 = vmatpush.msra.mxu0 0.0
      %4248 = vmatpush.msra.mxu0 0.0
      %4249 = vmatpush.msra.mxu0 0.0
      %4250 = vmatpush.msra.mxu0 0.0
      %4251 = vmatpush.msra.mxu0 0.0
      %4252 = vmatpush.msra.mxu0 0.0
      %4253 = vmatpush.msra.mxu0 0.0
      %4254 = vmatpush.msra.mxu0 0.0
      %4255 = vmatpush.msra.mxu0 0.0
      %4256 = vmatpush.msra.mxu0 0.0
      %4257 = vmatpush.msra.mxu0 0.0
      %4258 = vmatpush.msra.mxu0 0.0
      %4259 = vmatpush.msra.mxu0 0.0
      %4260 = vmatpush.msra.mxu0 0.0
      %4261 = vmatpush.msra.mxu0 %v4242
      %4262 = vmatpush.msra.mxu0 %v4241
      %4263 = vmatmul.f32.gmra.mxu0 %v4245
      %v4264 = vpop.f32.mrf.mxu0
      %v4265 = vadd.f32 %v4243, %v4264
      %4266 = vdwg.mxu0
      %v4267 = vmax.f32 %v4265, 0.0
      %v4268 = vld [vmem:[%s7] sm:$0x3]
      %v4269 = vld [vmem:[%s8] sm:$0x1]
      %vm4270 = vcmask 15360
      %v4272 = vsel %vm4270, %v4267, 0
      %vm4274 = vcmask 1041408
      %v4276 = vsel %vm4274, %v4268, 0
      %4278 = vmatpush.msra.mxu0 0.0
      %4279 = vmatpush.msra.mxu0 0.0
      %4280 = vmatpush.msra.mxu0 0.0
      %4281 = vmatpush.msra.mxu0 0.0
      %4282 = vmatpush.msra.mxu0 0.0
      %4283 = vmatpush.msra.mxu0 0.0
      %4284 = vmatpush.msra.mxu0 0.0
      %4285 = vmatpush.msra.mxu0 0.0
      %4286 = vmatpush.msra.mxu0 0.0
      %4287 = vmatpush.msra.mxu0 0.0
      %4288 = vmatpush.msra.mxu0 0.0
      %4289 = vmatpush.msra.mxu0 0.0
      %4290 = vmatpush.msra.mxu0 0.0
      %4291 = vmatpush.msra.mxu0 0.0
      %4292 = vmatpush.msra.mxu0 0.0
      %4293 = vmatpush.msra.mxu0 %v4276
      %4294 = vmatmul.f32.gmra.mxu0 %v4272
      %v4295 = vpop.f32.mrf.mxu0
      %v4296 = vadd.f32 %v4269, %v4295
      %4297 = vdwg.mxu0
      %v4298 = vxor.u32 %v4296, 2147483648
      %v4299 = vmul.f32 %v4298, 1.442695
      %v4300 = vpow.pop %v4299
      %v4301 = vadd.f32 %v4300, 1.0
      %v4302 = vrcp.pop %v4301
      %v4303 = vmul.f32 %v4301, %v4302
      %v4304 = vsub.f32 1.0, %v4303
      %v4305 = vmul.f32 %v4302, %v4304
      %v4306 = vadd.f32 %v4302, %v4305
      %vm4307 = vweird.f32 %v4301
      %vm4308 = vweird.f32 %v4302
      %vm4309 = vmor %vm4307, %vm4308
      %v4310 = vsel %vm4309, %v4302, %v4306
      %v4311 = vand.u32 2147483647, %v4301
      %vm4312 = vcmp.eq.f32.partialorder %v4311, 8.507059e+37
      %v4313 = vand.u32 %v4301, 2147483648
      %v4314 = vor.u32 1.1754944e-38, %v4313
      %v4315 = vsel %vm4312, %v4314, %v4310
      %v4316 = vmul.f32 1.0, %v4315
      %v4317 = vperm.slane %v4316, 0
      %v4318 = vmul.f32 %v4076, %v4317
      %v4319 = vmul.f32 %v4079, %v4317
      %v4320 = vmul.f32 %v4082, %v4317
      %v4321 = vmul.f32 %v4085, %v4317
      %v4322 = vmul.f32 %v4088, %v4317
      %v4323 = vmul.f32 %v4091, %v4317
      %v4324 = vmul.f32 %v4094, %v4317
      %v4325 = vmul.f32 %v4097, %v4317
      %v4326 = vmul.f32 %v4100, %v4317
      %v4327 = vmul.f32 %v4103, %v4317
      %v4328 = vmul.f32 %v4106, %v4317
      %v4329 = vmul.f32 %v4109, %v4317
      %v4330 = vmul.f32 %v4112, %v4317
      %v4331 = vmul.f32 %v4115, %v4317
      %v4332 = vmul.f32 %v4118, %v4317
      %v4333 = vmul.f32 %v4121, %v4317
      %v4334 = vmul.f32 %v4124, %v4317
      %v4335 = vmul.f32 %v4127, %v4317
      %v4336 = vmul.f32 %v4130, %v4317
      %v4337 = vmul.f32 %v4133, %v4317
      %v4338 = vmul.f32 %v4136, %v4317
      %v4339 = vmul.f32 %v4139, %v4317
      %v4340 = vmul.f32 %v4142, %v4317
      %v4341 = vmul.f32 %v4145, %v4317
      %v4342 = vmul.f32 %v4148, %v4317
      %v4343 = vmul.f32 %v4151, %v4317
      %v4344 = vmul.f32 %v4154, %v4317
      %v4345 = vmul.f32 %v4157, %v4317
      %v4346 = vmul.f32 %v4160, %v4317
      %v4347 = vmul.f32 %v4163, %v4317
      %v4348 = vmul.f32 %v4166, %v4317
      %v4349 = vmul.f32 %v4169, %v4317
      %v4350 = vld [vmem:[%s9] sm:$0xff]
      %v4351 = vld [vmem:[%s9 + $0x8] sm:$0xff]
      %v4352 = vld [vmem:[%s10] sm:$0x1]
      %v4354 = vperm.slane %v4352, 0
      %v4357 = vsel %vm443, %v4318, 0
      %v4360 = vsel %vm443, %v4319, 0
      %v4363 = vsel %vm443, %v4320, 0
      %v4366 = vsel %vm443, %v4321, 0
      %v4369 = vsel %vm443, %v4322, 0
      %v4372 = vsel %vm443, %v4323, 0
      %v4375 = vsel %vm443, %v4324, 0
      %v4378 = vsel %vm443, %v4325, 0
      %v4381 = vsel %vm443, %v4326, 0
      %v4384 = vsel %vm443, %v4327, 0
      %v4387 = vsel %vm443, %v4328, 0
      %v4390 = vsel %vm443, %v4329, 0
      %v4393 = vsel %vm443, %v4330, 0
      %v4396 = vsel %vm443, %v4331, 0
      %v4399 = vsel %vm443, %v4332, 0
      %v4402 = vsel %vm443, %v4333, 0
      %v4405 = vsel %vm443, %v4334, 0
      %v4408 = vsel %vm443, %v4335, 0
      %v4411 = vsel %vm443, %v4336, 0
      %v4414 = vsel %vm443, %v4337, 0
      %v4417 = vsel %vm443, %v4338, 0
      %v4420 = vsel %vm443, %v4339, 0
      %v4423 = vsel %vm443, %v4340, 0
      %v4426 = vsel %vm443, %v4341, 0
      %v4429 = vsel %vm443, %v4342, 0
      %v4432 = vsel %vm443, %v4343, 0
      %v4435 = vsel %vm443, %v4344, 0
      %v4438 = vsel %vm443, %v4345, 0
      %v4441 = vsel %vm443, %v4346, 0
      %v4444 = vsel %vm443, %v4347, 0
      %v4447 = vsel %vm443, %v4348, 0
      %v4450 = vsel %vm443, %v4349, 0
      %4452 = vmatpush.msra.mxu0 0.0
      %4453 = vmatpush.msra.mxu0 0.0
      %4454 = vmatpush.msra.mxu0 0.0
      %4455 = vmatpush.msra.mxu0 0.0
      %4456 = vmatpush.msra.mxu0 0.0
      %4457 = vmatpush.msra.mxu0 0.0
      %4458 = vmatpush.msra.mxu0 0.0
      %4459 = vmatpush.msra.mxu0 0.0
      %4460 = vmatpush.msra.mxu0 0.0
      %4461 = vmatpush.msra.mxu0 0.0
      %4462 = vmatpush.msra.mxu0 0.0
      %4463 = vmatpush.msra.mxu0 0.0
      %4464 = vmatpush.msra.mxu0 0.0
      %4465 = vmatpush.msra.mxu0 0.0
      %4466 = vmatpush.msra.mxu0 %v4351
      %4467 = vmatpush.msra.mxu0 %v4350
      %4468 = vmatmul.f32.gmra.mxu0 %v4357
      %v4469 = vpop.f32.mrf.mxu0
      %v4470 = vadd.f32 %v4354, %v4469
      %4471 = vmatmul.f32.gmra.mxu0 %v4360
      %v4472 = vpop.f32.mrf.mxu0
      %v4473 = vadd.f32 %v4354, %v4472
      %4474 = vmatmul.f32.gmra.mxu0 %v4363
      %v4475 = vpop.f32.mrf.mxu0
      %v4476 = vadd.f32 %v4354, %v4475
      %4477 = vmatmul.f32.gmra.mxu0 %v4366
      %v4478 = vpop.f32.mrf.mxu0
      %v4479 = vadd.f32 %v4354, %v4478
      %4480 = vmatmul.f32.gmra.mxu0 %v4369
      %v4481 = vpop.f32.mrf.mxu0
      %v4482 = vadd.f32 %v4354, %v4481
      %4483 = vmatmul.f32.gmra.mxu0 %v4372
      %v4484 = vpop.f32.mrf.mxu0
      %v4485 = vadd.f32 %v4354, %v4484
      %4486 = vmatmul.f32.gmra.mxu0 %v4375
      %v4487 = vpop.f32.mrf.mxu0
      %v4488 = vadd.f32 %v4354, %v4487
      %4489 = vmatmul.f32.gmra.mxu0 %v4378
      %v4490 = vpop.f32.mrf.mxu0
      %v4491 = vadd.f32 %v4354, %v4490
      %4492 = vmatmul.f32.gmra.mxu0 %v4381
      %v4493 = vpop.f32.mrf.mxu0
      %v4494 = vadd.f32 %v4354, %v4493
      %4495 = vmatmul.f32.gmra.mxu0 %v4384
      %v4496 = vpop.f32.mrf.mxu0
      %v4497 = vadd.f32 %v4354, %v4496
      %4498 = vmatmul.f32.gmra.mxu0 %v4387
      %v4499 = vpop.f32.mrf.mxu0
      %v4500 = vadd.f32 %v4354, %v4499
      %4501 = vmatmul.f32.gmra.mxu0 %v4390
      %v4502 = vpop.f32.mrf.mxu0
      %v4503 = vadd.f32 %v4354, %v4502
      %4504 = vmatmul.f32.gmra.mxu0 %v4393
      %v4505 = vpop.f32.mrf.mxu0
      %v4506 = vadd.f32 %v4354, %v4505
      %4507 = vmatmul.f32.gmra.mxu0 %v4396
      %v4508 = vpop.f32.mrf.mxu0
      %v4509 = vadd.f32 %v4354, %v4508
      %4510 = vmatmul.f32.gmra.mxu0 %v4399
      %v4511 = vpop.f32.mrf.mxu0
      %v4512 = vadd.f32 %v4354, %v4511
      %4513 = vmatmul.f32.gmra.mxu0 %v4402
      %v4514 = vpop.f32.mrf.mxu0
      %v4515 = vadd.f32 %v4354, %v4514
      %4516 = vmatmul.f32.gmra.mxu0 %v4405
      %v4517 = vpop.f32.mrf.mxu0
      %v4518 = vadd.f32 %v4354, %v4517
      %4519 = vmatmul.f32.gmra.mxu0 %v4408
      %v4520 = vpop.f32.mrf.mxu0
      %v4521 = vadd.f32 %v4354, %v4520
      %4522 = vmatmul.f32.gmra.mxu0 %v4411
      %v4523 = vpop.f32.mrf.mxu0
      %v4524 = vadd.f32 %v4354, %v4523
      %4525 = vmatmul.f32.gmra.mxu0 %v4414
      %v4526 = vpop.f32.mrf.mxu0
      %v4527 = vadd.f32 %v4354, %v4526
      %4528 = vmatmul.f32.gmra.mxu0 %v4417
      %v4529 = vpop.f32.mrf.mxu0
      %v4530 = vadd.f32 %v4354, %v4529
      %4531 = vmatmul.f32.gmra.mxu0 %v4420
      %v4532 = vpop.f32.mrf.mxu0
      %v4533 = vadd.f32 %v4354, %v4532
      %4534 = vmatmul.f32.gmra.mxu0 %v4423
      %v4535 = vpop.f32.mrf.mxu0
      %v4536 = vadd.f32 %v4354, %v4535
      %4537 = vmatmul.f32.gmra.mxu0 %v4426
      %v4538 = vpop.f32.mrf.mxu0
      %v4539 = vadd.f32 %v4354, %v4538
      %4540 = vmatmul.f32.gmra.mxu0 %v4429
      %v4541 = vpop.f32.mrf.mxu0
      %v4542 = vadd.f32 %v4354, %v4541
      %4543 = vmatmul.f32.gmra.mxu0 %v4432
      %v4544 = vpop.f32.mrf.mxu0
      %v4545 = vadd.f32 %v4354, %v4544
      %4546 = vmatmul.f32.gmra.mxu0 %v4435
      %v4547 = vpop.f32.mrf.mxu0
      %v4548 = vadd.f32 %v4354, %v4547
      %4549 = vmatmul.f32.gmra.mxu0 %v4438
      %v4550 = vpop.f32.mrf.mxu0
      %v4551 = vadd.f32 %v4354, %v4550
      %4552 = vmatmul.f32.gmra.mxu0 %v4441
      %v4553 = vpop.f32.mrf.mxu0
      %v4554 = vadd.f32 %v4354, %v4553
      %4555 = vmatmul.f32.gmra.mxu0 %v4444
      %v4556 = vpop.f32.mrf.mxu0
      %v4557 = vadd.f32 %v4354, %v4556
      %4558 = vmatmul.f32.gmra.mxu0 %v4447
      %v4559 = vpop.f32.mrf.mxu0
      %v4560 = vadd.f32 %v4354, %v4559
      %4561 = vmatmul.f32.gmra.mxu0 %v4450
      %v4562 = vpop.f32.mrf.mxu0
      %v4563 = vadd.f32 %v4354, %v4562
      %4564 = vdwg.mxu0
      %v4565 = vmax.f32 %v4470, 0.0
      %v4566 = vmax.f32 %v4473, 0.0
      %v4567 = vmax.f32 %v4476, 0.0
      %v4568 = vmax.f32 %v4479, 0.0
      %v4569 = vmax.f32 %v4482, 0.0
      %v4570 = vmax.f32 %v4485, 0.0
      %v4571 = vmax.f32 %v4488, 0.0
      %v4572 = vmax.f32 %v4491, 0.0
      %v4573 = vmax.f32 %v4494, 0.0
      %v4574 = vmax.f32 %v4497, 0.0
      %v4575 = vmax.f32 %v4500, 0.0
      %v4576 = vmax.f32 %v4503, 0.0
      %v4577 = vmax.f32 %v4506, 0.0
      %v4578 = vmax.f32 %v4509, 0.0
      %v4579 = vmax.f32 %v4512, 0.0
      %v4580 = vmax.f32 %v4515, 0.0
      %v4581 = vmax.f32 %v4518, 0.0
      %v4582 = vmax.f32 %v4521, 0.0
      %v4583 = vmax.f32 %v4524, 0.0
      %v4584 = vmax.f32 %v4527, 0.0
      %v4585 = vmax.f32 %v4530, 0.0
      %v4586 = vmax.f32 %v4533, 0.0
      %v4587 = vmax.f32 %v4536, 0.0
      %v4588 = vmax.f32 %v4539, 0.0
      %v4589 = vmax.f32 %v4542, 0.0
      %v4590 = vmax.f32 %v4545, 0.0
      %v4591 = vmax.f32 %v4548, 0.0
      %v4592 = vmax.f32 %v4551, 0.0
      %v4593 = vmax.f32 %v4554, 0.0
      %v4594 = vmax.f32 %v4557, 0.0
      %v4595 = vmax.f32 %v4560, 0.0
      %v4596 = vmax.f32 %v4563, 0.0
      %v4597 = vld [vmem:[%s11] sm:$0x1]
      %v4599 = vperm.slane %v4597, 0
      %v4601 = vmul.f32 %v4565, %v4599
      %v4602 = vmul.f32 %v4566, %v4599
      %v4603 = vmul.f32 %v4567, %v4599
      %v4604 = vmul.f32 %v4568, %v4599
      %v4605 = vmul.f32 %v4569, %v4599
      %v4606 = vmul.f32 %v4570, %v4599
      %v4607 = vmul.f32 %v4571, %v4599
      %v4608 = vmul.f32 %v4572, %v4599
      %v4609 = vmul.f32 %v4573, %v4599
      %v4610 = vmul.f32 %v4574, %v4599
      %v4611 = vmul.f32 %v4575, %v4599
      %v4612 = vmul.f32 %v4576, %v4599
      %v4613 = vmul.f32 %v4577, %v4599
      %v4614 = vmul.f32 %v4578, %v4599
      %v4615 = vmul.f32 %v4579, %v4599
      %v4616 = vmul.f32 %v4580, %v4599
      %v4617 = vmul.f32 %v4581, %v4599
      %v4618 = vmul.f32 %v4582, %v4599
      %v4619 = vmul.f32 %v4583, %v4599
      %v4620 = vmul.f32 %v4584, %v4599
      %v4621 = vmul.f32 %v4585, %v4599
      %v4622 = vmul.f32 %v4586, %v4599
      %v4623 = vmul.f32 %v4587, %v4599
      %v4624 = vmul.f32 %v4588, %v4599
      %v4625 = vmul.f32 %v4589, %v4599
      %v4626 = vmul.f32 %v4590, %v4599
      %v4627 = vmul.f32 %v4591, %v4599
      %v4628 = vmul.f32 %v4592, %v4599
      %v4629 = vmul.f32 %v4593, %v4599
      %v4630 = vmul.f32 %v4594, %v4599
      %v4631 = vmul.f32 %v4595, %v4599
      %v4632 = vmul.f32 %v4596, %v4599
      %v4633 = vsel %vm4270, %v4601, 0.0
      %4634 = vadd.xlane.f32.xlu0 %v4633
      %v4635 = vpop.xlane.xlu0 %4634
      %v4636 = vsel %vm4270, %v4602, 0.0
      %4637 = vadd.xlane.f32.xlu0 %v4636
      %v4638 = vpop.xlane.xlu0 %4637
      %v4639 = vsel %vm4270, %v4603, 0.0
      %4640 = vadd.xlane.f32.xlu0 %v4639
      %v4641 = vpop.xlane.xlu0 %4640
      %v4642 = vsel %vm4270, %v4604, 0.0
      %4643 = vadd.xlane.f32.xlu0 %v4642
      %v4644 = vpop.xlane.xlu0 %4643
      %v4645 = vsel %vm4270, %v4605, 0.0
      %4646 = vadd.xlane.f32.xlu0 %v4645
      %v4647 = vpop.xlane.xlu0 %4646
      %v4648 = vsel %vm4270, %v4606, 0.0
      %4649 = vadd.xlane.f32.xlu0 %v4648
      %v4650 = vpop.xlane.xlu0 %4649
      %v4651 = vsel %vm4270, %v4607, 0.0
      %4652 = vadd.xlane.f32.xlu0 %v4651
      %v4653 = vpop.xlane.xlu0 %4652
      %v4654 = vsel %vm4270, %v4608, 0.0
      %4655 = vadd.xlane.f32.xlu0 %v4654
      %v4656 = vpop.xlane.xlu0 %4655
      %v4657 = vsel %vm4270, %v4609, 0.0
      %4658 = vadd.xlane.f32.xlu0 %v4657
      %v4659 = vpop.xlane.xlu0 %4658
      %v4660 = vsel %vm4270, %v4610, 0.0
      %4661 = vadd.xlane.f32.xlu0 %v4660
      %v4662 = vpop.xlane.xlu0 %4661
      %v4663 = vsel %vm4270, %v4611, 0.0
      %4664 = vadd.xlane.f32.xlu0 %v4663
      %v4665 = vpop.xlane.xlu0 %4664
      %v4666 = vsel %vm4270, %v4612, 0.0
      %4667 = vadd.xlane.f32.xlu0 %v4666
      %v4668 = vpop.xlane.xlu0 %4667
      %v4669 = vsel %vm4270, %v4613, 0.0
      %4670 = vadd.xlane.f32.xlu0 %v4669
      %v4671 = vpop.xlane.xlu0 %4670
      %v4672 = vsel %vm4270, %v4614, 0.0
      %4673 = vadd.xlane.f32.xlu0 %v4672
      %v4674 = vpop.xlane.xlu0 %4673
      %v4675 = vsel %vm4270, %v4615, 0.0
      %4676 = vadd.xlane.f32.xlu0 %v4675
      %v4677 = vpop.xlane.xlu0 %4676
      %v4678 = vsel %vm4270, %v4616, 0.0
      %4679 = vadd.xlane.f32.xlu0 %v4678
      %v4680 = vpop.xlane.xlu0 %4679
      %v4681 = vsel %vm4270, %v4617, 0.0
      %4682 = vadd.xlane.f32.xlu0 %v4681
      %v4683 = vpop.xlane.xlu0 %4682
      %v4684 = vsel %vm4270, %v4618, 0.0
      %4685 = vadd.xlane.f32.xlu0 %v4684
      %v4686 = vpop.xlane.xlu0 %4685
      %v4687 = vsel %vm4270, %v4619, 0.0
      %4688 = vadd.xlane.f32.xlu0 %v4687
      %v4689 = vpop.xlane.xlu0 %4688
      %v4690 = vsel %vm4270, %v4620, 0.0
      %4691 = vadd.xlane.f32.xlu0 %v4690
      %v4692 = vpop.xlane.xlu0 %4691
      %v4693 = vsel %vm4270, %v4621, 0.0
      %4694 = vadd.xlane.f32.xlu0 %v4693
      %v4695 = vpop.xlane.xlu0 %4694
      %v4696 = vsel %vm4270, %v4622, 0.0
      %4697 = vadd.xlane.f32.xlu0 %v4696
      %v4698 = vpop.xlane.xlu0 %4697
      %v4699 = vsel %vm4270, %v4623, 0.0
      %4700 = vadd.xlane.f32.xlu0 %v4699
      %v4701 = vpop.xlane.xlu0 %4700
      %v4702 = vsel %vm4270, %v4624, 0.0
      %4703 = vadd.xlane.f32.xlu0 %v4702
      %v4704 = vpop.xlane.xlu0 %4703
      %v4705 = vsel %vm4270, %v4625, 0.0
      %4706 = vadd.xlane.f32.xlu0 %v4705
      %v4707 = vpop.xlane.xlu0 %4706
      %v4708 = vsel %vm4270, %v4626, 0.0
      %4709 = vadd.xlane.f32.xlu0 %v4708
      %v4710 = vpop.xlane.xlu0 %4709
      %v4711 = vsel %vm4270, %v4627, 0.0
      %4712 = vadd.xlane.f32.xlu0 %v4711
      %v4713 = vpop.xlane.xlu0 %4712
      %v4714 = vsel %vm4270, %v4628, 0.0
      %4715 = vadd.xlane.f32.xlu0 %v4714
      %v4716 = vpop.xlane.xlu0 %4715
      %v4717 = vsel %vm4270, %v4629, 0.0
      %4718 = vadd.xlane.f32.xlu0 %v4717
      %v4719 = vpop.xlane.xlu0 %4718
      %v4720 = vsel %vm4270, %v4630, 0.0
      %4721 = vadd.xlane.f32.xlu0 %v4720
      %v4722 = vpop.xlane.xlu0 %4721
      %v4723 = vsel %vm4270, %v4631, 0.0
      %4724 = vadd.xlane.f32.xlu0 %v4723
      %v4725 = vpop.xlane.xlu0 %4724
      %v4726 = vsel %vm4270, %v4632, 0.0
      %4727 = vadd.xlane.f32.xlu0 %v4726
      %v4728 = vpop.xlane.xlu0 %4727
      %v4729 = vld [vmem:[#allocation3] sm:$0x1]
      %v4731 = vperm.slane %v4729, 0
      %v4733 = vadd.f32 %v4635, %v4731
      %v4734 = vadd.f32 %v4638, %v4731
      %v4735 = vadd.f32 %v4641, %v4731
      %v4736 = vadd.f32 %v4644, %v4731
      %v4737 = vadd.f32 %v4647, %v4731
      %v4738 = vadd.f32 %v4650, %v4731
      %v4739 = vadd.f32 %v4653, %v4731
      %v4740 = vadd.f32 %v4656, %v4731
      %v4741 = vadd.f32 %v4659, %v4731
      %v4742 = vadd.f32 %v4662, %v4731
      %v4743 = vadd.f32 %v4665, %v4731
      %v4744 = vadd.f32 %v4668, %v4731
      %v4745 = vadd.f32 %v4671, %v4731
      %v4746 = vadd.f32 %v4674, %v4731
      %v4747 = vadd.f32 %v4677, %v4731
      %v4748 = vadd.f32 %v4680, %v4731
      %v4749 = vadd.f32 %v4683, %v4731
      %v4750 = vadd.f32 %v4686, %v4731
      %v4751 = vadd.f32 %v4689, %v4731
      %v4752 = vadd.f32 %v4692, %v4731
      %v4753 = vadd.f32 %v4695, %v4731
      %v4754 = vadd.f32 %v4698, %v4731
      %v4755 = vadd.f32 %v4701, %v4731
      %v4756 = vadd.f32 %v4704, %v4731
      %v4757 = vadd.f32 %v4707, %v4731
      %v4758 = vadd.f32 %v4710, %v4731
      %v4759 = vadd.f32 %v4713, %v4731
      %v4760 = vadd.f32 %v4716, %v4731
      %v4761 = vadd.f32 %v4719, %v4731
      %v4762 = vadd.f32 %v4722, %v4731
      %v4763 = vadd.f32 %v4725, %v4731
      %v4764 = vadd.f32 %v4728, %v4731
      %v4765 = vxor.u32 %v4733, 2147483648
      %v4766 = vxor.u32 %v4734, 2147483648
      %v4767 = vxor.u32 %v4735, 2147483648
      %v4768 = vxor.u32 %v4736, 2147483648
      %v4769 = vxor.u32 %v4737, 2147483648
      %v4770 = vxor.u32 %v4738, 2147483648
      %v4771 = vxor.u32 %v4739, 2147483648
      %v4772 = vxor.u32 %v4740, 2147483648
      %v4773 = vxor.u32 %v4741, 2147483648
      %v4774 = vxor.u32 %v4742, 2147483648
      %v4775 = vxor.u32 %v4743, 2147483648
      %v4776 = vxor.u32 %v4744, 2147483648
      %v4777 = vxor.u32 %v4745, 2147483648
      %v4778 = vxor.u32 %v4746, 2147483648
      %v4779 = vxor.u32 %v4747, 2147483648
      %v4780 = vxor.u32 %v4748, 2147483648
      %v4781 = vxor.u32 %v4749, 2147483648
      %v4782 = vxor.u32 %v4750, 2147483648
      %v4783 = vxor.u32 %v4751, 2147483648
      %v4784 = vxor.u32 %v4752, 2147483648
      %v4785 = vxor.u32 %v4753, 2147483648
      %v4786 = vxor.u32 %v4754, 2147483648
      %v4787 = vxor.u32 %v4755, 2147483648
      %v4788 = vxor.u32 %v4756, 2147483648
      %v4789 = vxor.u32 %v4757, 2147483648
      %v4790 = vxor.u32 %v4758, 2147483648
      %v4791 = vxor.u32 %v4759, 2147483648
      %v4792 = vxor.u32 %v4760, 2147483648
      %v4793 = vxor.u32 %v4761, 2147483648
      %v4794 = vxor.u32 %v4762, 2147483648
      %v4795 = vxor.u32 %v4763, 2147483648
      %v4796 = vxor.u32 %v4764, 2147483648
      %v4797 = vmul.f32 %v4765, 1.442695
      %v4798 = vpow.pop %v4797
      %v4799 = vmul.f32 %v4766, 1.442695
      %v4800 = vpow.pop %v4799
      %v4801 = vmul.f32 %v4767, 1.442695
      %v4802 = vpow.pop %v4801
      %v4803 = vmul.f32 %v4768, 1.442695
      %v4804 = vpow.pop %v4803
      %v4805 = vmul.f32 %v4769, 1.442695
      %v4806 = vpow.pop %v4805
      %v4807 = vmul.f32 %v4770, 1.442695
      %v4808 = vpow.pop %v4807
      %v4809 = vmul.f32 %v4771, 1.442695
      %v4810 = vpow.pop %v4809
      %v4811 = vmul.f32 %v4772, 1.442695
      %v4812 = vpow.pop %v4811
      %v4813 = vmul.f32 %v4773, 1.442695
      %v4814 = vpow.pop %v4813
      %v4815 = vmul.f32 %v4774, 1.442695
      %v4816 = vpow.pop %v4815
      %v4817 = vmul.f32 %v4775, 1.442695
      %v4818 = vpow.pop %v4817
      %v4819 = vmul.f32 %v4776, 1.442695
      %v4820 = vpow.pop %v4819
      %v4821 = vmul.f32 %v4777, 1.442695
      %v4822 = vpow.pop %v4821
      %v4823 = vmul.f32 %v4778, 1.442695
      %v4824 = vpow.pop %v4823
      %v4825 = vmul.f32 %v4779, 1.442695
      %v4826 = vpow.pop %v4825
      %v4827 = vmul.f32 %v4780, 1.442695
      %v4828 = vpow.pop %v4827
      %v4829 = vmul.f32 %v4781, 1.442695
      %v4830 = vpow.pop %v4829
      %v4831 = vmul.f32 %v4782, 1.442695
      %v4832 = vpow.pop %v4831
      %v4833 = vmul.f32 %v4783, 1.442695
      %v4834 = vpow.pop %v4833
      %v4835 = vmul.f32 %v4784, 1.442695
      %v4836 = vpow.pop %v4835
      %v4837 = vmul.f32 %v4785, 1.442695
      %v4838 = vpow.pop %v4837
      %v4839 = vmul.f32 %v4786, 1.442695
      %v4840 = vpow.pop %v4839
      %v4841 = vmul.f32 %v4787, 1.442695
      %v4842 = vpow.pop %v4841
      %v4843 = vmul.f32 %v4788, 1.442695
      %v4844 = vpow.pop %v4843
      %v4845 = vmul.f32 %v4789, 1.442695
      %v4846 = vpow.pop %v4845
      %v4847 = vmul.f32 %v4790, 1.442695
      %v4848 = vpow.pop %v4847
      %v4849 = vmul.f32 %v4791, 1.442695
      %v4850 = vpow.pop %v4849
      %v4851 = vmul.f32 %v4792, 1.442695
      %v4852 = vpow.pop %v4851
      %v4853 = vmul.f32 %v4793, 1.442695
      %v4854 = vpow.pop %v4853
      %v4855 = vmul.f32 %v4794, 1.442695
      %v4856 = vpow.pop %v4855
      %v4857 = vmul.f32 %v4795, 1.442695
      %v4858 = vpow.pop %v4857
      %v4859 = vmul.f32 %v4796, 1.442695
      %v4860 = vpow.pop %v4859
      %v4861 = vadd.f32 %v4798, 1.0
      %v4862 = vadd.f32 %v4800, 1.0
      %v4863 = vadd.f32 %v4802, 1.0
      %v4864 = vadd.f32 %v4804, 1.0
      %v4865 = vadd.f32 %v4806, 1.0
      %v4866 = vadd.f32 %v4808, 1.0
      %v4867 = vadd.f32 %v4810, 1.0
      %v4868 = vadd.f32 %v4812, 1.0
      %v4869 = vadd.f32 %v4814, 1.0
      %v4870 = vadd.f32 %v4816, 1.0
      %v4871 = vadd.f32 %v4818, 1.0
      %v4872 = vadd.f32 %v4820, 1.0
      %v4873 = vadd.f32 %v4822, 1.0
      %v4874 = vadd.f32 %v4824, 1.0
      %v4875 = vadd.f32 %v4826, 1.0
      %v4876 = vadd.f32 %v4828, 1.0
      %v4877 = vadd.f32 %v4830, 1.0
      %v4878 = vadd.f32 %v4832, 1.0
      %v4879 = vadd.f32 %v4834, 1.0
      %v4880 = vadd.f32 %v4836, 1.0
      %v4881 = vadd.f32 %v4838, 1.0
      %v4882 = vadd.f32 %v4840, 1.0
      %v4883 = vadd.f32 %v4842, 1.0
      %v4884 = vadd.f32 %v4844, 1.0
      %v4885 = vadd.f32 %v4846, 1.0
      %v4886 = vadd.f32 %v4848, 1.0
      %v4887 = vadd.f32 %v4850, 1.0
      %v4888 = vadd.f32 %v4852, 1.0
      %v4889 = vadd.f32 %v4854, 1.0
      %v4890 = vadd.f32 %v4856, 1.0
      %v4891 = vadd.f32 %v4858, 1.0
      %v4892 = vadd.f32 %v4860, 1.0
      %v4893 = vrcp.pop %v4861
      %v4894 = vmul.f32 %v4861, %v4893
      %v4895 = vsub.f32 1.0, %v4894
      %v4896 = vmul.f32 %v4893, %v4895
      %v4897 = vadd.f32 %v4893, %v4896
      %vm4898 = vweird.f32 %v4861
      %vm4899 = vweird.f32 %v4893
      %vm4900 = vmor %vm4898, %vm4899
      %v4901 = vsel %vm4900, %v4893, %v4897
      %v4902 = vand.u32 2147483647, %v4861
      %vm4903 = vcmp.eq.f32.partialorder %v4902, 8.507059e+37
      %v4904 = vand.u32 %v4861, 2147483648
      %v4905 = vor.u32 1.1754944e-38, %v4904
      %v4906 = vsel %vm4903, %v4905, %v4901
      %v4907 = vmul.f32 1.0, %v4906
      %v4908 = vrcp.pop %v4862
      %v4909 = vmul.f32 %v4862, %v4908
      %v4910 = vsub.f32 1.0, %v4909
      %v4911 = vmul.f32 %v4908, %v4910
      %v4912 = vadd.f32 %v4908, %v4911
      %vm4913 = vweird.f32 %v4862
      %vm4914 = vweird.f32 %v4908
      %vm4915 = vmor %vm4913, %vm4914
      %v4916 = vsel %vm4915, %v4908, %v4912
      %v4917 = vand.u32 2147483647, %v4862
      %vm4918 = vcmp.eq.f32.partialorder %v4917, 8.507059e+37
      %v4919 = vand.u32 %v4862, 2147483648
      %v4920 = vor.u32 1.1754944e-38, %v4919
      %v4921 = vsel %vm4918, %v4920, %v4916
      %v4922 = vmul.f32 1.0, %v4921
      %v4923 = vrcp.pop %v4863
      %v4924 = vmul.f32 %v4863, %v4923
      %v4925 = vsub.f32 1.0, %v4924
      %v4926 = vmul.f32 %v4923, %v4925
      %v4927 = vadd.f32 %v4923, %v4926
      %vm4928 = vweird.f32 %v4863
      %vm4929 = vweird.f32 %v4923
      %vm4930 = vmor %vm4928, %vm4929
      %v4931 = vsel %vm4930, %v4923, %v4927
      %v4932 = vand.u32 2147483647, %v4863
      %vm4933 = vcmp.eq.f32.partialorder %v4932, 8.507059e+37
      %v4934 = vand.u32 %v4863, 2147483648
      %v4935 = vor.u32 1.1754944e-38, %v4934
      %v4936 = vsel %vm4933, %v4935, %v4931
      %v4937 = vmul.f32 1.0, %v4936
      %v4938 = vrcp.pop %v4864
      %v4939 = vmul.f32 %v4864, %v4938
      %v4940 = vsub.f32 1.0, %v4939
      %v4941 = vmul.f32 %v4938, %v4940
      %v4942 = vadd.f32 %v4938, %v4941
      %vm4943 = vweird.f32 %v4864
      %vm4944 = vweird.f32 %v4938
      %vm4945 = vmor %vm4943, %vm4944
      %v4946 = vsel %vm4945, %v4938, %v4942
      %v4947 = vand.u32 2147483647, %v4864
      %vm4948 = vcmp.eq.f32.partialorder %v4947, 8.507059e+37
      %v4949 = vand.u32 %v4864, 2147483648
      %v4950 = vor.u32 1.1754944e-38, %v4949
      %v4951 = vsel %vm4948, %v4950, %v4946
      %v4952 = vmul.f32 1.0, %v4951
      %v4953 = vrcp.pop %v4865
      %v4954 = vmul.f32 %v4865, %v4953
      %v4955 = vsub.f32 1.0, %v4954
      %v4956 = vmul.f32 %v4953, %v4955
      %v4957 = vadd.f32 %v4953, %v4956
      %vm4958 = vweird.f32 %v4865
      %vm4959 = vweird.f32 %v4953
      %vm4960 = vmor %vm4958, %vm4959
      %v4961 = vsel %vm4960, %v4953, %v4957
      %v4962 = vand.u32 2147483647, %v4865
      %vm4963 = vcmp.eq.f32.partialorder %v4962, 8.507059e+37
      %v4964 = vand.u32 %v4865, 2147483648
      %v4965 = vor.u32 1.1754944e-38, %v4964
      %v4966 = vsel %vm4963, %v4965, %v4961
      %v4967 = vmul.f32 1.0, %v4966
      %v4968 = vrcp.pop %v4866
      %v4969 = vmul.f32 %v4866, %v4968
      %v4970 = vsub.f32 1.0, %v4969
      %v4971 = vmul.f32 %v4968, %v4970
      %v4972 = vadd.f32 %v4968, %v4971
      %vm4973 = vweird.f32 %v4866
      %vm4974 = vweird.f32 %v4968
      %vm4975 = vmor %vm4973, %vm4974
      %v4976 = vsel %vm4975, %v4968, %v4972
      %v4977 = vand.u32 2147483647, %v4866
      %vm4978 = vcmp.eq.f32.partialorder %v4977, 8.507059e+37
      %v4979 = vand.u32 %v4866, 2147483648
      %v4980 = vor.u32 1.1754944e-38, %v4979
      %v4981 = vsel %vm4978, %v4980, %v4976
      %v4982 = vmul.f32 1.0, %v4981
      %v4983 = vrcp.pop %v4867
      %v4984 = vmul.f32 %v4867, %v4983
      %v4985 = vsub.f32 1.0, %v4984
      %v4986 = vmul.f32 %v4983, %v4985
      %v4987 = vadd.f32 %v4983, %v4986
      %vm4988 = vweird.f32 %v4867
      %vm4989 = vweird.f32 %v4983
      %vm4990 = vmor %vm4988, %vm4989
      %v4991 = vsel %vm4990, %v4983, %v4987
      %v4992 = vand.u32 2147483647, %v4867
      %vm4993 = vcmp.eq.f32.partialorder %v4992, 8.507059e+37
      %v4994 = vand.u32 %v4867, 2147483648
      %v4995 = vor.u32 1.1754944e-38, %v4994
      %v4996 = vsel %vm4993, %v4995, %v4991
      %v4997 = vmul.f32 1.0, %v4996
      %v4998 = vrcp.pop %v4868
      %v4999 = vmul.f32 %v4868, %v4998
      %v5000 = vsub.f32 1.0, %v4999
      %v5001 = vmul.f32 %v4998, %v5000
      %v5002 = vadd.f32 %v4998, %v5001
      %vm5003 = vweird.f32 %v4868
      %vm5004 = vweird.f32 %v4998
      %vm5005 = vmor %vm5003, %vm5004
      %v5006 = vsel %vm5005, %v4998, %v5002
      %v5007 = vand.u32 2147483647, %v4868
      %vm5008 = vcmp.eq.f32.partialorder %v5007, 8.507059e+37
      %v5009 = vand.u32 %v4868, 2147483648
      %v5010 = vor.u32 1.1754944e-38, %v5009
      %v5011 = vsel %vm5008, %v5010, %v5006
      %v5012 = vmul.f32 1.0, %v5011
      %v5013 = vrcp.pop %v4869
      %v5014 = vmul.f32 %v4869, %v5013
      %v5015 = vsub.f32 1.0, %v5014
      %v5016 = vmul.f32 %v5013, %v5015
      %v5017 = vadd.f32 %v5013, %v5016
      %vm5018 = vweird.f32 %v4869
      %vm5019 = vweird.f32 %v5013
      %vm5020 = vmor %vm5018, %vm5019
      %v5021 = vsel %vm5020, %v5013, %v5017
      %v5022 = vand.u32 2147483647, %v4869
      %vm5023 = vcmp.eq.f32.partialorder %v5022, 8.507059e+37
      %v5024 = vand.u32 %v4869, 2147483648
      %v5025 = vor.u32 1.1754944e-38, %v5024
      %v5026 = vsel %vm5023, %v5025, %v5021
      %v5027 = vmul.f32 1.0, %v5026
      %v5028 = vrcp.pop %v4870
      %v5029 = vmul.f32 %v4870, %v5028
      %v5030 = vsub.f32 1.0, %v5029
      %v5031 = vmul.f32 %v5028, %v5030
      %v5032 = vadd.f32 %v5028, %v5031
      %vm5033 = vweird.f32 %v4870
      %vm5034 = vweird.f32 %v5028
      %vm5035 = vmor %vm5033, %vm5034
      %v5036 = vsel %vm5035, %v5028, %v5032
      %v5037 = vand.u32 2147483647, %v4870
      %vm5038 = vcmp.eq.f32.partialorder %v5037, 8.507059e+37
      %v5039 = vand.u32 %v4870, 2147483648
      %v5040 = vor.u32 1.1754944e-38, %v5039
      %v5041 = vsel %vm5038, %v5040, %v5036
      %v5042 = vmul.f32 1.0, %v5041
      %v5043 = vrcp.pop %v4871
      %v5044 = vmul.f32 %v4871, %v5043
      %v5045 = vsub.f32 1.0, %v5044
      %v5046 = vmul.f32 %v5043, %v5045
      %v5047 = vadd.f32 %v5043, %v5046
      %vm5048 = vweird.f32 %v4871
      %vm5049 = vweird.f32 %v5043
      %vm5050 = vmor %vm5048, %vm5049
      %v5051 = vsel %vm5050, %v5043, %v5047
      %v5052 = vand.u32 2147483647, %v4871
      %vm5053 = vcmp.eq.f32.partialorder %v5052, 8.507059e+37
      %v5054 = vand.u32 %v4871, 2147483648
      %v5055 = vor.u32 1.1754944e-38, %v5054
      %v5056 = vsel %vm5053, %v5055, %v5051
      %v5057 = vmul.f32 1.0, %v5056
      %v5058 = vrcp.pop %v4872
      %v5059 = vmul.f32 %v4872, %v5058
      %v5060 = vsub.f32 1.0, %v5059
      %v5061 = vmul.f32 %v5058, %v5060
      %v5062 = vadd.f32 %v5058, %v5061
      %vm5063 = vweird.f32 %v4872
      %vm5064 = vweird.f32 %v5058
      %vm5065 = vmor %vm5063, %vm5064
      %v5066 = vsel %vm5065, %v5058, %v5062
      %v5067 = vand.u32 2147483647, %v4872
      %vm5068 = vcmp.eq.f32.partialorder %v5067, 8.507059e+37
      %v5069 = vand.u32 %v4872, 2147483648
      %v5070 = vor.u32 1.1754944e-38, %v5069
      %v5071 = vsel %vm5068, %v5070, %v5066
      %v5072 = vmul.f32 1.0, %v5071
      %v5073 = vrcp.pop %v4873
      %v5074 = vmul.f32 %v4873, %v5073
      %v5075 = vsub.f32 1.0, %v5074
      %v5076 = vmul.f32 %v5073, %v5075
      %v5077 = vadd.f32 %v5073, %v5076
      %vm5078 = vweird.f32 %v4873
      %vm5079 = vweird.f32 %v5073
      %vm5080 = vmor %vm5078, %vm5079
      %v5081 = vsel %vm5080, %v5073, %v5077
      %v5082 = vand.u32 2147483647, %v4873
      %vm5083 = vcmp.eq.f32.partialorder %v5082, 8.507059e+37
      %v5084 = vand.u32 %v4873, 2147483648
      %v5085 = vor.u32 1.1754944e-38, %v5084
      %v5086 = vsel %vm5083, %v5085, %v5081
      %v5087 = vmul.f32 1.0, %v5086
      %v5088 = vrcp.pop %v4874
      %v5089 = vmul.f32 %v4874, %v5088
      %v5090 = vsub.f32 1.0, %v5089
      %v5091 = vmul.f32 %v5088, %v5090
      %v5092 = vadd.f32 %v5088, %v5091
      %vm5093 = vweird.f32 %v4874
      %vm5094 = vweird.f32 %v5088
      %vm5095 = vmor %vm5093, %vm5094
      %v5096 = vsel %vm5095, %v5088, %v5092
      %v5097 = vand.u32 2147483647, %v4874
      %vm5098 = vcmp.eq.f32.partialorder %v5097, 8.507059e+37
      %v5099 = vand.u32 %v4874, 2147483648
      %v5100 = vor.u32 1.1754944e-38, %v5099
      %v5101 = vsel %vm5098, %v5100, %v5096
      %v5102 = vmul.f32 1.0, %v5101
      %v5103 = vrcp.pop %v4875
      %v5104 = vmul.f32 %v4875, %v5103
      %v5105 = vsub.f32 1.0, %v5104
      %v5106 = vmul.f32 %v5103, %v5105
      %v5107 = vadd.f32 %v5103, %v5106
      %vm5108 = vweird.f32 %v4875
      %vm5109 = vweird.f32 %v5103
      %vm5110 = vmor %vm5108, %vm5109
      %v5111 = vsel %vm5110, %v5103, %v5107
      %v5112 = vand.u32 2147483647, %v4875
      %vm5113 = vcmp.eq.f32.partialorder %v5112, 8.507059e+37
      %v5114 = vand.u32 %v4875, 2147483648
      %v5115 = vor.u32 1.1754944e-38, %v5114
      %v5116 = vsel %vm5113, %v5115, %v5111
      %v5117 = vmul.f32 1.0, %v5116
      %v5118 = vrcp.pop %v4876
      %v5119 = vmul.f32 %v4876, %v5118
      %v5120 = vsub.f32 1.0, %v5119
      %v5121 = vmul.f32 %v5118, %v5120
      %v5122 = vadd.f32 %v5118, %v5121
      %vm5123 = vweird.f32 %v4876
      %vm5124 = vweird.f32 %v5118
      %vm5125 = vmor %vm5123, %vm5124
      %v5126 = vsel %vm5125, %v5118, %v5122
      %v5127 = vand.u32 2147483647, %v4876
      %vm5128 = vcmp.eq.f32.partialorder %v5127, 8.507059e+37
      %v5129 = vand.u32 %v4876, 2147483648
      %v5130 = vor.u32 1.1754944e-38, %v5129
      %v5131 = vsel %vm5128, %v5130, %v5126
      %v5132 = vmul.f32 1.0, %v5131
      %v5133 = vrcp.pop %v4877
      %v5134 = vmul.f32 %v4877, %v5133
      %v5135 = vsub.f32 1.0, %v5134
      %v5136 = vmul.f32 %v5133, %v5135
      %v5137 = vadd.f32 %v5133, %v5136
      %vm5138 = vweird.f32 %v4877
      %vm5139 = vweird.f32 %v5133
      %vm5140 = vmor %vm5138, %vm5139
      %v5141 = vsel %vm5140, %v5133, %v5137
      %v5142 = vand.u32 2147483647, %v4877
      %vm5143 = vcmp.eq.f32.partialorder %v5142, 8.507059e+37
      %v5144 = vand.u32 %v4877, 2147483648
      %v5145 = vor.u32 1.1754944e-38, %v5144
      %v5146 = vsel %vm5143, %v5145, %v5141
      %v5147 = vmul.f32 1.0, %v5146
      %v5148 = vrcp.pop %v4878
      %v5149 = vmul.f32 %v4878, %v5148
      %v5150 = vsub.f32 1.0, %v5149
      %v5151 = vmul.f32 %v5148, %v5150
      %v5152 = vadd.f32 %v5148, %v5151
      %vm5153 = vweird.f32 %v4878
      %vm5154 = vweird.f32 %v5148
      %vm5155 = vmor %vm5153, %vm5154
      %v5156 = vsel %vm5155, %v5148, %v5152
      %v5157 = vand.u32 2147483647, %v4878
      %vm5158 = vcmp.eq.f32.partialorder %v5157, 8.507059e+37
      %v5159 = vand.u32 %v4878, 2147483648
      %v5160 = vor.u32 1.1754944e-38, %v5159
      %v5161 = vsel %vm5158, %v5160, %v5156
      %v5162 = vmul.f32 1.0, %v5161
      %v5163 = vrcp.pop %v4879
      %v5164 = vmul.f32 %v4879, %v5163
      %v5165 = vsub.f32 1.0, %v5164
      %v5166 = vmul.f32 %v5163, %v5165
      %v5167 = vadd.f32 %v5163, %v5166
      %vm5168 = vweird.f32 %v4879
      %vm5169 = vweird.f32 %v5163
      %vm5170 = vmor %vm5168, %vm5169
      %v5171 = vsel %vm5170, %v5163, %v5167
      %v5172 = vand.u32 2147483647, %v4879
      %vm5173 = vcmp.eq.f32.partialorder %v5172, 8.507059e+37
      %v5174 = vand.u32 %v4879, 2147483648
      %v5175 = vor.u32 1.1754944e-38, %v5174
      %v5176 = vsel %vm5173, %v5175, %v5171
      %v5177 = vmul.f32 1.0, %v5176
      %v5178 = vrcp.pop %v4880
      %v5179 = vmul.f32 %v4880, %v5178
      %v5180 = vsub.f32 1.0, %v5179
      %v5181 = vmul.f32 %v5178, %v5180
      %v5182 = vadd.f32 %v5178, %v5181
      %vm5183 = vweird.f32 %v4880
      %vm5184 = vweird.f32 %v5178
      %vm5185 = vmor %vm5183, %vm5184
      %v5186 = vsel %vm5185, %v5178, %v5182
      %v5187 = vand.u32 2147483647, %v4880
      %vm5188 = vcmp.eq.f32.partialorder %v5187, 8.507059e+37
      %v5189 = vand.u32 %v4880, 2147483648
      %v5190 = vor.u32 1.1754944e-38, %v5189
      %v5191 = vsel %vm5188, %v5190, %v5186
      %v5192 = vmul.f32 1.0, %v5191
      %v5193 = vrcp.pop %v4881
      %v5194 = vmul.f32 %v4881, %v5193
      %v5195 = vsub.f32 1.0, %v5194
      %v5196 = vmul.f32 %v5193, %v5195
      %v5197 = vadd.f32 %v5193, %v5196
      %vm5198 = vweird.f32 %v4881
      %vm5199 = vweird.f32 %v5193
      %vm5200 = vmor %vm5198, %vm5199
      %v5201 = vsel %vm5200, %v5193, %v5197
      %v5202 = vand.u32 2147483647, %v4881
      %vm5203 = vcmp.eq.f32.partialorder %v5202, 8.507059e+37
      %v5204 = vand.u32 %v4881, 2147483648
      %v5205 = vor.u32 1.1754944e-38, %v5204
      %v5206 = vsel %vm5203, %v5205, %v5201
      %v5207 = vmul.f32 1.0, %v5206
      %v5208 = vrcp.pop %v4882
      %v5209 = vmul.f32 %v4882, %v5208
      %v5210 = vsub.f32 1.0, %v5209
      %v5211 = vmul.f32 %v5208, %v5210
      %v5212 = vadd.f32 %v5208, %v5211
      %vm5213 = vweird.f32 %v4882
      %vm5214 = vweird.f32 %v5208
      %vm5215 = vmor %vm5213, %vm5214
      %v5216 = vsel %vm5215, %v5208, %v5212
      %v5217 = vand.u32 2147483647, %v4882
      %vm5218 = vcmp.eq.f32.partialorder %v5217, 8.507059e+37
      %v5219 = vand.u32 %v4882, 2147483648
      %v5220 = vor.u32 1.1754944e-38, %v5219
      %v5221 = vsel %vm5218, %v5220, %v5216
      %v5222 = vmul.f32 1.0, %v5221
      %v5223 = vrcp.pop %v4883
      %v5224 = vmul.f32 %v4883, %v5223
      %v5225 = vsub.f32 1.0, %v5224
      %v5226 = vmul.f32 %v5223, %v5225
      %v5227 = vadd.f32 %v5223, %v5226
      %vm5228 = vweird.f32 %v4883
      %vm5229 = vweird.f32 %v5223
      %vm5230 = vmor %vm5228, %vm5229
      %v5231 = vsel %vm5230, %v5223, %v5227
      %v5232 = vand.u32 2147483647, %v4883
      %vm5233 = vcmp.eq.f32.partialorder %v5232, 8.507059e+37
      %v5234 = vand.u32 %v4883, 2147483648
      %v5235 = vor.u32 1.1754944e-38, %v5234
      %v5236 = vsel %vm5233, %v5235, %v5231
      %v5237 = vmul.f32 1.0, %v5236
      %v5238 = vrcp.pop %v4884
      %v5239 = vmul.f32 %v4884, %v5238
      %v5240 = vsub.f32 1.0, %v5239
      %v5241 = vmul.f32 %v5238, %v5240
      %v5242 = vadd.f32 %v5238, %v5241
      %vm5243 = vweird.f32 %v4884
      %vm5244 = vweird.f32 %v5238
      %vm5245 = vmor %vm5243, %vm5244
      %v5246 = vsel %vm5245, %v5238, %v5242
      %v5247 = vand.u32 2147483647, %v4884
      %vm5248 = vcmp.eq.f32.partialorder %v5247, 8.507059e+37
      %v5249 = vand.u32 %v4884, 2147483648
      %v5250 = vor.u32 1.1754944e-38, %v5249
      %v5251 = vsel %vm5248, %v5250, %v5246
      %v5252 = vmul.f32 1.0, %v5251
      %v5253 = vrcp.pop %v4885
      %v5254 = vmul.f32 %v4885, %v5253
      %v5255 = vsub.f32 1.0, %v5254
      %v5256 = vmul.f32 %v5253, %v5255
      %v5257 = vadd.f32 %v5253, %v5256
      %vm5258 = vweird.f32 %v4885
      %vm5259 = vweird.f32 %v5253
      %vm5260 = vmor %vm5258, %vm5259
      %v5261 = vsel %vm5260, %v5253, %v5257
      %v5262 = vand.u32 2147483647, %v4885
      %vm5263 = vcmp.eq.f32.partialorder %v5262, 8.507059e+37
      %v5264 = vand.u32 %v4885, 2147483648
      %v5265 = vor.u32 1.1754944e-38, %v5264
      %v5266 = vsel %vm5263, %v5265, %v5261
      %v5267 = vmul.f32 1.0, %v5266
      %v5268 = vrcp.pop %v4886
      %v5269 = vmul.f32 %v4886, %v5268
      %v5270 = vsub.f32 1.0, %v5269
      %v5271 = vmul.f32 %v5268, %v5270
      %v5272 = vadd.f32 %v5268, %v5271
      %vm5273 = vweird.f32 %v4886
      %vm5274 = vweird.f32 %v5268
      %vm5275 = vmor %vm5273, %vm5274
      %v5276 = vsel %vm5275, %v5268, %v5272
      %v5277 = vand.u32 2147483647, %v4886
      %vm5278 = vcmp.eq.f32.partialorder %v5277, 8.507059e+37
      %v5279 = vand.u32 %v4886, 2147483648
      %v5280 = vor.u32 1.1754944e-38, %v5279
      %v5281 = vsel %vm5278, %v5280, %v5276
      %v5282 = vmul.f32 1.0, %v5281
      %v5283 = vrcp.pop %v4887
      %v5284 = vmul.f32 %v4887, %v5283
      %v5285 = vsub.f32 1.0, %v5284
      %v5286 = vmul.f32 %v5283, %v5285
      %v5287 = vadd.f32 %v5283, %v5286
      %vm5288 = vweird.f32 %v4887
      %vm5289 = vweird.f32 %v5283
      %vm5290 = vmor %vm5288, %vm5289
      %v5291 = vsel %vm5290, %v5283, %v5287
      %v5292 = vand.u32 2147483647, %v4887
      %vm5293 = vcmp.eq.f32.partialorder %v5292, 8.507059e+37
      %v5294 = vand.u32 %v4887, 2147483648
      %v5295 = vor.u32 1.1754944e-38, %v5294
      %v5296 = vsel %vm5293, %v5295, %v5291
      %v5297 = vmul.f32 1.0, %v5296
      %v5298 = vrcp.pop %v4888
      %v5299 = vmul.f32 %v4888, %v5298
      %v5300 = vsub.f32 1.0, %v5299
      %v5301 = vmul.f32 %v5298, %v5300
      %v5302 = vadd.f32 %v5298, %v5301
      %vm5303 = vweird.f32 %v4888
      %vm5304 = vweird.f32 %v5298
      %vm5305 = vmor %vm5303, %vm5304
      %v5306 = vsel %vm5305, %v5298, %v5302
      %v5307 = vand.u32 2147483647, %v4888
      %vm5308 = vcmp.eq.f32.partialorder %v5307, 8.507059e+37
      %v5309 = vand.u32 %v4888, 2147483648
      %v5310 = vor.u32 1.1754944e-38, %v5309
      %v5311 = vsel %vm5308, %v5310, %v5306
      %v5312 = vmul.f32 1.0, %v5311
      %v5313 = vrcp.pop %v4889
      %v5314 = vmul.f32 %v4889, %v5313
      %v5315 = vsub.f32 1.0, %v5314
      %v5316 = vmul.f32 %v5313, %v5315
      %v5317 = vadd.f32 %v5313, %v5316
      %vm5318 = vweird.f32 %v4889
      %vm5319 = vweird.f32 %v5313
      %vm5320 = vmor %vm5318, %vm5319
      %v5321 = vsel %vm5320, %v5313, %v5317
      %v5322 = vand.u32 2147483647, %v4889
      %vm5323 = vcmp.eq.f32.partialorder %v5322, 8.507059e+37
      %v5324 = vand.u32 %v4889, 2147483648
      %v5325 = vor.u32 1.1754944e-38, %v5324
      %v5326 = vsel %vm5323, %v5325, %v5321
      %v5327 = vmul.f32 1.0, %v5326
      %v5328 = vrcp.pop %v4890
      %v5329 = vmul.f32 %v4890, %v5328
      %v5330 = vsub.f32 1.0, %v5329
      %v5331 = vmul.f32 %v5328, %v5330
      %v5332 = vadd.f32 %v5328, %v5331
      %vm5333 = vweird.f32 %v4890
      %vm5334 = vweird.f32 %v5328
      %vm5335 = vmor %vm5333, %vm5334
      %v5336 = vsel %vm5335, %v5328, %v5332
      %v5337 = vand.u32 2147483647, %v4890
      %vm5338 = vcmp.eq.f32.partialorder %v5337, 8.507059e+37
      %v5339 = vand.u32 %v4890, 2147483648
      %v5340 = vor.u32 1.1754944e-38, %v5339
      %v5341 = vsel %vm5338, %v5340, %v5336
      %v5342 = vmul.f32 1.0, %v5341
      %v5343 = vrcp.pop %v4891
      %v5344 = vmul.f32 %v4891, %v5343
      %v5345 = vsub.f32 1.0, %v5344
      %v5346 = vmul.f32 %v5343, %v5345
      %v5347 = vadd.f32 %v5343, %v5346
      %vm5348 = vweird.f32 %v4891
      %vm5349 = vweird.f32 %v5343
      %vm5350 = vmor %vm5348, %vm5349
      %v5351 = vsel %vm5350, %v5343, %v5347
      %v5352 = vand.u32 2147483647, %v4891
      %vm5353 = vcmp.eq.f32.partialorder %v5352, 8.507059e+37
      %v5354 = vand.u32 %v4891, 2147483648
      %v5355 = vor.u32 1.1754944e-38, %v5354
      %v5356 = vsel %vm5353, %v5355, %v5351
      %v5357 = vmul.f32 1.0, %v5356
      %v5358 = vrcp.pop %v4892
      %v5359 = vmul.f32 %v4892, %v5358
      %v5360 = vsub.f32 1.0, %v5359
      %v5361 = vmul.f32 %v5358, %v5360
      %v5362 = vadd.f32 %v5358, %v5361
      %vm5363 = vweird.f32 %v4892
      %vm5364 = vweird.f32 %v5358
      %vm5365 = vmor %vm5363, %vm5364
      %v5366 = vsel %vm5365, %v5358, %v5362
      %v5367 = vand.u32 2147483647, %v4892
      %vm5368 = vcmp.eq.f32.partialorder %v5367, 8.507059e+37
      %v5369 = vand.u32 %v4892, 2147483648
      %v5370 = vor.u32 1.1754944e-38, %v5369
      %v5371 = vsel %vm5368, %v5370, %v5366
      %v5372 = vmul.f32 1.0, %v5371
      %5374 = vset.pattern.permute.xlu0 0
      %5375 = vperm.xlu0 %5374, %v4907
      %v5376 = vpop.permute.xlu0 %5375
      %5379 = vset.pattern.permute.xlu0 0
      %5380 = vperm.xlu0 %5379, %v4922
      %v5381 = vpop.permute.xlu0 %5380
      %5384 = vset.pattern.permute.xlu0 0
      %5385 = vperm.xlu0 %5384, %v4937
      %v5386 = vpop.permute.xlu0 %5385
      %5389 = vset.pattern.permute.xlu0 0
      %5390 = vperm.xlu0 %5389, %v4952
      %v5391 = vpop.permute.xlu0 %5390
      %5394 = vset.pattern.permute.xlu0 0
      %5395 = vperm.xlu0 %5394, %v4967
      %v5396 = vpop.permute.xlu0 %5395
      %5399 = vset.pattern.permute.xlu0 0
      %5400 = vperm.xlu0 %5399, %v4982
      %v5401 = vpop.permute.xlu0 %5400
      %5404 = vset.pattern.permute.xlu0 0
      %5405 = vperm.xlu0 %5404, %v4997
      %v5406 = vpop.permute.xlu0 %5405
      %5409 = vset.pattern.permute.xlu0 0
      %5410 = vperm.xlu0 %5409, %v5012
      %v5411 = vpop.permute.xlu0 %5410
      %5414 = vset.pattern.permute.xlu0 0
      %5415 = vperm.xlu0 %5414, %v5027
      %v5416 = vpop.permute.xlu0 %5415
      %5419 = vset.pattern.permute.xlu0 0
      %5420 = vperm.xlu0 %5419, %v5042
      %v5421 = vpop.permute.xlu0 %5420
      %5424 = vset.pattern.permute.xlu0 0
      %5425 = vperm.xlu0 %5424, %v5057
      %v5426 = vpop.permute.xlu0 %5425
      %5429 = vset.pattern.permute.xlu0 0
      %5430 = vperm.xlu0 %5429, %v5072
      %v5431 = vpop.permute.xlu0 %5430
      %5434 = vset.pattern.permute.xlu0 0
      %5435 = vperm.xlu0 %5434, %v5087
      %v5436 = vpop.permute.xlu0 %5435
      %5439 = vset.pattern.permute.xlu0 0
      %5440 = vperm.xlu0 %5439, %v5102
      %v5441 = vpop.permute.xlu0 %5440
      %5444 = vset.pattern.permute.xlu0 0
      %5445 = vperm.xlu0 %5444, %v5117
      %v5446 = vpop.permute.xlu0 %5445
      %5449 = vset.pattern.permute.xlu0 0
      %5450 = vperm.xlu0 %5449, %v5132
      %v5451 = vpop.permute.xlu0 %5450
      %5454 = vset.pattern.permute.xlu0 0
      %5455 = vperm.xlu0 %5454, %v5147
      %v5456 = vpop.permute.xlu0 %5455
      %5459 = vset.pattern.permute.xlu0 0
      %5460 = vperm.xlu0 %5459, %v5162
      %v5461 = vpop.permute.xlu0 %5460
      %5464 = vset.pattern.permute.xlu0 0
      %5465 = vperm.xlu0 %5464, %v5177
      %v5466 = vpop.permute.xlu0 %5465
      %5469 = vset.pattern.permute.xlu0 0
      %5470 = vperm.xlu0 %5469, %v5192
      %v5471 = vpop.permute.xlu0 %5470
      %5474 = vset.pattern.permute.xlu0 0
      %5475 = vperm.xlu0 %5474, %v5207
      %v5476 = vpop.permute.xlu0 %5475
      %5479 = vset.pattern.permute.xlu0 0
      %5480 = vperm.xlu0 %5479, %v5222
      %v5481 = vpop.permute.xlu0 %5480
      %5484 = vset.pattern.permute.xlu0 0
      %5485 = vperm.xlu0 %5484, %v5237
      %v5486 = vpop.permute.xlu0 %5485
      %5489 = vset.pattern.permute.xlu0 0
      %5490 = vperm.xlu0 %5489, %v5252
      %v5491 = vpop.permute.xlu0 %5490
      %5494 = vset.pattern.permute.xlu0 0
      %5495 = vperm.xlu0 %5494, %v5267
      %v5496 = vpop.permute.xlu0 %5495
      %5499 = vset.pattern.permute.xlu0 0
      %5500 = vperm.xlu0 %5499, %v5282
      %v5501 = vpop.permute.xlu0 %5500
      %5504 = vset.pattern.permute.xlu0 0
      %5505 = vperm.xlu0 %5504, %v5297
      %v5506 = vpop.permute.xlu0 %5505
      %5509 = vset.pattern.permute.xlu0 0
      %5510 = vperm.xlu0 %5509, %v5312
      %v5511 = vpop.permute.xlu0 %5510
      %5514 = vset.pattern.permute.xlu0 0
      %5515 = vperm.xlu0 %5514, %v5327
      %v5516 = vpop.permute.xlu0 %5515
      %5519 = vset.pattern.permute.xlu0 0
      %5520 = vperm.xlu0 %5519, %v5342
      %v5521 = vpop.permute.xlu0 %5520
      %5524 = vset.pattern.permute.xlu0 0
      %5525 = vperm.xlu0 %5524, %v5357
      %v5526 = vpop.permute.xlu0 %5525
      %5529 = vset.pattern.permute.xlu0 0
      %5530 = vperm.xlu0 %5529, %v5372
      %v5531 = vpop.permute.xlu0 %5530
      %v5533 = vmul.f32 %v4318, %v5376
      %v5534 = vmul.f32 %v4319, %v5381
      %v5535 = vmul.f32 %v4320, %v5386
      %v5536 = vmul.f32 %v4321, %v5391
      %v5537 = vmul.f32 %v4322, %v5396
      %v5538 = vmul.f32 %v4323, %v5401
      %v5539 = vmul.f32 %v4324, %v5406
      %v5540 = vmul.f32 %v4325, %v5411
      %v5541 = vmul.f32 %v4326, %v5416
      %v5542 = vmul.f32 %v4327, %v5421
      %v5543 = vmul.f32 %v4328, %v5426
      %v5544 = vmul.f32 %v4329, %v5431
      %v5545 = vmul.f32 %v4330, %v5436
      %v5546 = vmul.f32 %v4331, %v5441
      %v5547 = vmul.f32 %v4332, %v5446
      %v5548 = vmul.f32 %v4333, %v5451
      %v5549 = vmul.f32 %v4334, %v5456
      %v5550 = vmul.f32 %v4335, %v5461
      %v5551 = vmul.f32 %v4336, %v5466
      %v5552 = vmul.f32 %v4337, %v5471
      %v5553 = vmul.f32 %v4338, %v5476
      %v5554 = vmul.f32 %v4339, %v5481
      %v5555 = vmul.f32 %v4340, %v5486
      %v5556 = vmul.f32 %v4341, %v5491
      %v5557 = vmul.f32 %v4342, %v5496
      %v5558 = vmul.f32 %v4343, %v5501
      %v5559 = vmul.f32 %v4344, %v5506
      %v5560 = vmul.f32 %v4345, %v5511
      %v5561 = vmul.f32 %v4346, %v5516
      %v5562 = vmul.f32 %v4347, %v5521
      %v5563 = vmul.f32 %v4348, %v5526
      %v5564 = vmul.f32 %v4349, %v5531
      %v5565 = vadd.f32 %v5533, %v499
      %v5566 = vadd.f32 %v5534, %v500
      %v5567 = vadd.f32 %v5535, %v501
      %v5568 = vadd.f32 %v5536, %v502
      %v5569 = vadd.f32 %v5537, %v503
      %v5570 = vadd.f32 %v5538, %v504
      %v5571 = vadd.f32 %v5539, %v505
      %v5572 = vadd.f32 %v5540, %v506
      %v5573 = vadd.f32 %v5541, %v507
      %v5574 = vadd.f32 %v5542, %v508
      %v5575 = vadd.f32 %v5543, %v509
      %v5576 = vadd.f32 %v5544, %v510
      %v5577 = vadd.f32 %v5545, %v511
      %v5578 = vadd.f32 %v5546, %v512
      %v5579 = vadd.f32 %v5547, %v513
      %v5580 = vadd.f32 %v5548, %v514
      %v5581 = vadd.f32 %v5549, %v515
      %v5582 = vadd.f32 %v5550, %v516
      %v5583 = vadd.f32 %v5551, %v517
      %v5584 = vadd.f32 %v5552, %v518
      %v5585 = vadd.f32 %v5553, %v519
      %v5586 = vadd.f32 %v5554, %v520
      %v5587 = vadd.f32 %v5555, %v521
      %v5588 = vadd.f32 %v5556, %v522
      %v5589 = vadd.f32 %v5557, %v523
      %v5590 = vadd.f32 %v5558, %v524
      %v5591 = vadd.f32 %v5559, %v525
      %v5592 = vadd.f32 %v5560, %v526
      %v5593 = vadd.f32 %v5561, %v527
      %v5594 = vadd.f32 %v5562, %v528
      %v5595 = vadd.f32 %v5563, %v529
      %v5596 = vadd.f32 %v5564, %v530
      %5597 = vst.msk [vmem:[%s442] sm:$0xff] %vm443, %v5565
      %5598 = vst.msk [vmem:[%s442 + $0x8] sm:$0xff] %vm443, %v5566
      %5599 = vst.msk [vmem:[%s442 + $0x10] sm:$0xff] %vm443, %v5567
      %5600 = vst.msk [vmem:[%s442 + $0x18] sm:$0xff] %vm443, %v5568
      %5601 = vst.msk [vmem:[%s442 + $0x20] sm:$0xff] %vm443, %v5569
      %5602 = vst.msk [vmem:[%s442 + $0x28] sm:$0xff] %vm443, %v5570
      %5603 = vst.msk [vmem:[%s442 + $0x30] sm:$0xff] %vm443, %v5571
      %5604 = vst.msk [vmem:[%s442 + $0x38] sm:$0xff] %vm443, %v5572
      %5605 = vst.msk [vmem:[%s442 + $0x40] sm:$0xff] %vm443, %v5573
      %5606 = vst.msk [vmem:[%s442 + $0x48] sm:$0xff] %vm443, %v5574
      %5607 = vst.msk [vmem:[%s442 + $0x50] sm:$0xff] %vm443, %v5575
      %5608 = vst.msk [vmem:[%s442 + $0x58] sm:$0xff] %vm443, %v5576
      %5609 = vst.msk [vmem:[%s442 + $0x60] sm:$0xff] %vm443, %v5577
      %5610 = vst.msk [vmem:[%s442 + $0x68] sm:$0xff] %vm443, %v5578
      %5611 = vst.msk [vmem:[%s442 + $0x70] sm:$0xff] %vm443, %v5579
      %5612 = vst.msk [vmem:[%s442 + $0x78] sm:$0xff] %vm443, %v5580
      %5613 = vst.msk [vmem:[%s442 + $0x80] sm:$0xff] %vm443, %v5581
      %5614 = vst.msk [vmem:[%s442 + $0x88] sm:$0xff] %vm443, %v5582
      %5615 = vst.msk [vmem:[%s442 + $0x90] sm:$0xff] %vm443, %v5583
      %5616 = vst.msk [vmem:[%s442 + $0x98] sm:$0xff] %vm443, %v5584
      %5617 = vst.msk [vmem:[%s442 + $0xa0] sm:$0xff] %vm443, %v5585
      %5618 = vst.msk [vmem:[%s442 + $0xa8] sm:$0xff] %vm443, %v5586
      %5619 = vst.msk [vmem:[%s442 + $0xb0] sm:$0xff] %vm443, %v5587
      %5620 = vst.msk [vmem:[%s442 + $0xb8] sm:$0xff] %vm443, %v5588
      %5621 = vst.msk [vmem:[%s442 + $0xc0] sm:$0xff] %vm443, %v5589
      %5622 = vst.msk [vmem:[%s442 + $0xc8] sm:$0xff] %vm443, %v5590
      %5623 = vst.msk [vmem:[%s442 + $0xd0] sm:$0xff] %vm443, %v5591
      %5624 = vst.msk [vmem:[%s442 + $0xd8] sm:$0xff] %vm443, %v5592
      %5625 = vst.msk [vmem:[%s442 + $0xe0] sm:$0xff] %vm443, %v5593
      %5626 = vst.msk [vmem:[%s442 + $0xe8] sm:$0xff] %vm443, %v5594
      %5627 = vst.msk [vmem:[%s442 + $0xf0] sm:$0xff] %vm443, %v5595
      %5628 = vst.msk [vmem:[%s442 + $0xf8] sm:$0xff] %vm443, %v5596
      %p5629 = scmp.lt.s32.totalorder %s26, 1
      %s5630 = scalar_select %p5629, %s26, 1
      %s5631 = smul.addr %s5630, 32
      %s5632 = smul.addr %s5631, 8
      %s5633 = scalar_lea.vmem %s13, %s5632
      // Predicated region
      $region73: #{block_forward_nchw.1} parent=71 // pred_check
        %p5634 = pneg %p322
      $region74: #{block_forward_nchw.1} parent=71 // pred_check_branch
        %5636 = sbr.rel (%p5634) target = $region76
      $region75: #{block_forward_nchw.1} parent=71 // pred_region
        _
      $region76: #{block_forward_nchw.1} parent=71 // pred_fallthru
        _
    $region72: #{block_forward_nchw.1} parent=5 // pred_fallthru
      _
    %p5637 = scmp.le.s32.totalorder 2, %s21
    // Predicated region
    $region77: #{block_forward_nchw.1} parent=5 // pred_check
      %p5638 = pneg %p5637
    $region78: #{block_forward_nchw.1} parent=5 // pred_check_branch
      %5640 = sbr.rel (%p5638) target = $region80
    $region79: #{block_forward_nchw.1} parent=5 // pred_region
      %s5641 = ssub.s32 %s21, 2
      // Predicated region
      $region81: #{block_forward_nchw.1} parent=79 // pred_check
        %p5642 = pneg %p328
      $region82: #{block_forward_nchw.1} parent=79 // pred_check_branch
        %5644 = sbr.rel (%p5642) target = $region84
      $region83: #{block_forward_nchw.1} parent=79 // pred_region
        %p5645 = scmp.lt.s32.totalorder %s27, 1
        %s5646 = scalar_select %p5645, %s27, 1
        %s5647 = smul.addr %s5646, 32
        %s5648 = smul.addr %s5647, 8
        %s5649 = scalar_lea.vmem %s13, %s5648
      $region84: #{block_forward_nchw.1} parent=79 // pred_fallthru
        _
    $region80: #{block_forward_nchw.1} parent=5 // pred_fallthru
      _
  $region6: #{block_forward_nchw.1} parent=0 // loop_footer
    %s25 = sadd.s32 1, %s21
  $region7: #{block_forward_nchw.1} parent=0 // loop_footer_branch
    %20 = sbr.rel target = $region3
  $region8: #{block_forward_nchw.1} parent=0 // loop_exit
    _

</llo_original>
